<compile_context>
chip_gen: v7x
topology: tpu7x:2x2x1
jax: 0.10.0
libtpu: 0.0.40
codegen_flags: <defaults>
</compile_context>

<pallas_src>
import jax
import jax.numpy as jnp
from jax import lax
from jax.experimental import pallas as pl
from jax.experimental.pallas import tpu as pltpu


def decoding_block_kernel(a_ref, x_ref, map_ref, wup_ref, bup_ref,
                          w0u_ref, w0m_ref, b0_ref, w3_ref, b3_ref,
                          out_ref, up_pad_ref):
    _, nf, N = out_ref.shape          # flat conv domain N = Ho * L
    FLAT = x_ref.shape[2]             # (Ho + 3) * L
    L = (FLAT - N) // 3               # padded row stride (Wo + 2)
    Wo = L - 2
    f32 = jnp.float32

    # ---- transposed conv (k=3, s=2, p=1) == VALID 3x3 conv on the pre-dilated
    #      flat input: 9 accumulating per-tap dots, each RHS a constant
    #      lane-offset slice (no im2col scratch traffic).
    up = jnp.dot(wup_ref[0], x_ref[0, :, 0:N], preferred_element_type=f32)
    for t in range(1, 9):
        kh, kw = divmod(t, 3)
        off = kh * L + kw
        up = up + jnp.dot(wup_ref[t], x_ref[0, :, off:off + N],
                          preferred_element_type=f32)
    up = up + bup_ref[...]

    # zero the 2 junk columns per flat row (they double as conv0's zero border)
    col = lax.broadcasted_iota(jnp.int32, (1, N), 1) % L
    up = jnp.where(col < Wo, up, 0.0)

    # ---- place `up` into its zero-bordered padded flat buffer.
    #      Every region is fully rewritten each grid step, so the scratch
    #      carries no state across "parallel" batch steps.
    up_pad_ref[:, 0:L + 1] = jnp.zeros((nf, L + 1), f32)
    up_pad_ref[:, L + 1:L + 1 + N] = up
    up_pad_ref[:, L + 1 + N:FLAT] = jnp.zeros((nf, FLAT - (L + 1 + N)), f32)

    # ---- conv0 (3x3, pad=1) on concat(up, map): the concat is never
    #      materialized — 18 accumulating per-tap dots read the shifted slices
    #      of the up / map halves directly.
    acc0 = (jnp.dot(w0u_ref[0], up_pad_ref[:, 0:N], preferred_element_type=f32)
            + jnp.dot(w0m_ref[0], map_ref[0, :, 0:N], preferred_element_type=f32))
    for t in range(1, 9):
        kh, kw = divmod(t, 3)
        off = kh * L + kw
        acc0 = acc0 + jnp.dot(w0u_ref[t], up_pad_ref[:, off:off + N],
                              preferred_element_type=f32)
        acc0 = acc0 + jnp.dot(w0m_ref[t], map_ref[0, :, off:off + N],
                              preferred_element_type=f32)
    acc0 = acc0 + b0_ref[...]

    # ---- PReLU (single slope, from SMEM) ----
    alpha = a_ref[0, 0]
    act = jnp.where(acc0 > 0, acc0, acc0 * alpha)

    # ---- conv3 (1x1) == channel matmul; ONE lane-dense store of the flat
    #      (nf, Ho*L) output (junk columns stripped in the wrapper).
    out_ref[0] = jnp.dot(w3_ref[...], act, preferred_element_type=f32) + b3_ref[...]


def decoding_block_forward(x_nchw, map_nchw, params):
    B, c_in, H, W = x_nchw.shape
    _, nf, Ho, Wo = map_nchw.shape
    assert Ho == 2 * H and Wo == 2 * W
    nf2 = 2 * nf
    L = Wo + 2                     # padded row stride
    N = Ho * L                     # flat conv domain (2 junk columns per row)
    FLAT = (Ho + 3) * L            # flat buffer length (extra bottom pad rows)

    x = x_nchw.astype(jnp.float32)
    m = map_nchw.astype(jnp.float32)

    # glue: stride-2 zero insertion + pad so ConvTranspose2d(k=3,s=2,p=1,
    # output_size=(Ho,Wo)) becomes a VALID 3x3 conv with the flipped kernel.
    x_dil = jnp.zeros((B, c_in, Ho - 1, Wo - 1), jnp.float32)
    x_dil = x_dil.at[:, :, ::2, ::2].set(x)
    x_dp = jnp.pad(x_dil, ((0, 0), (0, 0), (1, 3), (1, 2))).reshape(B, c_in, FLAT)

    # glue: map pre-padded into the same (Ho+3, L) flat geometry (conv0's pad)
    map_pad = jnp.pad(m, ((0, 0), (0, 0), (1, 2), (1, 1))).reshape(B, nf, FLAT)

    # fold weights per tap (weight-stationary, channel-major):
    # ConvTranspose2d weight (c_in, nf, 3, 3): flipped, per tap -> (9, nf, c_in)
    wup_taps = jnp.transpose(jnp.flip(params["w_up_t"], (2, 3)),
                             (2, 3, 1, 0)).reshape(9, nf, c_in)
    # Conv2d weight (nf2, nf2, 3, 3) split over the concat halves [up | map]
    w0_up_taps = jnp.transpose(params["w0_t"][:, :nf], (2, 3, 0, 1)).reshape(9, nf2, nf)
    w0_map_taps = jnp.transpose(params["w0_t"][:, nf:], (2, 3, 0, 1)).reshape(9, nf2, nf)
    w3 = params["w3_t"][:, :, 0, 0]                 # (nf, nf2)
    b_up = params["b_up"].reshape(nf, 1)
    b0 = params["b0"].reshape(nf2, 1)
    b3 = params["b3"].reshape(nf, 1)
    alpha = params["prelu"].reshape(1, 1)

    out_flat = pl.pallas_call(
        decoding_block_kernel,
        out_shape=jax.ShapeDtypeStruct((B, nf, N), jnp.float32),
        grid_spec=pltpu.PrefetchScalarGridSpec(
            num_scalar_prefetch=0,
            grid=(B,),
            in_specs=[
                pl.BlockSpec(memory_space=pltpu.MemorySpace.SMEM),      # PReLU slope
                pl.BlockSpec((1, c_in, FLAT), lambda b: (b, 0, 0)),     # x (dilated, flat)
                pl.BlockSpec((1, nf, FLAT), lambda b: (b, 0, 0)),       # map (padded, flat)
                pl.BlockSpec((9, nf, c_in), lambda b: (0, 0, 0)),       # up-conv taps
                pl.BlockSpec((nf, 1), lambda b: (0, 0)),                # up bias
                pl.BlockSpec((9, nf2, nf), lambda b: (0, 0, 0)),        # conv0 taps (up half)
                pl.BlockSpec((9, nf2, nf), lambda b: (0, 0, 0)),        # conv0 taps (map half)
                pl.BlockSpec((nf2, 1), lambda b: (0, 0)),               # conv0 bias
                pl.BlockSpec((nf, nf2), lambda b: (0, 0)),              # conv3 (1x1) weights
                pl.BlockSpec((nf, 1), lambda b: (0, 0)),                # conv3 bias
            ],
            out_specs=pl.BlockSpec((1, nf, N), lambda b: (b, 0, 0)),    # lane-dense flat out
            scratch_shapes=[
                pltpu.VMEM((nf, FLAT), jnp.float32),                    # up, padded + flat
            ],
        ),
        compiler_params=pltpu.CompilerParams(
            dimension_semantics=("parallel",)),                          # batch across cores
    )(alpha, x_dp, map_pad, wup_taps, b_up, w0_up_taps, w0_map_taps, b0, w3, b3)

    # strip the 2 junk columns per flat row (cheap XLA reshape + slice)
    return out_flat.reshape(B, nf, Ho, L)[..., :Wo]


def init_params(key, c_in, n_feat):
    """Deterministic synthetic parameters in PyTorch layouts."""
    nf, nf2 = n_feat, 2 * n_feat
    ks = jax.random.split(key, 6)
    w_up_t = jax.random.normal(ks[0], (c_in, nf, 3, 3), jnp.float32) * 0.2
    b_up = jax.random.normal(ks[1], (nf,), jnp.float32) * 0.1
    w0_t = jax.random.normal(ks[2], (nf2, nf2, 3, 3), jnp.float32) * (2.0 / (9 * nf2 + 9 * nf2)) ** 0.5
    b0 = jax.random.normal(ks[3], (nf2,), jnp.float32) * 0.1
    w3_t = jax.random.normal(ks[4], (nf, nf2, 1, 1), jnp.float32) * (2.0 / (nf2 + nf)) ** 0.5
    b3 = jax.random.normal(ks[5], (nf,), jnp.float32) * 0.1
    prelu = jnp.array(0.25, jnp.float32)               # nn.PReLU() default
    return dict(w_up_t=w_up_t, b_up=b_up, w0_t=w0_t, b0=b0,
                w3_t=w3_t, b3=b3, prelu=prelu)


def reference(x_nchw, map_nchw, params):
    """Pure-JAX/XLA reference of the same forward pass (for validation)."""
    xf = x_nchw.astype(jnp.float32)
    mf = map_nchw.astype(jnp.float32)
    hi = lax.Precision.HIGHEST
    dn = ('NCHW', 'OIHW', 'NCHW')
    w_up_oihw = jnp.transpose(jnp.flip(params["w_up_t"], (2, 3)), (1, 0, 2, 3))
    up = lax.conv_general_dilated(xf, w_up_oihw, (1, 1), [(1, 2), (1, 2)],
                                  lhs_dilation=(2, 2), dimension_numbers=dn,
                                  precision=hi) + params["b_up"][None, :, None, None]
    cat = jnp.concatenate([up, mf], axis=1)
    c0 = lax.conv_general_dilated(cat, params["w0_t"], (1, 1), [(1, 1), (1, 1)],
                                  dimension_numbers=dn,
                                  precision=hi) + params["b0"][None, :, None, None]
    act = jnp.where(c0 > 0, c0, params["prelu"] * c0)
    out = jnp.einsum('oc,bchw->bohw', params["w3_t"][:, :, 0, 0], act,
                     precision=hi) + params["b3"][None, :, None, None]
    return out


if __name__ == "__main__":
    key = jax.random.PRNGKey(0)
    c_in, n_feat = 4, 4
    B, H, W = 2, 8, 8
    k1, k2, k3 = jax.random.split(key, 3)

    x = jax.random.normal(k1, (B, c_in, H, W), jnp.float32)             # "input"
    mp = jax.random.normal(k2, (B, n_feat, 2 * H, 2 * W), jnp.float32)  # "map"
    params = init_params(k3, c_in, n_feat)

    out = jax.jit(decoding_block_forward)(x, mp, params)
    out = jax.block_until_ready(out)

    ref = reference(x, mp, params)
    assert out.shape == (B, n_feat, 2 * H, 2 * W), out.shape
    err = float(jnp.abs(out - ref).max())
    assert jnp.allclose(out, ref, atol=3e-3, rtol=3e-3), err
    print("KERNEL_OK")
</pallas_src>

<mosaic_0001>
module attributes {stable_mosaic.version = 11 : i64} {
  func.func @decoding_block_kernel(%arg0: i32, %arg1: memref<1x1xf32, #tpu.memory_space<smem>>, %arg2: memref<1x4x342xf32, #tpu.memory_space<vmem>>, %arg3: memref<1x4x342xf32, #tpu.memory_space<vmem>>, %arg4: memref<9x4x4xf32, #tpu.memory_space<vmem>>, %arg5: memref<4x1xf32, #tpu.memory_space<vmem>>, %arg6: memref<9x8x4xf32, #tpu.memory_space<vmem>>, %arg7: memref<9x8x4xf32, #tpu.memory_space<vmem>>, %arg8: memref<8x1xf32, #tpu.memory_space<vmem>>, %arg9: memref<4x8xf32, #tpu.memory_space<vmem>>, %arg10: memref<4x1xf32, #tpu.memory_space<vmem>>, %arg11: memref<1x4x288xf32, #tpu.memory_space<vmem>>, %arg12: memref<4x342xf32, #tpu.memory_space<vmem>>) attributes {dimension_semantics = [#tpu.dimension_semantics<parallel>], iteration_bounds = array<i64: 2>, scalar_prefetch = 0 : i64, scratch_operands = 1 : i64, tpu.core_type = #tpu.core_type<tc>, window_params = [{transform_indices = @transform_0, window_bounds = array<i64: 1, 1>}, {transform_indices = @transform_1, window_bounds = array<i64: 1, 4, 342>}, {transform_indices = @transform_2, window_bounds = array<i64: 1, 4, 342>}, {pipeline_mode = #tpu.pipeline_mode<synchronous>, transform_indices = @transform_3, window_bounds = array<i64: 9, 4, 4>}, {pipeline_mode = #tpu.pipeline_mode<synchronous>, transform_indices = @transform_4, window_bounds = array<i64: 4, 1>}, {pipeline_mode = #tpu.pipeline_mode<synchronous>, transform_indices = @transform_5, window_bounds = array<i64: 9, 8, 4>}, {pipeline_mode = #tpu.pipeline_mode<synchronous>, transform_indices = @transform_6, window_bounds = array<i64: 9, 8, 4>}, {pipeline_mode = #tpu.pipeline_mode<synchronous>, transform_indices = @transform_7, window_bounds = array<i64: 8, 1>}, {pipeline_mode = #tpu.pipeline_mode<synchronous>, transform_indices = @transform_8, window_bounds = array<i64: 4, 8>}, {pipeline_mode = #tpu.pipeline_mode<synchronous>, transform_indices = @transform_9, window_bounds = array<i64: 4, 1>}, {transform_indices = @transform_10, window_bounds = array<i64: 1, 4, 288>}]} {
    %c0 = arith.constant 0 : index
    %c0_0 = arith.constant 0 : index
    %c0_1 = arith.constant 0 : index
    %0 = vector.load %arg4[%c0, %c0_0, %c0_1] : memref<9x4x4xf32, #tpu.memory_space<vmem>>, vector<1x4x4xf32>
    %1 = vector.shape_cast %0 : vector<1x4x4xf32> to vector<4x4xf32>
    %c0_2 = arith.constant 0 : index
    %c0_3 = arith.constant 0 : index
    %c0_4 = arith.constant 0 : index
    %2 = vector.load %arg2[%c0_2, %c0_3, %c0_4] : memref<1x4x342xf32, #tpu.memory_space<vmem>>, vector<1x4x288xf32>
    %3 = vector.shape_cast %2 : vector<1x4x288xf32> to vector<4x288xf32>
    %cst = arith.constant dense<0.000000e+00> : vector<4x288xf32>
    %4 = tpu.matmul %1, %3, %cst {dimension_numbers = #tpu.dot_dimension_numbers<[1], [0], [0], [1], [0, 0, 1, 1], [], []>} : vector<4x4xf32>, vector<4x288xf32>, vector<4x288xf32> -> vector<4x288xf32>
    %c1 = arith.constant 1 : index
    %c0_5 = arith.constant 0 : index
    %c0_6 = arith.constant 0 : index
    %5 = vector.load %arg4[%c1, %c0_5, %c0_6] : memref<9x4x4xf32, #tpu.memory_space<vmem>>, vector<1x4x4xf32>
    %6 = vector.shape_cast %5 : vector<1x4x4xf32> to vector<4x4xf32>
    %c0_7 = arith.constant 0 : index
    %c0_8 = arith.constant 0 : index
    %c1_9 = arith.constant 1 : index
    %7 = vector.load %arg2[%c0_7, %c0_8, %c1_9] : memref<1x4x342xf32, #tpu.memory_space<vmem>>, vector<1x4x288xf32>
    %8 = vector.shape_cast %7 : vector<1x4x288xf32> to vector<4x288xf32>
    %cst_10 = arith.constant dense<0.000000e+00> : vector<4x288xf32>
    %9 = tpu.matmul %6, %8, %cst_10 {dimension_numbers = #tpu.dot_dimension_numbers<[1], [0], [0], [1], [0, 0, 1, 1], [], []>} : vector<4x4xf32>, vector<4x288xf32>, vector<4x288xf32> -> vector<4x288xf32>
    %10 = arith.addf %4, %9 : vector<4x288xf32>
    %c2 = arith.constant 2 : index
    %c0_11 = arith.constant 0 : index
    %c0_12 = arith.constant 0 : index
    %11 = vector.load %arg4[%c2, %c0_11, %c0_12] : memref<9x4x4xf32, #tpu.memory_space<vmem>>, vector<1x4x4xf32>
    %12 = vector.shape_cast %11 : vector<1x4x4xf32> to vector<4x4xf32>
    %c0_13 = arith.constant 0 : index
    %c0_14 = arith.constant 0 : index
    %c2_15 = arith.constant 2 : index
    %13 = vector.load %arg2[%c0_13, %c0_14, %c2_15] : memref<1x4x342xf32, #tpu.memory_space<vmem>>, vector<1x4x288xf32>
    %14 = vector.shape_cast %13 : vector<1x4x288xf32> to vector<4x288xf32>
    %cst_16 = arith.constant dense<0.000000e+00> : vector<4x288xf32>
    %15 = tpu.matmul %12, %14, %cst_16 {dimension_numbers = #tpu.dot_dimension_numbers<[1], [0], [0], [1], [0, 0, 1, 1], [], []>} : vector<4x4xf32>, vector<4x288xf32>, vector<4x288xf32> -> vector<4x288xf32>
    %16 = arith.addf %10, %15 : vector<4x288xf32>
    %c3 = arith.constant 3 : index
    %c0_17 = arith.constant 0 : index
    %c0_18 = arith.constant 0 : index
    %17 = vector.load %arg4[%c3, %c0_17, %c0_18] : memref<9x4x4xf32, #tpu.memory_space<vmem>>, vector<1x4x4xf32>
    %18 = vector.shape_cast %17 : vector<1x4x4xf32> to vector<4x4xf32>
    %c0_19 = arith.constant 0 : index
    %c0_20 = arith.constant 0 : index
    %c18 = arith.constant 18 : index
    %19 = vector.load %arg2[%c0_19, %c0_20, %c18] : memref<1x4x342xf32, #tpu.memory_space<vmem>>, vector<1x4x288xf32>
    %20 = vector.shape_cast %19 : vector<1x4x288xf32> to vector<4x288xf32>
    %cst_21 = arith.constant dense<0.000000e+00> : vector<4x288xf32>
    %21 = tpu.matmul %18, %20, %cst_21 {dimension_numbers = #tpu.dot_dimension_numbers<[1], [0], [0], [1], [0, 0, 1, 1], [], []>} : vector<4x4xf32>, vector<4x288xf32>, vector<4x288xf32> -> vector<4x288xf32>
    %22 = arith.addf %16, %21 : vector<4x288xf32>
    %c4 = arith.constant 4 : index
    %c0_22 = arith.constant 0 : index
    %c0_23 = arith.constant 0 : index
    %23 = vector.load %arg4[%c4, %c0_22, %c0_23] : memref<9x4x4xf32, #tpu.memory_space<vmem>>, vector<1x4x4xf32>
    %24 = vector.shape_cast %23 : vector<1x4x4xf32> to vector<4x4xf32>
    %c0_24 = arith.constant 0 : index
    %c0_25 = arith.constant 0 : index
    %c19 = arith.constant 19 : index
    %25 = vector.load %arg2[%c0_24, %c0_25, %c19] : memref<1x4x342xf32, #tpu.memory_space<vmem>>, vector<1x4x288xf32>
    %26 = vector.shape_cast %25 : vector<1x4x288xf32> to vector<4x288xf32>
    %cst_26 = arith.constant dense<0.000000e+00> : vector<4x288xf32>
    %27 = tpu.matmul %24, %26, %cst_26 {dimension_numbers = #tpu.dot_dimension_numbers<[1], [0], [0], [1], [0, 0, 1, 1], [], []>} : vector<4x4xf32>, vector<4x288xf32>, vector<4x288xf32> -> vector<4x288xf32>
    %28 = arith.addf %22, %27 : vector<4x288xf32>
    %c5 = arith.constant 5 : index
    %c0_27 = arith.constant 0 : index
    %c0_28 = arith.constant 0 : index
    %29 = vector.load %arg4[%c5, %c0_27, %c0_28] : memref<9x4x4xf32, #tpu.memory_space<vmem>>, vector<1x4x4xf32>
    %30 = vector.shape_cast %29 : vector<1x4x4xf32> to vector<4x4xf32>
    %c0_29 = arith.constant 0 : index
    %c0_30 = arith.constant 0 : index
    %c20 = arith.constant 20 : index
    %31 = vector.load %arg2[%c0_29, %c0_30, %c20] : memref<1x4x342xf32, #tpu.memory_space<vmem>>, vector<1x4x288xf32>
    %32 = vector.shape_cast %31 : vector<1x4x288xf32> to vector<4x288xf32>
    %cst_31 = arith.constant dense<0.000000e+00> : vector<4x288xf32>
    %33 = tpu.matmul %30, %32, %cst_31 {dimension_numbers = #tpu.dot_dimension_numbers<[1], [0], [0], [1], [0, 0, 1, 1], [], []>} : vector<4x4xf32>, vector<4x288xf32>, vector<4x288xf32> -> vector<4x288xf32>
    %34 = arith.addf %28, %33 : vector<4x288xf32>
    %c6 = arith.constant 6 : index
    %c0_32 = arith.constant 0 : index
    %c0_33 = arith.constant 0 : index
    %35 = vector.load %arg4[%c6, %c0_32, %c0_33] : memref<9x4x4xf32, #tpu.memory_space<vmem>>, vector<1x4x4xf32>
    %36 = vector.shape_cast %35 : vector<1x4x4xf32> to vector<4x4xf32>
    %c0_34 = arith.constant 0 : index
    %c0_35 = arith.constant 0 : index
    %c36 = arith.constant 36 : index
    %37 = vector.load %arg2[%c0_34, %c0_35, %c36] : memref<1x4x342xf32, #tpu.memory_space<vmem>>, vector<1x4x288xf32>
    %38 = vector.shape_cast %37 : vector<1x4x288xf32> to vector<4x288xf32>
    %cst_36 = arith.constant dense<0.000000e+00> : vector<4x288xf32>
    %39 = tpu.matmul %36, %38, %cst_36 {dimension_numbers = #tpu.dot_dimension_numbers<[1], [0], [0], [1], [0, 0, 1, 1], [], []>} : vector<4x4xf32>, vector<4x288xf32>, vector<4x288xf32> -> vector<4x288xf32>
    %40 = arith.addf %34, %39 : vector<4x288xf32>
    %c7 = arith.constant 7 : index
    %c0_37 = arith.constant 0 : index
    %c0_38 = arith.constant 0 : index
    %41 = vector.load %arg4[%c7, %c0_37, %c0_38] : memref<9x4x4xf32, #tpu.memory_space<vmem>>, vector<1x4x4xf32>
    %42 = vector.shape_cast %41 : vector<1x4x4xf32> to vector<4x4xf32>
    %c0_39 = arith.constant 0 : index
    %c0_40 = arith.constant 0 : index
    %c37 = arith.constant 37 : index
    %43 = vector.load %arg2[%c0_39, %c0_40, %c37] : memref<1x4x342xf32, #tpu.memory_space<vmem>>, vector<1x4x288xf32>
    %44 = vector.shape_cast %43 : vector<1x4x288xf32> to vector<4x288xf32>
    %cst_41 = arith.constant dense<0.000000e+00> : vector<4x288xf32>
    %45 = tpu.matmul %42, %44, %cst_41 {dimension_numbers = #tpu.dot_dimension_numbers<[1], [0], [0], [1], [0, 0, 1, 1], [], []>} : vector<4x4xf32>, vector<4x288xf32>, vector<4x288xf32> -> vector<4x288xf32>
    %46 = arith.addf %40, %45 : vector<4x288xf32>
    %c8 = arith.constant 8 : index
    %c0_42 = arith.constant 0 : index
    %c0_43 = arith.constant 0 : index
    %47 = vector.load %arg4[%c8, %c0_42, %c0_43] : memref<9x4x4xf32, #tpu.memory_space<vmem>>, vector<1x4x4xf32>
    %48 = vector.shape_cast %47 : vector<1x4x4xf32> to vector<4x4xf32>
    %c0_44 = arith.constant 0 : index
    %c0_45 = arith.constant 0 : index
    %c38 = arith.constant 38 : index
    %49 = vector.load %arg2[%c0_44, %c0_45, %c38] : memref<1x4x342xf32, #tpu.memory_space<vmem>>, vector<1x4x288xf32>
    %50 = vector.shape_cast %49 : vector<1x4x288xf32> to vector<4x288xf32>
    %cst_46 = arith.constant dense<0.000000e+00> : vector<4x288xf32>
    %51 = tpu.matmul %48, %50, %cst_46 {dimension_numbers = #tpu.dot_dimension_numbers<[1], [0], [0], [1], [0, 0, 1, 1], [], []>} : vector<4x4xf32>, vector<4x288xf32>, vector<4x288xf32> -> vector<4x288xf32>
    %52 = arith.addf %46, %51 : vector<4x288xf32>
    %c0_47 = arith.constant 0 : index
    %c0_48 = arith.constant 0 : index
    %53 = vector.load %arg5[%c0_47, %c0_48] : memref<4x1xf32, #tpu.memory_space<vmem>>, vector<4x1xf32>
    %54 = vector.broadcast %53 : vector<4x1xf32> to vector<4x288xf32>
    %55 = arith.addf %52, %54 : vector<4x288xf32>
    %56 = tpu.iota {dimensions = array<i32: 1>} : vector<1x288xi32>
    %c18_i32 = arith.constant 18 : i32
    %c0_i32 = arith.constant 0 : i32
    %57 = arith.cmpi eq, %c18_i32, %c0_i32 : i32
    %c1_i32 = arith.constant 1 : i32
    %58 = arith.select %57, %c1_i32, %c18_i32 : i32
    %59 = vector.broadcast %58 : i32 to vector<1x288xi32>
    %60 = arith.remsi %56, %59 : vector<1x288xi32>
    %c0_i32_49 = arith.constant 0 : i32
    %61 = vector.broadcast %c0_i32_49 : i32 to vector<1x288xi32>
    %62 = arith.cmpi ne, %60, %61 : vector<1x288xi32>
    %c0_i32_50 = arith.constant 0 : i32
    %63 = vector.broadcast %c0_i32_50 : i32 to vector<1x288xi32>
    %64 = arith.cmpi slt, %60, %63 : vector<1x288xi32>
    %c0_i32_51 = arith.constant 0 : i32
    %65 = arith.cmpi slt, %58, %c0_i32_51 : i32
    %66 = vector.broadcast %65 : i1 to vector<1x288xi1>
    %67 = vector.broadcast %66 : vector<1x288xi1> to vector<1x288xi1>
    %68 = arith.xori %64, %67 : vector<1x288xi1>
    %69 = arith.andi %68, %62 : vector<1x288xi1>
    %70 = vector.broadcast %58 : i32 to vector<1x288xi32>
    %71 = arith.addi %60, %70 : vector<1x288xi32>
    %72 = arith.select %69, %71, %60 : vector<1x288xi1>, vector<1x288xi32>
    %c16_i32 = arith.constant 16 : i32
    %73 = vector.broadcast %c16_i32 : i32 to vector<1x288xi32>
    %74 = arith.cmpi slt, %72, %73 : vector<1x288xi32>
    %cst_52 = arith.constant 0.000000e+00 : f32
    %75 = vector.shape_cast %74 : vector<1x288xi1> to vector<1x288xi1>
    %76 = vector.broadcast %75 : vector<1x288xi1> to vector<4x288xi1>
    %77 = vector.broadcast %cst_52 : f32 to vector<4x288xf32>
    %78 = arith.select %76, %55, %77 : vector<4x288xi1>, vector<4x288xf32>
    %cst_53 = arith.constant 0.000000e+00 : f32
    %79 = vector.broadcast %cst_53 : f32 to vector<4x19xf32>
    %c0_54 = arith.constant 0 : index
    %c0_55 = arith.constant 0 : index
    %80 = vector.load %arg12[%c0_54, %c0_55] : memref<4x342xf32, #tpu.memory_space<vmem>>, vector<4x19xf32>
    tpu.vector_store %arg12[%c0_54, %c0_55], %79 {strides = array<i32>} : memref<4x342xf32, #tpu.memory_space<vmem>>, vector<4x19xf32>,
    %c0_56 = arith.constant 0 : index
    %c19_57 = arith.constant 19 : index
    %81 = vector.load %arg12[%c0_56, %c19_57] : memref<4x342xf32, #tpu.memory_space<vmem>>, vector<4x288xf32>
    tpu.vector_store %arg12[%c0_56, %c19_57], %78 {strides = array<i32>} : memref<4x342xf32, #tpu.memory_space<vmem>>, vector<4x288xf32>,
    %cst_58 = arith.constant 0.000000e+00 : f32
    %82 = vector.broadcast %cst_58 : f32 to vector<4x35xf32>
    %c0_59 = arith.constant 0 : index
    %c307 = arith.constant 307 : index
    %83 = vector.load %arg12[%c0_59, %c307] : memref<4x342xf32, #tpu.memory_space<vmem>>, vector<4x35xf32>
    tpu.vector_store %arg12[%c0_59, %c307], %82 {strides = array<i32>} : memref<4x342xf32, #tpu.memory_space<vmem>>, vector<4x35xf32>,
    %c0_60 = arith.constant 0 : index
    %c0_61 = arith.constant 0 : index
    %c0_62 = arith.constant 0 : index
    %84 = vector.load %arg6[%c0_60, %c0_61, %c0_62] : memref<9x8x4xf32, #tpu.memory_space<vmem>>, vector<1x8x4xf32>
    %85 = vector.shape_cast %84 : vector<1x8x4xf32> to vector<8x4xf32>
    %c0_63 = arith.constant 0 : index
    %c0_64 = arith.constant 0 : index
    %86 = vector.load %arg12[%c0_63, %c0_64] : memref<4x342xf32, #tpu.memory_space<vmem>>, vector<4x288xf32>
    %cst_65 = arith.constant dense<0.000000e+00> : vector<8x288xf32>
    %87 = tpu.matmul %85, %86, %cst_65 {dimension_numbers = #tpu.dot_dimension_numbers<[1], [0], [0], [1], [0, 0, 1, 1], [], []>} : vector<8x4xf32>, vector<4x288xf32>, vector<8x288xf32> -> vector<8x288xf32>
    %c0_66 = arith.constant 0 : index
    %c0_67 = arith.constant 0 : index
    %c0_68 = arith.constant 0 : index
    %88 = vector.load %arg7[%c0_66, %c0_67, %c0_68] : memref<9x8x4xf32, #tpu.memory_space<vmem>>, vector<1x8x4xf32>
    %89 = vector.shape_cast %88 : vector<1x8x4xf32> to vector<8x4xf32>
    %c0_69 = arith.constant 0 : index
    %c0_70 = arith.constant 0 : index
    %c0_71 = arith.constant 0 : index
    %90 = vector.load %arg3[%c0_69, %c0_70, %c0_71] : memref<1x4x342xf32, #tpu.memory_space<vmem>>, vector<1x4x288xf32>
    %91 = vector.shape_cast %90 : vector<1x4x288xf32> to vector<4x288xf32>
    %cst_72 = arith.constant dense<0.000000e+00> : vector<8x288xf32>
    %92 = tpu.matmul %89, %91, %cst_72 {dimension_numbers = #tpu.dot_dimension_numbers<[1], [0], [0], [1], [0, 0, 1, 1], [], []>} : vector<8x4xf32>, vector<4x288xf32>, vector<8x288xf32> -> vector<8x288xf32>
    %93 = arith.addf %87, %92 : vector<8x288xf32>
    %c1_73 = arith.constant 1 : index
    %c0_74 = arith.constant 0 : index
    %c0_75 = arith.constant 0 : index
    %94 = vector.load %arg6[%c1_73, %c0_74, %c0_75] : memref<9x8x4xf32, #tpu.memory_space<vmem>>, vector<1x8x4xf32>
    %95 = vector.shape_cast %94 : vector<1x8x4xf32> to vector<8x4xf32>
    %c0_76 = arith.constant 0 : index
    %c1_77 = arith.constant 1 : index
    %96 = vector.load %arg12[%c0_76, %c1_77] : memref<4x342xf32, #tpu.memory_space<vmem>>, vector<4x288xf32>
    %cst_78 = arith.constant dense<0.000000e+00> : vector<8x288xf32>
    %97 = tpu.matmul %95, %96, %cst_78 {dimension_numbers = #tpu.dot_dimension_numbers<[1], [0], [0], [1], [0, 0, 1, 1], [], []>} : vector<8x4xf32>, vector<4x288xf32>, vector<8x288xf32> -> vector<8x288xf32>
    %98 = arith.addf %93, %97 : vector<8x288xf32>
    %c1_79 = arith.constant 1 : index
    %c0_80 = arith.constant 0 : index
    %c0_81 = arith.constant 0 : index
    %99 = vector.load %arg7[%c1_79, %c0_80, %c0_81] : memref<9x8x4xf32, #tpu.memory_space<vmem>>, vector<1x8x4xf32>
    %100 = vector.shape_cast %99 : vector<1x8x4xf32> to vector<8x4xf32>
    %c0_82 = arith.constant 0 : index
    %c0_83 = arith.constant 0 : index
    %c1_84 = arith.constant 1 : index
    %101 = vector.load %arg3[%c0_82, %c0_83, %c1_84] : memref<1x4x342xf32, #tpu.memory_space<vmem>>, vector<1x4x288xf32>
    %102 = vector.shape_cast %101 : vector<1x4x288xf32> to vector<4x288xf32>
    %cst_85 = arith.constant dense<0.000000e+00> : vector<8x288xf32>
    %103 = tpu.matmul %100, %102, %cst_85 {dimension_numbers = #tpu.dot_dimension_numbers<[1], [0], [0], [1], [0, 0, 1, 1], [], []>} : vector<8x4xf32>, vector<4x288xf32>, vector<8x288xf32> -> vector<8x288xf32>
    %104 = arith.addf %98, %103 : vector<8x288xf32>
    %c2_86 = arith.constant 2 : index
    %c0_87 = arith.constant 0 : index
    %c0_88 = arith.constant 0 : index
    %105 = vector.load %arg6[%c2_86, %c0_87, %c0_88] : memref<9x8x4xf32, #tpu.memory_space<vmem>>, vector<1x8x4xf32>
    %106 = vector.shape_cast %105 : vector<1x8x4xf32> to vector<8x4xf32>
    %c0_89 = arith.constant 0 : index
    %c2_90 = arith.constant 2 : index
    %107 = vector.load %arg12[%c0_89, %c2_90] : memref<4x342xf32, #tpu.memory_space<vmem>>, vector<4x288xf32>
    %cst_91 = arith.constant dense<0.000000e+00> : vector<8x288xf32>
    %108 = tpu.matmul %106, %107, %cst_91 {dimension_numbers = #tpu.dot_dimension_numbers<[1], [0], [0], [1], [0, 0, 1, 1], [], []>} : vector<8x4xf32>, vector<4x288xf32>, vector<8x288xf32> -> vector<8x288xf32>
    %109 = arith.addf %104, %108 : vector<8x288xf32>
    %c2_92 = arith.constant 2 : index
    %c0_93 = arith.constant 0 : index
    %c0_94 = arith.constant 0 : index
    %110 = vector.load %arg7[%c2_92, %c0_93, %c0_94] : memref<9x8x4xf32, #tpu.memory_space<vmem>>, vector<1x8x4xf32>
    %111 = vector.shape_cast %110 : vector<1x8x4xf32> to vector<8x4xf32>
    %c0_95 = arith.constant 0 : index
    %c0_96 = arith.constant 0 : index
    %c2_97 = arith.constant 2 : index
    %112 = vector.load %arg3[%c0_95, %c0_96, %c2_97] : memref<1x4x342xf32, #tpu.memory_space<vmem>>, vector<1x4x288xf32>
    %113 = vector.shape_cast %112 : vector<1x4x288xf32> to vector<4x288xf32>
    %cst_98 = arith.constant dense<0.000000e+00> : vector<8x288xf32>
    %114 = tpu.matmul %111, %113, %cst_98 {dimension_numbers = #tpu.dot_dimension_numbers<[1], [0], [0], [1], [0, 0, 1, 1], [], []>} : vector<8x4xf32>, vector<4x288xf32>, vector<8x288xf32> -> vector<8x288xf32>
    %115 = arith.addf %109, %114 : vector<8x288xf32>
    %c3_99 = arith.constant 3 : index
    %c0_100 = arith.constant 0 : index
    %c0_101 = arith.constant 0 : index
    %116 = vector.load %arg6[%c3_99, %c0_100, %c0_101] : memref<9x8x4xf32, #tpu.memory_space<vmem>>, vector<1x8x4xf32>
    %117 = vector.shape_cast %116 : vector<1x8x4xf32> to vector<8x4xf32>
    %c0_102 = arith.constant 0 : index
    %c18_103 = arith.constant 18 : index
    %118 = vector.load %arg12[%c0_102, %c18_103] : memref<4x342xf32, #tpu.memory_space<vmem>>, vector<4x288xf32>
    %cst_104 = arith.constant dense<0.000000e+00> : vector<8x288xf32>
    %119 = tpu.matmul %117, %118, %cst_104 {dimension_numbers = #tpu.dot_dimension_numbers<[1], [0], [0], [1], [0, 0, 1, 1], [], []>} : vector<8x4xf32>, vector<4x288xf32>, vector<8x288xf32> -> vector<8x288xf32>
    %120 = arith.addf %115, %119 : vector<8x288xf32>
    %c3_105 = arith.constant 3 : index
    %c0_106 = arith.constant 0 : index
    %c0_107 = arith.constant 0 : index
    %121 = vector.load %arg7[%c3_105, %c0_106, %c0_107] : memref<9x8x4xf32, #tpu.memory_space<vmem>>, vector<1x8x4xf32>
    %122 = vector.shape_cast %121 : vector<1x8x4xf32> to vector<8x4xf32>
    %c0_108 = arith.constant 0 : index
    %c0_109 = arith.constant 0 : index
    %c18_110 = arith.constant 18 : index
    %123 = vector.load %arg3[%c0_108, %c0_109, %c18_110] : memref<1x4x342xf32, #tpu.memory_space<vmem>>, vector<1x4x288xf32>
    %124 = vector.shape_cast %123 : vector<1x4x288xf32> to vector<4x288xf32>
    %cst_111 = arith.constant dense<0.000000e+00> : vector<8x288xf32>
    %125 = tpu.matmul %122, %124, %cst_111 {dimension_numbers = #tpu.dot_dimension_numbers<[1], [0], [0], [1], [0, 0, 1, 1], [], []>} : vector<8x4xf32>, vector<4x288xf32>, vector<8x288xf32> -> vector<8x288xf32>
    %126 = arith.addf %120, %125 : vector<8x288xf32>
    %c4_112 = arith.constant 4 : index
    %c0_113 = arith.constant 0 : index
    %c0_114 = arith.constant 0 : index
    %127 = vector.load %arg6[%c4_112, %c0_113, %c0_114] : memref<9x8x4xf32, #tpu.memory_space<vmem>>, vector<1x8x4xf32>
    %128 = vector.shape_cast %127 : vector<1x8x4xf32> to vector<8x4xf32>
    %c0_115 = arith.constant 0 : index
    %c19_116 = arith.constant 19 : index
    %129 = vector.load %arg12[%c0_115, %c19_116] : memref<4x342xf32, #tpu.memory_space<vmem>>, vector<4x288xf32>
    %cst_117 = arith.constant dense<0.000000e+00> : vector<8x288xf32>
    %130 = tpu.matmul %128, %129, %cst_117 {dimension_numbers = #tpu.dot_dimension_numbers<[1], [0], [0], [1], [0, 0, 1, 1], [], []>} : vector<8x4xf32>, vector<4x288xf32>, vector<8x288xf32> -> vector<8x288xf32>
    %131 = arith.addf %126, %130 : vector<8x288xf32>
    %c4_118 = arith.constant 4 : index
    %c0_119 = arith.constant 0 : index
    %c0_120 = arith.constant 0 : index
    %132 = vector.load %arg7[%c4_118, %c0_119, %c0_120] : memref<9x8x4xf32, #tpu.memory_space<vmem>>, vector<1x8x4xf32>
    %133 = vector.shape_cast %132 : vector<1x8x4xf32> to vector<8x4xf32>
    %c0_121 = arith.constant 0 : index
    %c0_122 = arith.constant 0 : index
    %c19_123 = arith.constant 19 : index
    %134 = vector.load %arg3[%c0_121, %c0_122, %c19_123] : memref<1x4x342xf32, #tpu.memory_space<vmem>>, vector<1x4x288xf32>
    %135 = vector.shape_cast %134 : vector<1x4x288xf32> to vector<4x288xf32>
    %cst_124 = arith.constant dense<0.000000e+00> : vector<8x288xf32>
    %136 = tpu.matmul %133, %135, %cst_124 {dimension_numbers = #tpu.dot_dimension_numbers<[1], [0], [0], [1], [0, 0, 1, 1], [], []>} : vector<8x4xf32>, vector<4x288xf32>, vector<8x288xf32> -> vector<8x288xf32>
    %137 = arith.addf %131, %136 : vector<8x288xf32>
    %c5_125 = arith.constant 5 : index
    %c0_126 = arith.constant 0 : index
    %c0_127 = arith.constant 0 : index
    %138 = vector.load %arg6[%c5_125, %c0_126, %c0_127] : memref<9x8x4xf32, #tpu.memory_space<vmem>>, vector<1x8x4xf32>
    %139 = vector.shape_cast %138 : vector<1x8x4xf32> to vector<8x4xf32>
    %c0_128 = arith.constant 0 : index
    %c20_129 = arith.constant 20 : index
    %140 = vector.load %arg12[%c0_128, %c20_129] : memref<4x342xf32, #tpu.memory_space<vmem>>, vector<4x288xf32>
    %cst_130 = arith.constant dense<0.000000e+00> : vector<8x288xf32>
    %141 = tpu.matmul %139, %140, %cst_130 {dimension_numbers = #tpu.dot_dimension_numbers<[1], [0], [0], [1], [0, 0, 1, 1], [], []>} : vector<8x4xf32>, vector<4x288xf32>, vector<8x288xf32> -> vector<8x288xf32>
    %142 = arith.addf %137, %141 : vector<8x288xf32>
    %c5_131 = arith.constant 5 : index
    %c0_132 = arith.constant 0 : index
    %c0_133 = arith.constant 0 : index
    %143 = vector.load %arg7[%c5_131, %c0_132, %c0_133] : memref<9x8x4xf32, #tpu.memory_space<vmem>>, vector<1x8x4xf32>
    %144 = vector.shape_cast %143 : vector<1x8x4xf32> to vector<8x4xf32>
    %c0_134 = arith.constant 0 : index
    %c0_135 = arith.constant 0 : index
    %c20_136 = arith.constant 20 : index
    %145 = vector.load %arg3[%c0_134, %c0_135, %c20_136] : memref<1x4x342xf32, #tpu.memory_space<vmem>>, vector<1x4x288xf32>
    %146 = vector.shape_cast %145 : vector<1x4x288xf32> to vector<4x288xf32>
    %cst_137 = arith.constant dense<0.000000e+00> : vector<8x288xf32>
    %147 = tpu.matmul %144, %146, %cst_137 {dimension_numbers = #tpu.dot_dimension_numbers<[1], [0], [0], [1], [0, 0, 1, 1], [], []>} : vector<8x4xf32>, vector<4x288xf32>, vector<8x288xf32> -> vector<8x288xf32>
    %148 = arith.addf %142, %147 : vector<8x288xf32>
    %c6_138 = arith.constant 6 : index
    %c0_139 = arith.constant 0 : index
    %c0_140 = arith.constant 0 : index
    %149 = vector.load %arg6[%c6_138, %c0_139, %c0_140] : memref<9x8x4xf32, #tpu.memory_space<vmem>>, vector<1x8x4xf32>
    %150 = vector.shape_cast %149 : vector<1x8x4xf32> to vector<8x4xf32>
    %c0_141 = arith.constant 0 : index
    %c36_142 = arith.constant 36 : index
    %151 = vector.load %arg12[%c0_141, %c36_142] : memref<4x342xf32, #tpu.memory_space<vmem>>, vector<4x288xf32>
    %cst_143 = arith.constant dense<0.000000e+00> : vector<8x288xf32>
    %152 = tpu.matmul %150, %151, %cst_143 {dimension_numbers = #tpu.dot_dimension_numbers<[1], [0], [0], [1], [0, 0, 1, 1], [], []>} : vector<8x4xf32>, vector<4x288xf32>, vector<8x288xf32> -> vector<8x288xf32>
    %153 = arith.addf %148, %152 : vector<8x288xf32>
    %c6_144 = arith.constant 6 : index
    %c0_145 = arith.constant 0 : index
    %c0_146 = arith.constant 0 : index
    %154 = vector.load %arg7[%c6_144, %c0_145, %c0_146] : memref<9x8x4xf32, #tpu.memory_space<vmem>>, vector<1x8x4xf32>
    %155 = vector.shape_cast %154 : vector<1x8x4xf32> to vector<8x4xf32>
    %c0_147 = arith.constant 0 : index
    %c0_148 = arith.constant 0 : index
    %c36_149 = arith.constant 36 : index
    %156 = vector.load %arg3[%c0_147, %c0_148, %c36_149] : memref<1x4x342xf32, #tpu.memory_space<vmem>>, vector<1x4x288xf32>
    %157 = vector.shape_cast %156 : vector<1x4x288xf32> to vector<4x288xf32>
    %cst_150 = arith.constant dense<0.000000e+00> : vector<8x288xf32>
    %158 = tpu.matmul %155, %157, %cst_150 {dimension_numbers = #tpu.dot_dimension_numbers<[1], [0], [0], [1], [0, 0, 1, 1], [], []>} : vector<8x4xf32>, vector<4x288xf32>, vector<8x288xf32> -> vector<8x288xf32>
    %159 = arith.addf %153, %158 : vector<8x288xf32>
    %c7_151 = arith.constant 7 : index
    %c0_152 = arith.constant 0 : index
    %c0_153 = arith.constant 0 : index
    %160 = vector.load %arg6[%c7_151, %c0_152, %c0_153] : memref<9x8x4xf32, #tpu.memory_space<vmem>>, vector<1x8x4xf32>
    %161 = vector.shape_cast %160 : vector<1x8x4xf32> to vector<8x4xf32>
    %c0_154 = arith.constant 0 : index
    %c37_155 = arith.constant 37 : index
    %162 = vector.load %arg12[%c0_154, %c37_155] : memref<4x342xf32, #tpu.memory_space<vmem>>, vector<4x288xf32>
    %cst_156 = arith.constant dense<0.000000e+00> : vector<8x288xf32>
    %163 = tpu.matmul %161, %162, %cst_156 {dimension_numbers = #tpu.dot_dimension_numbers<[1], [0], [0], [1], [0, 0, 1, 1], [], []>} : vector<8x4xf32>, vector<4x288xf32>, vector<8x288xf32> -> vector<8x288xf32>
    %164 = arith.addf %159, %163 : vector<8x288xf32>
    %c7_157 = arith.constant 7 : index
    %c0_158 = arith.constant 0 : index
    %c0_159 = arith.constant 0 : index
    %165 = vector.load %arg7[%c7_157, %c0_158, %c0_159] : memref<9x8x4xf32, #tpu.memory_space<vmem>>, vector<1x8x4xf32>
    %166 = vector.shape_cast %165 : vector<1x8x4xf32> to vector<8x4xf32>
    %c0_160 = arith.constant 0 : index
    %c0_161 = arith.constant 0 : index
    %c37_162 = arith.constant 37 : index
    %167 = vector.load %arg3[%c0_160, %c0_161, %c37_162] : memref<1x4x342xf32, #tpu.memory_space<vmem>>, vector<1x4x288xf32>
    %168 = vector.shape_cast %167 : vector<1x4x288xf32> to vector<4x288xf32>
    %cst_163 = arith.constant dense<0.000000e+00> : vector<8x288xf32>
    %169 = tpu.matmul %166, %168, %cst_163 {dimension_numbers = #tpu.dot_dimension_numbers<[1], [0], [0], [1], [0, 0, 1, 1], [], []>} : vector<8x4xf32>, vector<4x288xf32>, vector<8x288xf32> -> vector<8x288xf32>
    %170 = arith.addf %164, %169 : vector<8x288xf32>
    %c8_164 = arith.constant 8 : index
    %c0_165 = arith.constant 0 : index
    %c0_166 = arith.constant 0 : index
    %171 = vector.load %arg6[%c8_164, %c0_165, %c0_166] : memref<9x8x4xf32, #tpu.memory_space<vmem>>, vector<1x8x4xf32>
    %172 = vector.shape_cast %171 : vector<1x8x4xf32> to vector<8x4xf32>
    %c0_167 = arith.constant 0 : index
    %c38_168 = arith.constant 38 : index
    %173 = vector.load %arg12[%c0_167, %c38_168] : memref<4x342xf32, #tpu.memory_space<vmem>>, vector<4x288xf32>
    %cst_169 = arith.constant dense<0.000000e+00> : vector<8x288xf32>
    %174 = tpu.matmul %172, %173, %cst_169 {dimension_numbers = #tpu.dot_dimension_numbers<[1], [0], [0], [1], [0, 0, 1, 1], [], []>} : vector<8x4xf32>, vector<4x288xf32>, vector<8x288xf32> -> vector<8x288xf32>
    %175 = arith.addf %170, %174 : vector<8x288xf32>
    %c8_170 = arith.constant 8 : index
    %c0_171 = arith.constant 0 : index
    %c0_172 = arith.constant 0 : index
    %176 = vector.load %arg7[%c8_170, %c0_171, %c0_172] : memref<9x8x4xf32, #tpu.memory_space<vmem>>, vector<1x8x4xf32>
    %177 = vector.shape_cast %176 : vector<1x8x4xf32> to vector<8x4xf32>
    %c0_173 = arith.constant 0 : index
    %c0_174 = arith.constant 0 : index
    %c38_175 = arith.constant 38 : index
    %178 = vector.load %arg3[%c0_173, %c0_174, %c38_175] : memref<1x4x342xf32, #tpu.memory_space<vmem>>, vector<1x4x288xf32>
    %179 = vector.shape_cast %178 : vector<1x4x288xf32> to vector<4x288xf32>
    %cst_176 = arith.constant dense<0.000000e+00> : vector<8x288xf32>
    %180 = tpu.matmul %177, %179, %cst_176 {dimension_numbers = #tpu.dot_dimension_numbers<[1], [0], [0], [1], [0, 0, 1, 1], [], []>} : vector<8x4xf32>, vector<4x288xf32>, vector<8x288xf32> -> vector<8x288xf32>
    %181 = arith.addf %175, %180 : vector<8x288xf32>
    %c0_177 = arith.constant 0 : index
    %c0_178 = arith.constant 0 : index
    %182 = vector.load %arg8[%c0_177, %c0_178] : memref<8x1xf32, #tpu.memory_space<vmem>>, vector<8x1xf32>
    %183 = vector.broadcast %182 : vector<8x1xf32> to vector<8x288xf32>
    %184 = arith.addf %181, %183 : vector<8x288xf32>
    %c0_179 = arith.constant 0 : index
    %c0_180 = arith.constant 0 : index
    %185 = memref.load %arg1[%c0_179, %c0_180] : memref<1x1xf32, #tpu.memory_space<smem>>
    %cst_181 = arith.constant 0.000000e+00 : f32
    %186 = vector.broadcast %cst_181 : f32 to vector<8x288xf32>
    %187 = arith.cmpf ogt, %184, %186 : vector<8x288xf32>
    %188 = vector.broadcast %185 : f32 to vector<8x288xf32>
    %189 = arith.mulf %184, %188 : vector<8x288xf32>
    %190 = arith.select %187, %184, %189 : vector<8x288xi1>, vector<8x288xf32>
    %c0_182 = arith.constant 0 : index
    %c0_183 = arith.constant 0 : index
    %191 = vector.load %arg9[%c0_182, %c0_183] : memref<4x8xf32, #tpu.memory_space<vmem>>, vector<4x8xf32>
    %cst_184 = arith.constant dense<0.000000e+00> : vector<4x288xf32>
    %192 = tpu.matmul %191, %190, %cst_184 {dimension_numbers = #tpu.dot_dimension_numbers<[1], [0], [0], [1], [0, 0, 1, 1], [], []>} : vector<4x8xf32>, vector<8x288xf32>, vector<4x288xf32> -> vector<4x288xf32>
    %c0_185 = arith.constant 0 : index
    %c0_186 = arith.constant 0 : index
    %193 = vector.load %arg10[%c0_185, %c0_186] : memref<4x1xf32, #tpu.memory_space<vmem>>, vector<4x1xf32>
    %194 = vector.broadcast %193 : vector<4x1xf32> to vector<4x288xf32>
    %195 = arith.addf %192, %194 : vector<4x288xf32>
    %c0_187 = arith.constant 0 : index
    %c0_188 = arith.constant 0 : index
    %c0_189 = arith.constant 0 : index
    %196 = vector.load %arg11[%c0_187, %c0_188, %c0_189] : memref<1x4x288xf32, #tpu.memory_space<vmem>>, vector<1x4x288xf32>
    %197 = vector.shape_cast %196 : vector<1x4x288xf32> to vector<4x288xf32>
    %198 = vector.shape_cast %195 : vector<4x288xf32> to vector<1x4x288xf32>
    tpu.vector_store %arg11[%c0_187, %c0_188, %c0_189], %198 {strides = array<i32>} : memref<1x4x288xf32, #tpu.memory_space<vmem>>, vector<1x4x288xf32>,
    return
  }
  func.func @transform_0(%arg0: i32) -> (i32, i32) {
    %c0_i32 = arith.constant 0 : i32
    %c0_i32_0 = arith.constant 0 : i32
    %c0_i32_1 = arith.constant 0 : i32
    return %c0_i32, %c0_i32_0 : i32, i32
  }
  func.func @transform_1(%arg0: i32) -> (i32, i32, i32) {
    %c0_i32 = arith.constant 0 : i32
    %c0_i32_0 = arith.constant 0 : i32
    %c0_i32_1 = arith.constant 0 : i32
    return %arg0, %c0_i32, %c0_i32_0 : i32, i32, i32
  }
  func.func @transform_2(%arg0: i32) -> (i32, i32, i32) {
    %c0_i32 = arith.constant 0 : i32
    %c0_i32_0 = arith.constant 0 : i32
    %c0_i32_1 = arith.constant 0 : i32
    return %arg0, %c0_i32, %c0_i32_0 : i32, i32, i32
  }
  func.func @transform_3(%arg0: i32) -> (i32, i32, i32) {
    %c0_i32 = arith.constant 0 : i32
    %c0_i32_0 = arith.constant 0 : i32
    %c0_i32_1 = arith.constant 0 : i32
    %c0_i32_2 = arith.constant 0 : i32
    return %c0_i32, %c0_i32_0, %c0_i32_1 : i32, i32, i32
  }
  func.func @transform_4(%arg0: i32) -> (i32, i32) {
    %c0_i32 = arith.constant 0 : i32
    %c0_i32_0 = arith.constant 0 : i32
    %c0_i32_1 = arith.constant 0 : i32
    return %c0_i32, %c0_i32_0 : i32, i32
  }
  func.func @transform_5(%arg0: i32) -> (i32, i32, i32) {
    %c0_i32 = arith.constant 0 : i32
    %c0_i32_0 = arith.constant 0 : i32
    %c0_i32_1 = arith.constant 0 : i32
    %c0_i32_2 = arith.constant 0 : i32
    return %c0_i32, %c0_i32_0, %c0_i32_1 : i32, i32, i32
  }
  func.func @transform_6(%arg0: i32) -> (i32, i32, i32) {
    %c0_i32 = arith.constant 0 : i32
    %c0_i32_0 = arith.constant 0 : i32
    %c0_i32_1 = arith.constant 0 : i32
    %c0_i32_2 = arith.constant 0 : i32
    return %c0_i32, %c0_i32_0, %c0_i32_1 : i32, i32, i32
  }
  func.func @transform_7(%arg0: i32) -> (i32, i32) {
    %c0_i32 = arith.constant 0 : i32
    %c0_i32_0 = arith.constant 0 : i32
    %c0_i32_1 = arith.constant 0 : i32
    return %c0_i32, %c0_i32_0 : i32, i32
  }
  func.func @transform_8(%arg0: i32) -> (i32, i32) {
    %c0_i32 = arith.constant 0 : i32
    %c0_i32_0 = arith.constant 0 : i32
    %c0_i32_1 = arith.constant 0 : i32
    return %c0_i32, %c0_i32_0 : i32, i32
  }
  func.func @transform_9(%arg0: i32) -> (i32, i32) {
    %c0_i32 = arith.constant 0 : i32
    %c0_i32_0 = arith.constant 0 : i32
    %c0_i32_1 = arith.constant 0 : i32
    return %c0_i32, %c0_i32_0 : i32, i32
  }
  func.func @transform_10(%arg0: i32) -> (i32, i32, i32) {
    %c0_i32 = arith.constant 0 : i32
    %c0_i32_0 = arith.constant 0 : i32
    %c0_i32_1 = arith.constant 0 : i32
    return %arg0, %c0_i32, %c0_i32_0 : i32, i32, i32
  }
}

</mosaic_0001>

<llo_original>
// kernel: decoding_block_forward.1
$region0: #{decoding_block_forward.1}
  #allocation0 [shape = 'u32[]', space=smem, size = 0x4, offset = 0x4, fixed_abs, tag = 'smem constant byte address 0x4 - core index']
  #allocation1 [shape = 'u32[144,128]{1,0:T(1,128)}', space=vmem, size = 0x12000, scoped, tag = 'internal scratch']
  #allocation2 [shape = 'f32[4,342]{1,0:T(4,128)}', space=vmem, size = 0x1800, scoped, tag = 'scratch operand']
  #allocation3 [shape = 'f32[1,1]{1,0:T(1,128)S(6)}', space=smem, size = 0x200, scoped, tag = 'scoped memory for decoding_block_forward.1']
  %s0 = inlined_call_operand.<no memory space> [shape: f32[1,1], index: 0, kind: input, shape index: {}]
  %s1 = inlined_call_operand.vmem [shape: f32[2,4,342], index: 1, kind: input, shape index: {}]
  %s2 = inlined_call_operand.vmem [shape: f32[2,4,342], index: 2, kind: input, shape index: {}]
  %s3 = inlined_call_operand.vmem [shape: f32[9,4,4], index: 3, kind: input, shape index: {}]
  %s4 = inlined_call_operand.vmem [shape: f32[4,1], index: 4, kind: input, shape index: {}]
  %s5 = inlined_call_operand.vmem [shape: f32[9,8,4], index: 5, kind: input, shape index: {}]
  %s6 = inlined_call_operand.vmem [shape: f32[9,8,4], index: 6, kind: input, shape index: {}]
  %s7 = inlined_call_operand.vmem [shape: f32[8,1], index: 7, kind: input, shape index: {}]
  %s8 = inlined_call_operand.vmem [shape: f32[4,8], index: 8, kind: input, shape index: {}]
  %s9 = inlined_call_operand.vmem [shape: f32[4,1], index: 9, kind: input, shape index: {}]
  %s10 = inlined_call_operand.vmem [shape: f32[2,4,288], index: 10, kind: output, shape index: {}]
  %s11 = sld [smem:[#allocation0]]
  $region73: #{decoding_block_forward.1} parent=0
    _
  %s13 = ssub.s32 1, %s11
  %s14 = scalar_select 0, %s13, %s11
  %15 = sst [smem:[#allocation3]] %s0
  loop: start=0, step=1, limit=4
  $region2: #{decoding_block_forward.1} parent=0 // loop_pre_header
    _
  $region3: #{decoding_block_forward.1} parent=0 // loop_header
    %s17 = sphi 0, %s21
    %p18 = scmp.ge.s32.totalorder %s17, 4
    %s25 = sphi 0, %s25
    %s27 = sphi 0, %s25
    %s28 = sphi 0, %s27
    %s42 = sphi 0, %s28
    %s48 = sphi 0, %s50
    %s51 = sphi 0, %s48
    %s52 = sphi 0, %s51
    %s68 = sphi 0, %s52
    %s74 = sphi 0, %s76
    %s77 = sphi 0, %s74
    %s78 = sphi 0, %s77
    %s94 = sphi 0, %s78
    %s98 = sphi 0, %s98
    %s100 = sphi 0, %s98
    %s101 = sphi 0, %s100
    %s115 = sphi 0, %s101
    %s119 = sphi 0, %s119
    %s121 = sphi 0, %s119
    %s122 = sphi 0, %s121
    %s136 = sphi 0, %s122
    %s140 = sphi 0, %s140
    %s142 = sphi 0, %s140
    %s143 = sphi 0, %s142
    %s157 = sphi 0, %s143
    %s161 = sphi 0, %s161
    %s163 = sphi 0, %s161
    %s164 = sphi 0, %s163
    %s178 = sphi 0, %s164
    %s182 = sphi 0, %s182
    %s184 = sphi 0, %s182
    %s185 = sphi 0, %s184
    %s199 = sphi 0, %s185
    %s203 = sphi 0, %s203
    %s205 = sphi 0, %s203
    %s206 = sphi 0, %s205
    %s220 = sphi 0, %s206
    %s224 = sphi 0, %s224
    %s226 = sphi 0, %s224
    %s227 = sphi 0, %s226
    %s241 = sphi 0, %s227
    %s247 = sphi 0, %s249
    %s250 = sphi 0, %s247
    %s251 = sphi 0, %s250
    %s267 = sphi 0, %s251
  $region4: #{decoding_block_forward.1} parent=0 // loop_header_branch
    %20 = sbr.rel (%p18) target = $region8
  $region5: #{decoding_block_forward.1} parent=0 // loop_body
    %s22 = ssub.s32 %s17, 1
    %s23 = ssub.s32 %s17, 2
    %s24 = sadd.s32 %s17, 1
    %s26 = sadd.s32 %s25, 1
    %p29 = scmp.eq.s32.totalorder %s17, 1
    %p30 = scmp.ne.s32.totalorder %s25, %s27
    %p31 = scmp.eq.s32.totalorder %s17, 0
    %p32 = por %p30, %p31
    %p33 = scmp.ne.s32.totalorder %s25, %s27
    %p34 = scmp.eq.s32.totalorder %s22, 1
    %p35 = por %p33, %p34
    %p36 = scmp.ne.s32.totalorder %s27, %s28
    %p37 = scmp.eq.s32.totalorder %s22, 0
    %p38 = por %p36, %p37
    %p39 = scmp.ne.s32.totalorder %s27, %s28
    %p40 = scmp.eq.s32.totalorder %s23, 1
    %p41 = por %p39, %p40
    %p43 = scmp.ne.s32.totalorder %s28, %s42
    %p44 = scmp.eq.s32.totalorder %s23, 0
    %p45 = por %p43, %p44
    %s46 = ssub.s32 %s17, %s24
    %p47 = scmp.eq.s32.totalorder %s46, 0
    %s49 = sadd.s32 %s48, 1
    %s50 = scalar_select %p47, %s48, %s49
    %p53 = pneg %p47
    %p54 = scmp.eq.s32.totalorder %s17, 1
    %p55 = por %p53, %p54
    %p56 = scmp.ne.s32.totalorder %s48, %s51
    %p57 = scmp.eq.s32.totalorder %s17, 0
    %p58 = por %p56, %p57
    %p59 = scmp.ne.s32.totalorder %s48, %s51
    %p60 = scmp.eq.s32.totalorder %s22, 1
    %p61 = por %p59, %p60
    %p62 = scmp.ne.s32.totalorder %s51, %s52
    %p63 = scmp.eq.s32.totalorder %s22, 0
    %p64 = por %p62, %p63
    %p65 = scmp.ne.s32.totalorder %s51, %s52
    %p66 = scmp.eq.s32.totalorder %s23, 1
    %p67 = por %p65, %p66
    %p69 = scmp.ne.s32.totalorder %s52, %s68
    %p70 = scmp.eq.s32.totalorder %s23, 0
    %p71 = por %p69, %p70
    %s72 = ssub.s32 %s17, %s24
    %p73 = scmp.eq.s32.totalorder %s72, 0
    %s75 = sadd.s32 %s74, 1
    %s76 = scalar_select %p73, %s74, %s75
    %p79 = pneg %p73
    %p80 = scmp.eq.s32.totalorder %s17, 1
    %p81 = por %p79, %p80
    %p82 = scmp.ne.s32.totalorder %s74, %s77
    %p83 = scmp.eq.s32.totalorder %s17, 0
    %p84 = por %p82, %p83
    %p85 = scmp.ne.s32.totalorder %s74, %s77
    %p86 = scmp.eq.s32.totalorder %s22, 1
    %p87 = por %p85, %p86
    %p88 = scmp.ne.s32.totalorder %s77, %s78
    %p89 = scmp.eq.s32.totalorder %s22, 0
    %p90 = por %p88, %p89
    %p91 = scmp.ne.s32.totalorder %s77, %s78
    %p92 = scmp.eq.s32.totalorder %s23, 1
    %p93 = por %p91, %p92
    %p95 = scmp.ne.s32.totalorder %s78, %s94
    %p96 = scmp.eq.s32.totalorder %s23, 0
    %p97 = por %p95, %p96
    %s99 = sadd.s32 %s98, 1
    %p102 = scmp.eq.s32.totalorder %s17, 1
    %p103 = scmp.ne.s32.totalorder %s98, %s100
    %p104 = scmp.eq.s32.totalorder %s17, 0
    %p105 = por %p103, %p104
    %p106 = scmp.ne.s32.totalorder %s98, %s100
    %p107 = scmp.eq.s32.totalorder %s22, 1
    %p108 = por %p106, %p107
    %p109 = scmp.ne.s32.totalorder %s100, %s101
    %p110 = scmp.eq.s32.totalorder %s22, 0
    %p111 = por %p109, %p110
    %p112 = scmp.ne.s32.totalorder %s100, %s101
    %p113 = scmp.eq.s32.totalorder %s23, 1
    %p114 = por %p112, %p113
    %p116 = scmp.ne.s32.totalorder %s101, %s115
    %p117 = scmp.eq.s32.totalorder %s23, 0
    %p118 = por %p116, %p117
    %s120 = sadd.s32 %s119, 1
    %p123 = scmp.eq.s32.totalorder %s17, 1
    %p124 = scmp.ne.s32.totalorder %s119, %s121
    %p125 = scmp.eq.s32.totalorder %s17, 0
    %p126 = por %p124, %p125
    %p127 = scmp.ne.s32.totalorder %s119, %s121
    %p128 = scmp.eq.s32.totalorder %s22, 1
    %p129 = por %p127, %p128
    %p130 = scmp.ne.s32.totalorder %s121, %s122
    %p131 = scmp.eq.s32.totalorder %s22, 0
    %p132 = por %p130, %p131
    %p133 = scmp.ne.s32.totalorder %s121, %s122
    %p134 = scmp.eq.s32.totalorder %s23, 1
    %p135 = por %p133, %p134
    %p137 = scmp.ne.s32.totalorder %s122, %s136
    %p138 = scmp.eq.s32.totalorder %s23, 0
    %p139 = por %p137, %p138
    %s141 = sadd.s32 %s140, 1
    %p144 = scmp.eq.s32.totalorder %s17, 1
    %p145 = scmp.ne.s32.totalorder %s140, %s142
    %p146 = scmp.eq.s32.totalorder %s17, 0
    %p147 = por %p145, %p146
    %p148 = scmp.ne.s32.totalorder %s140, %s142
    %p149 = scmp.eq.s32.totalorder %s22, 1
    %p150 = por %p148, %p149
    %p151 = scmp.ne.s32.totalorder %s142, %s143
    %p152 = scmp.eq.s32.totalorder %s22, 0
    %p153 = por %p151, %p152
    %p154 = scmp.ne.s32.totalorder %s142, %s143
    %p155 = scmp.eq.s32.totalorder %s23, 1
    %p156 = por %p154, %p155
    %p158 = scmp.ne.s32.totalorder %s143, %s157
    %p159 = scmp.eq.s32.totalorder %s23, 0
    %p160 = por %p158, %p159
    %s162 = sadd.s32 %s161, 1
    %p165 = scmp.eq.s32.totalorder %s17, 1
    %p166 = scmp.ne.s32.totalorder %s161, %s163
    %p167 = scmp.eq.s32.totalorder %s17, 0
    %p168 = por %p166, %p167
    %p169 = scmp.ne.s32.totalorder %s161, %s163
    %p170 = scmp.eq.s32.totalorder %s22, 1
    %p171 = por %p169, %p170
    %p172 = scmp.ne.s32.totalorder %s163, %s164
    %p173 = scmp.eq.s32.totalorder %s22, 0
    %p174 = por %p172, %p173
    %p175 = scmp.ne.s32.totalorder %s163, %s164
    %p176 = scmp.eq.s32.totalorder %s23, 1
    %p177 = por %p175, %p176
    %p179 = scmp.ne.s32.totalorder %s164, %s178
    %p180 = scmp.eq.s32.totalorder %s23, 0
    %p181 = por %p179, %p180
    %s183 = sadd.s32 %s182, 1
    %p186 = scmp.eq.s32.totalorder %s17, 1
    %p187 = scmp.ne.s32.totalorder %s182, %s184
    %p188 = scmp.eq.s32.totalorder %s17, 0
    %p189 = por %p187, %p188
    %p190 = scmp.ne.s32.totalorder %s182, %s184
    %p191 = scmp.eq.s32.totalorder %s22, 1
    %p192 = por %p190, %p191
    %p193 = scmp.ne.s32.totalorder %s184, %s185
    %p194 = scmp.eq.s32.totalorder %s22, 0
    %p195 = por %p193, %p194
    %p196 = scmp.ne.s32.totalorder %s184, %s185
    %p197 = scmp.eq.s32.totalorder %s23, 1
    %p198 = por %p196, %p197
    %p200 = scmp.ne.s32.totalorder %s185, %s199
    %p201 = scmp.eq.s32.totalorder %s23, 0
    %p202 = por %p200, %p201
    %s204 = sadd.s32 %s203, 1
    %p207 = scmp.eq.s32.totalorder %s17, 1
    %p208 = scmp.ne.s32.totalorder %s203, %s205
    %p209 = scmp.eq.s32.totalorder %s17, 0
    %p210 = por %p208, %p209
    %p211 = scmp.ne.s32.totalorder %s203, %s205
    %p212 = scmp.eq.s32.totalorder %s22, 1
    %p213 = por %p211, %p212
    %p214 = scmp.ne.s32.totalorder %s205, %s206
    %p215 = scmp.eq.s32.totalorder %s22, 0
    %p216 = por %p214, %p215
    %p217 = scmp.ne.s32.totalorder %s205, %s206
    %p218 = scmp.eq.s32.totalorder %s23, 1
    %p219 = por %p217, %p218
    %p221 = scmp.ne.s32.totalorder %s206, %s220
    %p222 = scmp.eq.s32.totalorder %s23, 0
    %p223 = por %p221, %p222
    %s225 = sadd.s32 %s224, 1
    %p228 = scmp.eq.s32.totalorder %s17, 1
    %p229 = scmp.ne.s32.totalorder %s224, %s226
    %p230 = scmp.eq.s32.totalorder %s17, 0
    %p231 = por %p229, %p230
    %p232 = scmp.ne.s32.totalorder %s224, %s226
    %p233 = scmp.eq.s32.totalorder %s22, 1
    %p234 = por %p232, %p233
    %p235 = scmp.ne.s32.totalorder %s226, %s227
    %p236 = scmp.eq.s32.totalorder %s22, 0
    %p237 = por %p235, %p236
    %p238 = scmp.ne.s32.totalorder %s226, %s227
    %p239 = scmp.eq.s32.totalorder %s23, 1
    %p240 = por %p238, %p239
    %p242 = scmp.ne.s32.totalorder %s227, %s241
    %p243 = scmp.eq.s32.totalorder %s23, 0
    %p244 = por %p242, %p243
    %s245 = ssub.s32 %s17, %s24
    %p246 = scmp.eq.s32.totalorder %s245, 0
    %s248 = sadd.s32 %s247, 1
    %s249 = scalar_select %p246, %s247, %s248
    %p252 = pneg %p246
    %p253 = scmp.eq.s32.totalorder %s17, 1
    %p254 = por %p252, %p253
    %p255 = scmp.ne.s32.totalorder %s247, %s250
    %p256 = scmp.eq.s32.totalorder %s17, 0
    %p257 = por %p255, %p256
    %p258 = scmp.ne.s32.totalorder %s247, %s250
    %p259 = scmp.eq.s32.totalorder %s22, 1
    %p260 = por %p258, %p259
    %p261 = scmp.ne.s32.totalorder %s250, %s251
    %p262 = scmp.eq.s32.totalorder %s22, 0
    %p263 = por %p261, %p262
    %p264 = scmp.ne.s32.totalorder %s250, %s251
    %p265 = scmp.eq.s32.totalorder %s23, 1
    %p266 = por %p264, %p265
    %p268 = scmp.ne.s32.totalorder %s251, %s267
    %p269 = scmp.eq.s32.totalorder %s23, 0
    %p270 = por %p268, %p269
    %p271 = scmp.le.s32.totalorder 1, %s17
    %p272 = scmp.lt.s32.totalorder %s17, 3
    %p273 = pnand %p271, %p272
    %p274 = pneg %p273
    // Predicated region
    $region9: #{decoding_block_forward.1} parent=5 // pred_check
      _
    $region10: #{decoding_block_forward.1} parent=5 // pred_check_branch
      %276 = sbr.rel (%p273) target = $region12
    $region11: #{decoding_block_forward.1} parent=5 // pred_region
      %s277 = ssub.s32 %s17, 1
      // Predicated region
      $region13: #{decoding_block_forward.1} parent=11 // pred_check
        %p278 = pneg %p38
      $region14: #{decoding_block_forward.1} parent=11 // pred_check_branch
        %280 = sbr.rel (%p278) target = $region16
      $region15: #{decoding_block_forward.1} parent=11 // pred_region
        _
      $region16: #{decoding_block_forward.1} parent=11 // pred_fallthru
        _
      // Predicated region
      $region17: #{decoding_block_forward.1} parent=11 // pred_check
        %p281 = pneg %p111
      $region18: #{decoding_block_forward.1} parent=11 // pred_check_branch
        %283 = sbr.rel (%p281) target = $region20
      $region19: #{decoding_block_forward.1} parent=11 // pred_region
        _
      $region20: #{decoding_block_forward.1} parent=11 // pred_fallthru
        _
      // Predicated region
      $region21: #{decoding_block_forward.1} parent=11 // pred_check
        %p284 = pneg %p132
      $region22: #{decoding_block_forward.1} parent=11 // pred_check_branch
        %286 = sbr.rel (%p284) target = $region24
      $region23: #{decoding_block_forward.1} parent=11 // pred_region
        _
      $region24: #{decoding_block_forward.1} parent=11 // pred_fallthru
        _
      // Predicated region
      $region25: #{decoding_block_forward.1} parent=11 // pred_check
        %p287 = pneg %p153
      $region26: #{decoding_block_forward.1} parent=11 // pred_check_branch
        %289 = sbr.rel (%p287) target = $region28
      $region27: #{decoding_block_forward.1} parent=11 // pred_region
        _
      $region28: #{decoding_block_forward.1} parent=11 // pred_fallthru
        _
      // Predicated region
      $region29: #{decoding_block_forward.1} parent=11 // pred_check
        %p290 = pneg %p174
      $region30: #{decoding_block_forward.1} parent=11 // pred_check_branch
        %292 = sbr.rel (%p290) target = $region32
      $region31: #{decoding_block_forward.1} parent=11 // pred_region
        _
      $region32: #{decoding_block_forward.1} parent=11 // pred_fallthru
        _
      // Predicated region
      $region33: #{decoding_block_forward.1} parent=11 // pred_check
        %p293 = pneg %p195
      $region34: #{decoding_block_forward.1} parent=11 // pred_check_branch
        %295 = sbr.rel (%p293) target = $region36
      $region35: #{decoding_block_forward.1} parent=11 // pred_region
        _
      $region36: #{decoding_block_forward.1} parent=11 // pred_fallthru
        _
      // Predicated region
      $region37: #{decoding_block_forward.1} parent=11 // pred_check
        %p296 = pneg %p216
      $region38: #{decoding_block_forward.1} parent=11 // pred_check_branch
        %298 = sbr.rel (%p296) target = $region40
      $region39: #{decoding_block_forward.1} parent=11 // pred_region
        _
      $region40: #{decoding_block_forward.1} parent=11 // pred_fallthru
        _
      // Predicated region
      $region41: #{decoding_block_forward.1} parent=11 // pred_check
        %p299 = pneg %p237
      $region42: #{decoding_block_forward.1} parent=11 // pred_check_branch
        %301 = sbr.rel (%p299) target = $region44
      $region43: #{decoding_block_forward.1} parent=11 // pred_region
        _
      $region44: #{decoding_block_forward.1} parent=11 // pred_fallthru
        _
    $region12: #{decoding_block_forward.1} parent=5 // pred_fallthru
      _
    %p302 = scmp.lt.s32.totalorder %s17, 2
    // Predicated region
    $region45: #{decoding_block_forward.1} parent=5 // pred_check
      %p303 = pneg %p302
    $region46: #{decoding_block_forward.1} parent=5 // pred_check_branch
      %305 = sbr.rel (%p303) target = $region48
    $region47: #{decoding_block_forward.1} parent=5 // pred_region
      // Predicated region
      $region49: #{decoding_block_forward.1} parent=47 // pred_check
        %p306 = pneg %p58
      $region50: #{decoding_block_forward.1} parent=47 // pred_check_branch
        %308 = sbr.rel (%p306) target = $region52
      $region51: #{decoding_block_forward.1} parent=47 // pred_region
        %p309 = scmp.lt.s32.totalorder %s17, 1
        %s310 = scalar_select %p309, %s17, 1
        %s311 = smul.addr %s310, 3
        %s312 = smul.addr %s311, 4
        %s313 = scalar_lea.vmem %s1, %s312
      $region52: #{decoding_block_forward.1} parent=47 // pred_fallthru
        _
      // Predicated region
      $region53: #{decoding_block_forward.1} parent=47 // pred_check
        %p314 = pneg %p84
      $region54: #{decoding_block_forward.1} parent=47 // pred_check_branch
        %316 = sbr.rel (%p314) target = $region56
      $region55: #{decoding_block_forward.1} parent=47 // pred_region
        %p317 = scmp.lt.s32.totalorder %s17, 1
        %s318 = scalar_select %p317, %s17, 1
        %s319 = smul.addr %s318, 3
        %s320 = smul.addr %s319, 4
        %s321 = scalar_lea.vmem %s2, %s320
      $region56: #{decoding_block_forward.1} parent=47 // pred_fallthru
        _
    $region48: #{decoding_block_forward.1} parent=5 // pred_fallthru
      _
    %p322 = scmp.le.s32.totalorder 1, %s17
    %p323 = scmp.lt.s32.totalorder %s17, 3
    %p324 = pnand %p322, %p323
    %p325 = pneg %p324
    // Predicated region
    $region57: #{decoding_block_forward.1} parent=5 // pred_check
      _
    $region58: #{decoding_block_forward.1} parent=5 // pred_check_branch
      %327 = sbr.rel (%p324) target = $region60
    $region59: #{decoding_block_forward.1} parent=5 // pred_region
      %s328 = ssub.s32 %s17, 1
      %p329 = pneg %p38
      %p330 = pneg %p35
      %p331 = scmp.lt.s32.totalorder %s22, 1
      %s332 = scalar_select %p331, %s22, 1
      %s333 = smul.addr %s332, 3
      %s334 = smul.addr %s333, 4
      %s335 = scalar_lea.vmem %s1, %s334
      %p336 = pneg %p64
      %p337 = pneg %p61
      %p338 = scmp.lt.s32.totalorder %s22, 1
      %s339 = scalar_select %p338, %s22, 1
      %s340 = smul.addr %s339, 3
      %s341 = smul.addr %s340, 4
      %s342 = scalar_lea.vmem %s2, %s341
      %p343 = pneg %p90
      %p344 = pneg %p87
      %p345 = pneg %p111
      %p346 = pneg %p108
      %p347 = pneg %p132
      %p348 = pneg %p129
      %p349 = pneg %p153
      %p350 = pneg %p150
      %p351 = pneg %p174
      %p352 = pneg %p171
      %p353 = pneg %p195
      %p354 = pneg %p192
      %p355 = pneg %p216
      %p356 = pneg %p213
      %p357 = pneg %p237
      %p358 = pneg %p234
      %p359 = pneg %p263
      %p360 = pneg %p260
      %p361 = scmp.lt.s32.totalorder %s22, 1
      %s362 = scalar_select %p361, %s22, 1
      %s363 = smul.addr %s362, 3
      %s364 = smul.addr %s363, 4
      %s365 = scalar_lea.vmem %s10, %s364
      %p366 = scmp.lt.s32.totalorder %s22, 1
      %s367 = scalar_select %p366, %s22, 1
      %s368 = smul.addr %s367, 3
      %s369 = smul.addr %s368, 4
      %s370 = scalar_lea.vmem %s1, %s369
      %p371 = scmp.lt.s32.totalorder %s22, 1
      %s372 = scalar_select %p371, %s22, 1
      %s373 = smul.addr %s372, 3
      %s374 = smul.addr %s373, 4
      %s375 = scalar_lea.vmem %s2, %s374
      %p376 = scmp.lt.s32.totalorder %s22, 1
      %s377 = scalar_select %p376, %s22, 1
      %s378 = smul.addr %s377, 3
      %s379 = smul.addr %s378, 4
      %s380 = scalar_lea.vmem %s10, %s379
      %v381 = vld [vmem:[%s3] sm:$0xf]
      %v382 = vld [vmem:[%s370] sm:$0xff]
      %v383 = vld [vmem:[%s370 + $0x8] sm:$0xf]
      %s384 = scalar_lea.vmem %s3, 4
      %v385 = vld [vmem:[%s384] sm:$0xf]
      %v388 = vcombine.high %v382, %v382
      %389 = vrot.lane.b32.xlu0 %v382, 127
      %v390 = vpop.permute.xlu0 %389
      %391 = vrot.lane.b32.xlu0 %v388, 127
      %v392 = vpop.permute.xlu0 %391
      %393 = vrot.lane.b32.xlu0 %v383, 127
      %v394 = vpop.permute.xlu0 %393
      %vm395 = vcmask 1039360
      %v396 = vsel %vm395, %v390, %v392
      %v397 = vsel %vm395, %v392, %v394
      %vm398 = vcmask 31744
      %v400 = vsel %vm398, %v385, 0
      %vm402 = vcmask 1043456
      %v403 = vsel %vm402, %v396, 0
      %v405 = vsel %vm402, %v397, 0
      %v407 = vsel %vm402, %v394, 0
      %409 = vmatprep.subr.mxu0 %v405
      %410 = vmatpush1.msra.mxu0 %v403
      %411 = vmatprep.subr.mxu0 0.0
      %412 = vmatpush1.msra.mxu0 0.0
      %413 = vmatprep.subr.mxu0 0.0
      %414 = vmatpush1.msra.mxu0 0.0
      %415 = vmatprep.subr.mxu0 0.0
      %416 = vmatpush1.msra.mxu0 0.0
      %417 = vmatprep.subr.mxu0 0.0
      %418 = vmatpush1.msra.mxu0 0.0
      %419 = vmatprep.subr.mxu0 0.0
      %420 = vmatpush1.msra.mxu0 0.0
      %421 = vmatprep.subr.mxu0 0.0
      %422 = vmatpush1.msra.mxu0 0.0
      %423 = vmatprep.subr.mxu0 0.0
      %424 = vmatpush1.msra.mxu0 0.0
      %425 = vmatprep.subr.mxu0 0.0
      %426 = vmatpush1.msra.mxu0 0.0
      %427 = vmatprep.subr.mxu0 0.0
      %428 = vmatpush1.msra.mxu0 0.0
      %429 = vmatprep.subr.mxu0 0.0
      %430 = vmatpush1.msra.mxu0 0.0
      %431 = vmatprep.subr.mxu0 0.0
      %432 = vmatpush1.msra.mxu0 0.0
      %433 = vmatprep.subr.mxu0 0.0
      %434 = vmatpush1.msra.mxu0 0.0
      %435 = vmatprep.subr.mxu0 0.0
      %436 = vmatpush1.msra.mxu0 0.0
      %437 = vmatprep.subr.mxu0 0.0
      %438 = vmatpush1.msra.mxu0 0.0
      %439 = vmatprep.subr.mxu0 0.0
      %440 = vmatpush1.msra.mxu0 0.0
      %441 = vmatprep.subr.mxu0 0.0
      %442 = vmatpush1.msra.mxu0 0.0
      %443 = vmatprep.subr.mxu0 0.0
      %444 = vmatpush1.msra.mxu0 0.0
      %445 = vmatprep.subr.mxu0 0.0
      %446 = vmatpush1.msra.mxu0 0.0
      %447 = vmatprep.subr.mxu0 0.0
      %448 = vmatpush1.msra.mxu0 0.0
      %449 = vmatprep.subr.mxu0 0.0
      %450 = vmatpush1.msra.mxu0 0.0
      %451 = vmatprep.subr.mxu0 0.0
      %452 = vmatpush1.msra.mxu0 0.0
      %453 = vmatprep.subr.mxu0 0.0
      %454 = vmatpush1.msra.mxu0 0.0
      %455 = vmatprep.subr.mxu0 0.0
      %456 = vmatpush1.msra.mxu0 0.0
      %457 = vmatprep.subr.mxu0 0.0
      %458 = vmatpush1.msra.mxu0 0.0
      %459 = vmatprep.subr.mxu0 0.0
      %460 = vmatpush1.msra.mxu0 0.0
      %461 = vmatprep.subr.mxu0 0.0
      %462 = vmatpush1.msra.mxu0 0.0
      %463 = vmatprep.subr.mxu0 0.0
      %464 = vmatpush1.msra.mxu0 0.0
      %465 = vmatprep.subr.mxu0 0.0
      %466 = vmatpush1.msra.mxu0 0.0
      %467 = vmatprep.subr.mxu0 0.0
      %468 = vmatpush1.msra.mxu0 0.0
      %469 = vmatprep.subr.mxu0 0.0
      %470 = vmatpush1.msra.mxu0 0.0
      %471 = vmatprep.subr.mxu0 0.0
      %472 = vmatpush1.msra.mxu0 0.0
      %473 = vmatprep.mubr.f32.mxu0 0.0
      %474 = vmatmul.mubr.f32.gmra.mrb[0].mxu0 %v400
      %v475 = vpop.f32.mrb[0].mxu0
      %v476 = vadd.f32 0.0, %v475
      %v477 = vpop.f32.mrb[0].mxu0
      %v478 = vadd.f32 0.0, %v477
      %479 = vdwg.mxu0
      %480 = vmatprep.subr.mxu0 0.0
      %481 = vmatpush1.msra.mxu0 %v407
      %482 = vmatprep.subr.mxu0 0.0
      %483 = vmatpush1.msra.mxu0 0.0
      %484 = vmatprep.subr.mxu0 0.0
      %485 = vmatpush1.msra.mxu0 0.0
      %486 = vmatprep.subr.mxu0 0.0
      %487 = vmatpush1.msra.mxu0 0.0
      %488 = vmatprep.subr.mxu0 0.0
      %489 = vmatpush1.msra.mxu0 0.0
      %490 = vmatprep.subr.mxu0 0.0
      %491 = vmatpush1.msra.mxu0 0.0
      %492 = vmatprep.subr.mxu0 0.0
      %493 = vmatpush1.msra.mxu0 0.0
      %494 = vmatprep.subr.mxu0 0.0
      %495 = vmatpush1.msra.mxu0 0.0
      %496 = vmatprep.subr.mxu0 0.0
      %497 = vmatpush1.msra.mxu0 0.0
      %498 = vmatprep.subr.mxu0 0.0
      %499 = vmatpush1.msra.mxu0 0.0
      %500 = vmatprep.subr.mxu0 0.0
      %501 = vmatpush1.msra.mxu0 0.0
      %502 = vmatprep.subr.mxu0 0.0
      %503 = vmatpush1.msra.mxu0 0.0
      %504 = vmatprep.subr.mxu0 0.0
      %505 = vmatpush1.msra.mxu0 0.0
      %506 = vmatprep.subr.mxu0 0.0
      %507 = vmatpush1.msra.mxu0 0.0
      %508 = vmatprep.subr.mxu0 0.0
      %509 = vmatpush1.msra.mxu0 0.0
      %510 = vmatprep.subr.mxu0 0.0
      %511 = vmatpush1.msra.mxu0 0.0
      %512 = vmatprep.subr.mxu0 0.0
      %513 = vmatpush1.msra.mxu0 0.0
      %514 = vmatprep.subr.mxu0 0.0
      %515 = vmatpush1.msra.mxu0 0.0
      %516 = vmatprep.subr.mxu0 0.0
      %517 = vmatpush1.msra.mxu0 0.0
      %518 = vmatprep.subr.mxu0 0.0
      %519 = vmatpush1.msra.mxu0 0.0
      %520 = vmatprep.subr.mxu0 0.0
      %521 = vmatpush1.msra.mxu0 0.0
      %522 = vmatprep.subr.mxu0 0.0
      %523 = vmatpush1.msra.mxu0 0.0
      %524 = vmatprep.subr.mxu0 0.0
      %525 = vmatpush1.msra.mxu0 0.0
      %526 = vmatprep.subr.mxu0 0.0
      %527 = vmatpush1.msra.mxu0 0.0
      %528 = vmatprep.subr.mxu0 0.0
      %529 = vmatpush1.msra.mxu0 0.0
      %530 = vmatprep.subr.mxu0 0.0
      %531 = vmatpush1.msra.mxu0 0.0
      %532 = vmatprep.subr.mxu0 0.0
      %533 = vmatpush1.msra.mxu0 0.0
      %534 = vmatprep.subr.mxu0 0.0
      %535 = vmatpush1.msra.mxu0 0.0
      %536 = vmatprep.subr.mxu0 0.0
      %537 = vmatpush1.msra.mxu0 0.0
      %538 = vmatprep.subr.mxu0 0.0
      %539 = vmatpush1.msra.mxu0 0.0
      %540 = vmatprep.subr.mxu0 0.0
      %541 = vmatpush1.msra.mxu0 0.0
      %542 = vmatprep.subr.mxu0 0.0
      %543 = vmatpush1.msra.mxu0 0.0
      %544 = vmatprep.mubr.f32.mxu0 0.0
      %545 = vmatmul.mubr.f32.gmra.mrb[0].mxu0 %v400
      %v546 = vpop.f32.mrb[0].mxu0
      %v547 = vadd.f32 0.0, %v546
      %v548 = vpop.f32.mrb[0].mxu0
      %549 = vdwg.mxu0
      %v551 = vsel %vm398, %v381, 0
      %v553 = vsel %vm402, %v382, 0
      %v555 = vsel %vm402, %v388, 0
      %v557 = vsel %vm402, %v383, 0
      %559 = vmatprep.subr.mxu0 %v555
      %560 = vmatpush1.msra.mxu0 %v553
      %561 = vmatprep.subr.mxu0 0.0
      %562 = vmatpush1.msra.mxu0 0.0
      %563 = vmatprep.subr.mxu0 0.0
      %564 = vmatpush1.msra.mxu0 0.0
      %565 = vmatprep.subr.mxu0 0.0
      %566 = vmatpush1.msra.mxu0 0.0
      %567 = vmatprep.subr.mxu0 0.0
      %568 = vmatpush1.msra.mxu0 0.0
      %569 = vmatprep.subr.mxu0 0.0
      %570 = vmatpush1.msra.mxu0 0.0
      %571 = vmatprep.subr.mxu0 0.0
      %572 = vmatpush1.msra.mxu0 0.0
      %573 = vmatprep.subr.mxu0 0.0
      %574 = vmatpush1.msra.mxu0 0.0
      %575 = vmatprep.subr.mxu0 0.0
      %576 = vmatpush1.msra.mxu0 0.0
      %577 = vmatprep.subr.mxu0 0.0
      %578 = vmatpush1.msra.mxu0 0.0
      %579 = vmatprep.subr.mxu0 0.0
      %580 = vmatpush1.msra.mxu0 0.0
      %581 = vmatprep.subr.mxu0 0.0
      %582 = vmatpush1.msra.mxu0 0.0
      %583 = vmatprep.subr.mxu0 0.0
      %584 = vmatpush1.msra.mxu0 0.0
      %585 = vmatprep.subr.mxu0 0.0
      %586 = vmatpush1.msra.mxu0 0.0
      %587 = vmatprep.subr.mxu0 0.0
      %588 = vmatpush1.msra.mxu0 0.0
      %589 = vmatprep.subr.mxu0 0.0
      %590 = vmatpush1.msra.mxu0 0.0
      %591 = vmatprep.subr.mxu0 0.0
      %592 = vmatpush1.msra.mxu0 0.0
      %593 = vmatprep.subr.mxu0 0.0
      %594 = vmatpush1.msra.mxu0 0.0
      %595 = vmatprep.subr.mxu0 0.0
      %596 = vmatpush1.msra.mxu0 0.0
      %597 = vmatprep.subr.mxu0 0.0
      %598 = vmatpush1.msra.mxu0 0.0
      %599 = vmatprep.subr.mxu0 0.0
      %600 = vmatpush1.msra.mxu0 0.0
      %601 = vmatprep.subr.mxu0 0.0
      %602 = vmatpush1.msra.mxu0 0.0
      %603 = vmatprep.subr.mxu0 0.0
      %604 = vmatpush1.msra.mxu0 0.0
      %605 = vmatprep.subr.mxu0 0.0
      %606 = vmatpush1.msra.mxu0 0.0
      %607 = vmatprep.subr.mxu0 0.0
      %608 = vmatpush1.msra.mxu0 0.0
      %609 = vmatprep.subr.mxu0 0.0
      %610 = vmatpush1.msra.mxu0 0.0
      %611 = vmatprep.subr.mxu0 0.0
      %612 = vmatpush1.msra.mxu0 0.0
      %613 = vmatprep.subr.mxu0 0.0
      %614 = vmatpush1.msra.mxu0 0.0
      %615 = vmatprep.subr.mxu0 0.0
      %616 = vmatpush1.msra.mxu0 0.0
      %617 = vmatprep.subr.mxu0 0.0
      %618 = vmatpush1.msra.mxu0 0.0
      %619 = vmatprep.subr.mxu0 0.0
      %620 = vmatpush1.msra.mxu0 0.0
      %621 = vmatprep.subr.mxu0 0.0
      %622 = vmatpush1.msra.mxu0 0.0
      %623 = vmatprep.mubr.f32.mxu0 0.0
      %624 = vmatmul.mubr.f32.gmra.mrb[0].mxu0 %v551
      %v625 = vpop.f32.mrb[0].mxu0
      %v626 = vadd.f32 %v476, %v625
      %v627 = vpop.f32.mrb[0].mxu0
      %v628 = vadd.f32 %v478, %v627
      %629 = vdwg.mxu0
      %630 = vmatprep.subr.mxu0 0.0
      %631 = vmatpush1.msra.mxu0 %v557
      %632 = vmatprep.subr.mxu0 0.0
      %633 = vmatpush1.msra.mxu0 0.0
      %634 = vmatprep.subr.mxu0 0.0
      %635 = vmatpush1.msra.mxu0 0.0
      %636 = vmatprep.subr.mxu0 0.0
      %637 = vmatpush1.msra.mxu0 0.0
      %638 = vmatprep.subr.mxu0 0.0
      %639 = vmatpush1.msra.mxu0 0.0
      %640 = vmatprep.subr.mxu0 0.0
      %641 = vmatpush1.msra.mxu0 0.0
      %642 = vmatprep.subr.mxu0 0.0
      %643 = vmatpush1.msra.mxu0 0.0
      %644 = vmatprep.subr.mxu0 0.0
      %645 = vmatpush1.msra.mxu0 0.0
      %646 = vmatprep.subr.mxu0 0.0
      %647 = vmatpush1.msra.mxu0 0.0
      %648 = vmatprep.subr.mxu0 0.0
      %649 = vmatpush1.msra.mxu0 0.0
      %650 = vmatprep.subr.mxu0 0.0
      %651 = vmatpush1.msra.mxu0 0.0
      %652 = vmatprep.subr.mxu0 0.0
      %653 = vmatpush1.msra.mxu0 0.0
      %654 = vmatprep.subr.mxu0 0.0
      %655 = vmatpush1.msra.mxu0 0.0
      %656 = vmatprep.subr.mxu0 0.0
      %657 = vmatpush1.msra.mxu0 0.0
      %658 = vmatprep.subr.mxu0 0.0
      %659 = vmatpush1.msra.mxu0 0.0
      %660 = vmatprep.subr.mxu0 0.0
      %661 = vmatpush1.msra.mxu0 0.0
      %662 = vmatprep.subr.mxu0 0.0
      %663 = vmatpush1.msra.mxu0 0.0
      %664 = vmatprep.subr.mxu0 0.0
      %665 = vmatpush1.msra.mxu0 0.0
      %666 = vmatprep.subr.mxu0 0.0
      %667 = vmatpush1.msra.mxu0 0.0
      %668 = vmatprep.subr.mxu0 0.0
      %669 = vmatpush1.msra.mxu0 0.0
      %670 = vmatprep.subr.mxu0 0.0
      %671 = vmatpush1.msra.mxu0 0.0
      %672 = vmatprep.subr.mxu0 0.0
      %673 = vmatpush1.msra.mxu0 0.0
      %674 = vmatprep.subr.mxu0 0.0
      %675 = vmatpush1.msra.mxu0 0.0
      %676 = vmatprep.subr.mxu0 0.0
      %677 = vmatpush1.msra.mxu0 0.0
      %678 = vmatprep.subr.mxu0 0.0
      %679 = vmatpush1.msra.mxu0 0.0
      %680 = vmatprep.subr.mxu0 0.0
      %681 = vmatpush1.msra.mxu0 0.0
      %682 = vmatprep.subr.mxu0 0.0
      %683 = vmatpush1.msra.mxu0 0.0
      %684 = vmatprep.subr.mxu0 0.0
      %685 = vmatpush1.msra.mxu0 0.0
      %686 = vmatprep.subr.mxu0 0.0
      %687 = vmatpush1.msra.mxu0 0.0
      %688 = vmatprep.subr.mxu0 0.0
      %689 = vmatpush1.msra.mxu0 0.0
      %690 = vmatprep.subr.mxu0 0.0
      %691 = vmatpush1.msra.mxu0 0.0
      %692 = vmatprep.subr.mxu0 0.0
      %693 = vmatpush1.msra.mxu0 0.0
      %694 = vmatprep.mubr.f32.mxu0 0.0
      %695 = vmatmul.mubr.f32.gmra.mrb[0].mxu0 %v551
      %v696 = vpop.f32.mrb[0].mxu0
      %v697 = vadd.f32 %v547, %v696
      %v698 = vpop.f32.mrb[0].mxu0
      %699 = vdwg.mxu0
      %s700 = scalar_lea.vmem %s3, 8
      %v701 = vld [vmem:[%s700] sm:$0xf]
      %v702 = vld [vmem:[%s370] sm:$0xff]
      %v703 = vld [vmem:[%s370 + $0x8] sm:$0xf]
      %v706 = vcombine.high %v702, %v702
      %707 = vrot.lane.b32.xlu0 %v702, 126
      %v708 = vpop.permute.xlu0 %707
      %709 = vrot.lane.b32.xlu0 %v706, 126
      %v710 = vpop.permute.xlu0 %709
      %711 = vrot.lane.b32.xlu0 %v703, 126
      %v712 = vpop.permute.xlu0 %711
      %vm713 = vcmask 1031168
      %v714 = vsel %vm713, %v708, %v710
      %v715 = vsel %vm713, %v710, %v712
      %v717 = vsel %vm398, %v701, 0
      %v719 = vsel %vm402, %v714, 0
      %v721 = vsel %vm402, %v715, 0
      %v723 = vsel %vm402, %v712, 0
      %725 = vmatprep.subr.mxu0 %v721
      %726 = vmatpush1.msra.mxu0 %v719
      %727 = vmatprep.subr.mxu0 0.0
      %728 = vmatpush1.msra.mxu0 0.0
      %729 = vmatprep.subr.mxu0 0.0
      %730 = vmatpush1.msra.mxu0 0.0
      %731 = vmatprep.subr.mxu0 0.0
      %732 = vmatpush1.msra.mxu0 0.0
      %733 = vmatprep.subr.mxu0 0.0
      %734 = vmatpush1.msra.mxu0 0.0
      %735 = vmatprep.subr.mxu0 0.0
      %736 = vmatpush1.msra.mxu0 0.0
      %737 = vmatprep.subr.mxu0 0.0
      %738 = vmatpush1.msra.mxu0 0.0
      %739 = vmatprep.subr.mxu0 0.0
      %740 = vmatpush1.msra.mxu0 0.0
      %741 = vmatprep.subr.mxu0 0.0
      %742 = vmatpush1.msra.mxu0 0.0
      %743 = vmatprep.subr.mxu0 0.0
      %744 = vmatpush1.msra.mxu0 0.0
      %745 = vmatprep.subr.mxu0 0.0
      %746 = vmatpush1.msra.mxu0 0.0
      %747 = vmatprep.subr.mxu0 0.0
      %748 = vmatpush1.msra.mxu0 0.0
      %749 = vmatprep.subr.mxu0 0.0
      %750 = vmatpush1.msra.mxu0 0.0
      %751 = vmatprep.subr.mxu0 0.0
      %752 = vmatpush1.msra.mxu0 0.0
      %753 = vmatprep.subr.mxu0 0.0
      %754 = vmatpush1.msra.mxu0 0.0
      %755 = vmatprep.subr.mxu0 0.0
      %756 = vmatpush1.msra.mxu0 0.0
      %757 = vmatprep.subr.mxu0 0.0
      %758 = vmatpush1.msra.mxu0 0.0
      %759 = vmatprep.subr.mxu0 0.0
      %760 = vmatpush1.msra.mxu0 0.0
      %761 = vmatprep.subr.mxu0 0.0
      %762 = vmatpush1.msra.mxu0 0.0
      %763 = vmatprep.subr.mxu0 0.0
      %764 = vmatpush1.msra.mxu0 0.0
      %765 = vmatprep.subr.mxu0 0.0
      %766 = vmatpush1.msra.mxu0 0.0
      %767 = vmatprep.subr.mxu0 0.0
      %768 = vmatpush1.msra.mxu0 0.0
      %769 = vmatprep.subr.mxu0 0.0
      %770 = vmatpush1.msra.mxu0 0.0
      %771 = vmatprep.subr.mxu0 0.0
      %772 = vmatpush1.msra.mxu0 0.0
      %773 = vmatprep.subr.mxu0 0.0
      %774 = vmatpush1.msra.mxu0 0.0
      %775 = vmatprep.subr.mxu0 0.0
      %776 = vmatpush1.msra.mxu0 0.0
      %777 = vmatprep.subr.mxu0 0.0
      %778 = vmatpush1.msra.mxu0 0.0
      %779 = vmatprep.subr.mxu0 0.0
      %780 = vmatpush1.msra.mxu0 0.0
      %781 = vmatprep.subr.mxu0 0.0
      %782 = vmatpush1.msra.mxu0 0.0
      %783 = vmatprep.subr.mxu0 0.0
      %784 = vmatpush1.msra.mxu0 0.0
      %785 = vmatprep.subr.mxu0 0.0
      %786 = vmatpush1.msra.mxu0 0.0
      %787 = vmatprep.subr.mxu0 0.0
      %788 = vmatpush1.msra.mxu0 0.0
      %789 = vmatprep.mubr.f32.mxu0 0.0
      %790 = vmatmul.mubr.f32.gmra.mrb[0].mxu0 %v717
      %v791 = vpop.f32.mrb[0].mxu0
      %v792 = vadd.f32 0.0, %v791
      %v793 = vpop.f32.mrb[0].mxu0
      %v794 = vadd.f32 0.0, %v793
      %795 = vdwg.mxu0
      %796 = vmatprep.subr.mxu0 0.0
      %797 = vmatpush1.msra.mxu0 %v723
      %798 = vmatprep.subr.mxu0 0.0
      %799 = vmatpush1.msra.mxu0 0.0
      %800 = vmatprep.subr.mxu0 0.0
      %801 = vmatpush1.msra.mxu0 0.0
      %802 = vmatprep.subr.mxu0 0.0
      %803 = vmatpush1.msra.mxu0 0.0
      %804 = vmatprep.subr.mxu0 0.0
      %805 = vmatpush1.msra.mxu0 0.0
      %806 = vmatprep.subr.mxu0 0.0
      %807 = vmatpush1.msra.mxu0 0.0
      %808 = vmatprep.subr.mxu0 0.0
      %809 = vmatpush1.msra.mxu0 0.0
      %810 = vmatprep.subr.mxu0 0.0
      %811 = vmatpush1.msra.mxu0 0.0
      %812 = vmatprep.subr.mxu0 0.0
      %813 = vmatpush1.msra.mxu0 0.0
      %814 = vmatprep.subr.mxu0 0.0
      %815 = vmatpush1.msra.mxu0 0.0
      %816 = vmatprep.subr.mxu0 0.0
      %817 = vmatpush1.msra.mxu0 0.0
      %818 = vmatprep.subr.mxu0 0.0
      %819 = vmatpush1.msra.mxu0 0.0
      %820 = vmatprep.subr.mxu0 0.0
      %821 = vmatpush1.msra.mxu0 0.0
      %822 = vmatprep.subr.mxu0 0.0
      %823 = vmatpush1.msra.mxu0 0.0
      %824 = vmatprep.subr.mxu0 0.0
      %825 = vmatpush1.msra.mxu0 0.0
      %826 = vmatprep.subr.mxu0 0.0
      %827 = vmatpush1.msra.mxu0 0.0
      %828 = vmatprep.subr.mxu0 0.0
      %829 = vmatpush1.msra.mxu0 0.0
      %830 = vmatprep.subr.mxu0 0.0
      %831 = vmatpush1.msra.mxu0 0.0
      %832 = vmatprep.subr.mxu0 0.0
      %833 = vmatpush1.msra.mxu0 0.0
      %834 = vmatprep.subr.mxu0 0.0
      %835 = vmatpush1.msra.mxu0 0.0
      %836 = vmatprep.subr.mxu0 0.0
      %837 = vmatpush1.msra.mxu0 0.0
      %838 = vmatprep.subr.mxu0 0.0
      %839 = vmatpush1.msra.mxu0 0.0
      %840 = vmatprep.subr.mxu0 0.0
      %841 = vmatpush1.msra.mxu0 0.0
      %842 = vmatprep.subr.mxu0 0.0
      %843 = vmatpush1.msra.mxu0 0.0
      %844 = vmatprep.subr.mxu0 0.0
      %845 = vmatpush1.msra.mxu0 0.0
      %846 = vmatprep.subr.mxu0 0.0
      %847 = vmatpush1.msra.mxu0 0.0
      %848 = vmatprep.subr.mxu0 0.0
      %849 = vmatpush1.msra.mxu0 0.0
      %850 = vmatprep.subr.mxu0 0.0
      %851 = vmatpush1.msra.mxu0 0.0
      %852 = vmatprep.subr.mxu0 0.0
      %853 = vmatpush1.msra.mxu0 0.0
      %854 = vmatprep.subr.mxu0 0.0
      %855 = vmatpush1.msra.mxu0 0.0
      %856 = vmatprep.subr.mxu0 0.0
      %857 = vmatpush1.msra.mxu0 0.0
      %858 = vmatprep.subr.mxu0 0.0
      %859 = vmatpush1.msra.mxu0 0.0
      %860 = vmatprep.mubr.f32.mxu0 0.0
      %861 = vmatmul.mubr.f32.gmra.mrb[0].mxu0 %v717
      %v862 = vpop.f32.mrb[0].mxu0
      %v863 = vadd.f32 0.0, %v862
      %v864 = vpop.f32.mrb[0].mxu0
      %865 = vdwg.mxu0
      %v866 = vadd.f32 %v626, %v792
      %v867 = vadd.f32 %v628, %v794
      %v868 = vadd.f32 %v697, %v863
      %s869 = scalar_lea.vmem %s3, 12
      %v870 = vld [vmem:[%s869] sm:$0xf]
      %v871 = vld [vmem:[%s370] sm:$0xff]
      %v872 = vld [vmem:[%s370 + $0x8] sm:$0xf]
      %v875 = vcombine.high %v871, %v871
      %876 = vrot.lane.b32.xlu0 %v871, 110
      %v877 = vpop.permute.xlu0 %876
      %878 = vrot.lane.b32.xlu0 %v875, 110
      %v879 = vpop.permute.xlu0 %878
      %880 = vrot.lane.b32.xlu0 %v872, 110
      %v881 = vpop.permute.xlu0 %880
      %vm882 = vcmask 900096
      %v883 = vsel %vm882, %v877, %v879
      %v884 = vsel %vm882, %v879, %v881
      %v886 = vsel %vm398, %v870, 0
      %v888 = vsel %vm402, %v883, 0
      %v890 = vsel %vm402, %v884, 0
      %v892 = vsel %vm402, %v881, 0
      %894 = vmatprep.subr.mxu0 %v890
      %895 = vmatpush1.msra.mxu0 %v888
      %896 = vmatprep.subr.mxu0 0.0
      %897 = vmatpush1.msra.mxu0 0.0
      %898 = vmatprep.subr.mxu0 0.0
      %899 = vmatpush1.msra.mxu0 0.0
      %900 = vmatprep.subr.mxu0 0.0
      %901 = vmatpush1.msra.mxu0 0.0
      %902 = vmatprep.subr.mxu0 0.0
      %903 = vmatpush1.msra.mxu0 0.0
      %904 = vmatprep.subr.mxu0 0.0
      %905 = vmatpush1.msra.mxu0 0.0
      %906 = vmatprep.subr.mxu0 0.0
      %907 = vmatpush1.msra.mxu0 0.0
      %908 = vmatprep.subr.mxu0 0.0
      %909 = vmatpush1.msra.mxu0 0.0
      %910 = vmatprep.subr.mxu0 0.0
      %911 = vmatpush1.msra.mxu0 0.0
      %912 = vmatprep.subr.mxu0 0.0
      %913 = vmatpush1.msra.mxu0 0.0
      %914 = vmatprep.subr.mxu0 0.0
      %915 = vmatpush1.msra.mxu0 0.0
      %916 = vmatprep.subr.mxu0 0.0
      %917 = vmatpush1.msra.mxu0 0.0
      %918 = vmatprep.subr.mxu0 0.0
      %919 = vmatpush1.msra.mxu0 0.0
      %920 = vmatprep.subr.mxu0 0.0
      %921 = vmatpush1.msra.mxu0 0.0
      %922 = vmatprep.subr.mxu0 0.0
      %923 = vmatpush1.msra.mxu0 0.0
      %924 = vmatprep.subr.mxu0 0.0
      %925 = vmatpush1.msra.mxu0 0.0
      %926 = vmatprep.subr.mxu0 0.0
      %927 = vmatpush1.msra.mxu0 0.0
      %928 = vmatprep.subr.mxu0 0.0
      %929 = vmatpush1.msra.mxu0 0.0
      %930 = vmatprep.subr.mxu0 0.0
      %931 = vmatpush1.msra.mxu0 0.0
      %932 = vmatprep.subr.mxu0 0.0
      %933 = vmatpush1.msra.mxu0 0.0
      %934 = vmatprep.subr.mxu0 0.0
      %935 = vmatpush1.msra.mxu0 0.0
      %936 = vmatprep.subr.mxu0 0.0
      %937 = vmatpush1.msra.mxu0 0.0
      %938 = vmatprep.subr.mxu0 0.0
      %939 = vmatpush1.msra.mxu0 0.0
      %940 = vmatprep.subr.mxu0 0.0
      %941 = vmatpush1.msra.mxu0 0.0
      %942 = vmatprep.subr.mxu0 0.0
      %943 = vmatpush1.msra.mxu0 0.0
      %944 = vmatprep.subr.mxu0 0.0
      %945 = vmatpush1.msra.mxu0 0.0
      %946 = vmatprep.subr.mxu0 0.0
      %947 = vmatpush1.msra.mxu0 0.0
      %948 = vmatprep.subr.mxu0 0.0
      %949 = vmatpush1.msra.mxu0 0.0
      %950 = vmatprep.subr.mxu0 0.0
      %951 = vmatpush1.msra.mxu0 0.0
      %952 = vmatprep.subr.mxu0 0.0
      %953 = vmatpush1.msra.mxu0 0.0
      %954 = vmatprep.subr.mxu0 0.0
      %955 = vmatpush1.msra.mxu0 0.0
      %956 = vmatprep.subr.mxu0 0.0
      %957 = vmatpush1.msra.mxu0 0.0
      %958 = vmatprep.mubr.f32.mxu0 0.0
      %959 = vmatmul.mubr.f32.gmra.mrb[0].mxu0 %v886
      %v960 = vpop.f32.mrb[0].mxu0
      %v961 = vadd.f32 0.0, %v960
      %v962 = vpop.f32.mrb[0].mxu0
      %v963 = vadd.f32 0.0, %v962
      %964 = vdwg.mxu0
      %965 = vmatprep.subr.mxu0 0.0
      %966 = vmatpush1.msra.mxu0 %v892
      %967 = vmatprep.subr.mxu0 0.0
      %968 = vmatpush1.msra.mxu0 0.0
      %969 = vmatprep.subr.mxu0 0.0
      %970 = vmatpush1.msra.mxu0 0.0
      %971 = vmatprep.subr.mxu0 0.0
      %972 = vmatpush1.msra.mxu0 0.0
      %973 = vmatprep.subr.mxu0 0.0
      %974 = vmatpush1.msra.mxu0 0.0
      %975 = vmatprep.subr.mxu0 0.0
      %976 = vmatpush1.msra.mxu0 0.0
      %977 = vmatprep.subr.mxu0 0.0
      %978 = vmatpush1.msra.mxu0 0.0
      %979 = vmatprep.subr.mxu0 0.0
      %980 = vmatpush1.msra.mxu0 0.0
      %981 = vmatprep.subr.mxu0 0.0
      %982 = vmatpush1.msra.mxu0 0.0
      %983 = vmatprep.subr.mxu0 0.0
      %984 = vmatpush1.msra.mxu0 0.0
      %985 = vmatprep.subr.mxu0 0.0
      %986 = vmatpush1.msra.mxu0 0.0
      %987 = vmatprep.subr.mxu0 0.0
      %988 = vmatpush1.msra.mxu0 0.0
      %989 = vmatprep.subr.mxu0 0.0
      %990 = vmatpush1.msra.mxu0 0.0
      %991 = vmatprep.subr.mxu0 0.0
      %992 = vmatpush1.msra.mxu0 0.0
      %993 = vmatprep.subr.mxu0 0.0
      %994 = vmatpush1.msra.mxu0 0.0
      %995 = vmatprep.subr.mxu0 0.0
      %996 = vmatpush1.msra.mxu0 0.0
      %997 = vmatprep.subr.mxu0 0.0
      %998 = vmatpush1.msra.mxu0 0.0
      %999 = vmatprep.subr.mxu0 0.0
      %1000 = vmatpush1.msra.mxu0 0.0
      %1001 = vmatprep.subr.mxu0 0.0
      %1002 = vmatpush1.msra.mxu0 0.0
      %1003 = vmatprep.subr.mxu0 0.0
      %1004 = vmatpush1.msra.mxu0 0.0
      %1005 = vmatprep.subr.mxu0 0.0
      %1006 = vmatpush1.msra.mxu0 0.0
      %1007 = vmatprep.subr.mxu0 0.0
      %1008 = vmatpush1.msra.mxu0 0.0
      %1009 = vmatprep.subr.mxu0 0.0
      %1010 = vmatpush1.msra.mxu0 0.0
      %1011 = vmatprep.subr.mxu0 0.0
      %1012 = vmatpush1.msra.mxu0 0.0
      %1013 = vmatprep.subr.mxu0 0.0
      %1014 = vmatpush1.msra.mxu0 0.0
      %1015 = vmatprep.subr.mxu0 0.0
      %1016 = vmatpush1.msra.mxu0 0.0
      %1017 = vmatprep.subr.mxu0 0.0
      %1018 = vmatpush1.msra.mxu0 0.0
      %1019 = vmatprep.subr.mxu0 0.0
      %1020 = vmatpush1.msra.mxu0 0.0
      %1021 = vmatprep.subr.mxu0 0.0
      %1022 = vmatpush1.msra.mxu0 0.0
      %1023 = vmatprep.subr.mxu0 0.0
      %1024 = vmatpush1.msra.mxu0 0.0
      %1025 = vmatprep.subr.mxu0 0.0
      %1026 = vmatpush1.msra.mxu0 0.0
      %1027 = vmatprep.subr.mxu0 0.0
      %1028 = vmatpush1.msra.mxu0 0.0
      %1029 = vmatprep.mubr.f32.mxu0 0.0
      %1030 = vmatmul.mubr.f32.gmra.mrb[0].mxu0 %v886
      %v1031 = vpop.f32.mrb[0].mxu0
      %v1032 = vadd.f32 0.0, %v1031
      %v1033 = vpop.f32.mrb[0].mxu0
      %1034 = vdwg.mxu0
      %v1035 = vadd.f32 %v866, %v961
      %v1036 = vadd.f32 %v867, %v963
      %v1037 = vadd.f32 %v868, %v1032
      %s1038 = scalar_lea.vmem %s3, 16
      %v1039 = vld [vmem:[%s1038] sm:$0xf]
      %v1040 = vld [vmem:[%s370] sm:$0xff]
      %v1041 = vld [vmem:[%s370 + $0x8] sm:$0xf]
      %v1044 = vcombine.high %v1040, %v1040
      %1045 = vrot.lane.b32.xlu0 %v1040, 109
      %v1046 = vpop.permute.xlu0 %1045
      %1047 = vrot.lane.b32.xlu0 %v1044, 109
      %v1048 = vpop.permute.xlu0 %1047
      %1049 = vrot.lane.b32.xlu0 %v1041, 109
      %v1050 = vpop.permute.xlu0 %1049
      %vm1051 = vcmask 891904
      %v1052 = vsel %vm1051, %v1046, %v1048
      %v1053 = vsel %vm1051, %v1048, %v1050
      %v1055 = vsel %vm398, %v1039, 0
      %v1057 = vsel %vm402, %v1052, 0
      %v1059 = vsel %vm402, %v1053, 0
      %v1061 = vsel %vm402, %v1050, 0
      %1063 = vmatprep.subr.mxu0 %v1059
      %1064 = vmatpush1.msra.mxu0 %v1057
      %1065 = vmatprep.subr.mxu0 0.0
      %1066 = vmatpush1.msra.mxu0 0.0
      %1067 = vmatprep.subr.mxu0 0.0
      %1068 = vmatpush1.msra.mxu0 0.0
      %1069 = vmatprep.subr.mxu0 0.0
      %1070 = vmatpush1.msra.mxu0 0.0
      %1071 = vmatprep.subr.mxu0 0.0
      %1072 = vmatpush1.msra.mxu0 0.0
      %1073 = vmatprep.subr.mxu0 0.0
      %1074 = vmatpush1.msra.mxu0 0.0
      %1075 = vmatprep.subr.mxu0 0.0
      %1076 = vmatpush1.msra.mxu0 0.0
      %1077 = vmatprep.subr.mxu0 0.0
      %1078 = vmatpush1.msra.mxu0 0.0
      %1079 = vmatprep.subr.mxu0 0.0
      %1080 = vmatpush1.msra.mxu0 0.0
      %1081 = vmatprep.subr.mxu0 0.0
      %1082 = vmatpush1.msra.mxu0 0.0
      %1083 = vmatprep.subr.mxu0 0.0
      %1084 = vmatpush1.msra.mxu0 0.0
      %1085 = vmatprep.subr.mxu0 0.0
      %1086 = vmatpush1.msra.mxu0 0.0
      %1087 = vmatprep.subr.mxu0 0.0
      %1088 = vmatpush1.msra.mxu0 0.0
      %1089 = vmatprep.subr.mxu0 0.0
      %1090 = vmatpush1.msra.mxu0 0.0
      %1091 = vmatprep.subr.mxu0 0.0
      %1092 = vmatpush1.msra.mxu0 0.0
      %1093 = vmatprep.subr.mxu0 0.0
      %1094 = vmatpush1.msra.mxu0 0.0
      %1095 = vmatprep.subr.mxu0 0.0
      %1096 = vmatpush1.msra.mxu0 0.0
      %1097 = vmatprep.subr.mxu0 0.0
      %1098 = vmatpush1.msra.mxu0 0.0
      %1099 = vmatprep.subr.mxu0 0.0
      %1100 = vmatpush1.msra.mxu0 0.0
      %1101 = vmatprep.subr.mxu0 0.0
      %1102 = vmatpush1.msra.mxu0 0.0
      %1103 = vmatprep.subr.mxu0 0.0
      %1104 = vmatpush1.msra.mxu0 0.0
      %1105 = vmatprep.subr.mxu0 0.0
      %1106 = vmatpush1.msra.mxu0 0.0
      %1107 = vmatprep.subr.mxu0 0.0
      %1108 = vmatpush1.msra.mxu0 0.0
      %1109 = vmatprep.subr.mxu0 0.0
      %1110 = vmatpush1.msra.mxu0 0.0
      %1111 = vmatprep.subr.mxu0 0.0
      %1112 = vmatpush1.msra.mxu0 0.0
      %1113 = vmatprep.subr.mxu0 0.0
      %1114 = vmatpush1.msra.mxu0 0.0
      %1115 = vmatprep.subr.mxu0 0.0
      %1116 = vmatpush1.msra.mxu0 0.0
      %1117 = vmatprep.subr.mxu0 0.0
      %1118 = vmatpush1.msra.mxu0 0.0
      %1119 = vmatprep.subr.mxu0 0.0
      %1120 = vmatpush1.msra.mxu0 0.0
      %1121 = vmatprep.subr.mxu0 0.0
      %1122 = vmatpush1.msra.mxu0 0.0
      %1123 = vmatprep.subr.mxu0 0.0
      %1124 = vmatpush1.msra.mxu0 0.0
      %1125 = vmatprep.subr.mxu0 0.0
      %1126 = vmatpush1.msra.mxu0 0.0
      %1127 = vmatprep.mubr.f32.mxu0 0.0
      %1128 = vmatmul.mubr.f32.gmra.mrb[0].mxu0 %v1055
      %v1129 = vpop.f32.mrb[0].mxu0
      %v1130 = vadd.f32 0.0, %v1129
      %v1131 = vpop.f32.mrb[0].mxu0
      %v1132 = vadd.f32 0.0, %v1131
      %1133 = vdwg.mxu0
      %1134 = vmatprep.subr.mxu0 0.0
      %1135 = vmatpush1.msra.mxu0 %v1061
      %1136 = vmatprep.subr.mxu0 0.0
      %1137 = vmatpush1.msra.mxu0 0.0
      %1138 = vmatprep.subr.mxu0 0.0
      %1139 = vmatpush1.msra.mxu0 0.0
      %1140 = vmatprep.subr.mxu0 0.0
      %1141 = vmatpush1.msra.mxu0 0.0
      %1142 = vmatprep.subr.mxu0 0.0
      %1143 = vmatpush1.msra.mxu0 0.0
      %1144 = vmatprep.subr.mxu0 0.0
      %1145 = vmatpush1.msra.mxu0 0.0
      %1146 = vmatprep.subr.mxu0 0.0
      %1147 = vmatpush1.msra.mxu0 0.0
      %1148 = vmatprep.subr.mxu0 0.0
      %1149 = vmatpush1.msra.mxu0 0.0
      %1150 = vmatprep.subr.mxu0 0.0
      %1151 = vmatpush1.msra.mxu0 0.0
      %1152 = vmatprep.subr.mxu0 0.0
      %1153 = vmatpush1.msra.mxu0 0.0
      %1154 = vmatprep.subr.mxu0 0.0
      %1155 = vmatpush1.msra.mxu0 0.0
      %1156 = vmatprep.subr.mxu0 0.0
      %1157 = vmatpush1.msra.mxu0 0.0
      %1158 = vmatprep.subr.mxu0 0.0
      %1159 = vmatpush1.msra.mxu0 0.0
      %1160 = vmatprep.subr.mxu0 0.0
      %1161 = vmatpush1.msra.mxu0 0.0
      %1162 = vmatprep.subr.mxu0 0.0
      %1163 = vmatpush1.msra.mxu0 0.0
      %1164 = vmatprep.subr.mxu0 0.0
      %1165 = vmatpush1.msra.mxu0 0.0
      %1166 = vmatprep.subr.mxu0 0.0
      %1167 = vmatpush1.msra.mxu0 0.0
      %1168 = vmatprep.subr.mxu0 0.0
      %1169 = vmatpush1.msra.mxu0 0.0
      %1170 = vmatprep.subr.mxu0 0.0
      %1171 = vmatpush1.msra.mxu0 0.0
      %1172 = vmatprep.subr.mxu0 0.0
      %1173 = vmatpush1.msra.mxu0 0.0
      %1174 = vmatprep.subr.mxu0 0.0
      %1175 = vmatpush1.msra.mxu0 0.0
      %1176 = vmatprep.subr.mxu0 0.0
      %1177 = vmatpush1.msra.mxu0 0.0
      %1178 = vmatprep.subr.mxu0 0.0
      %1179 = vmatpush1.msra.mxu0 0.0
      %1180 = vmatprep.subr.mxu0 0.0
      %1181 = vmatpush1.msra.mxu0 0.0
      %1182 = vmatprep.subr.mxu0 0.0
      %1183 = vmatpush1.msra.mxu0 0.0
      %1184 = vmatprep.subr.mxu0 0.0
      %1185 = vmatpush1.msra.mxu0 0.0
      %1186 = vmatprep.subr.mxu0 0.0
      %1187 = vmatpush1.msra.mxu0 0.0
      %1188 = vmatprep.subr.mxu0 0.0
      %1189 = vmatpush1.msra.mxu0 0.0
      %1190 = vmatprep.subr.mxu0 0.0
      %1191 = vmatpush1.msra.mxu0 0.0
      %1192 = vmatprep.subr.mxu0 0.0
      %1193 = vmatpush1.msra.mxu0 0.0
      %1194 = vmatprep.subr.mxu0 0.0
      %1195 = vmatpush1.msra.mxu0 0.0
      %1196 = vmatprep.subr.mxu0 0.0
      %1197 = vmatpush1.msra.mxu0 0.0
      %1198 = vmatprep.mubr.f32.mxu0 0.0
      %1199 = vmatmul.mubr.f32.gmra.mrb[0].mxu0 %v1055
      %v1200 = vpop.f32.mrb[0].mxu0
      %v1201 = vadd.f32 0.0, %v1200
      %v1202 = vpop.f32.mrb[0].mxu0
      %1203 = vdwg.mxu0
      %v1204 = vadd.f32 %v1035, %v1130
      %v1205 = vadd.f32 %v1036, %v1132
      %v1206 = vadd.f32 %v1037, %v1201
      %s1207 = scalar_lea.vmem %s3, 20
      %v1208 = vld [vmem:[%s1207] sm:$0xf]
      %v1209 = vld [vmem:[%s370] sm:$0xff]
      %v1210 = vld [vmem:[%s370 + $0x8] sm:$0xf]
      %v1213 = vcombine.high %v1209, %v1209
      %1214 = vrot.lane.b32.xlu0 %v1209, 108
      %v1215 = vpop.permute.xlu0 %1214
      %1216 = vrot.lane.b32.xlu0 %v1213, 108
      %v1217 = vpop.permute.xlu0 %1216
      %1218 = vrot.lane.b32.xlu0 %v1210, 108
      %v1219 = vpop.permute.xlu0 %1218
      %vm1220 = vcmask 883712
      %v1221 = vsel %vm1220, %v1215, %v1217
      %v1222 = vsel %vm1220, %v1217, %v1219
      %v1224 = vsel %vm398, %v1208, 0
      %v1226 = vsel %vm402, %v1221, 0
      %v1228 = vsel %vm402, %v1222, 0
      %v1230 = vsel %vm402, %v1219, 0
      %1232 = vmatprep.subr.mxu0 %v1228
      %1233 = vmatpush1.msra.mxu0 %v1226
      %1234 = vmatprep.subr.mxu0 0.0
      %1235 = vmatpush1.msra.mxu0 0.0
      %1236 = vmatprep.subr.mxu0 0.0
      %1237 = vmatpush1.msra.mxu0 0.0
      %1238 = vmatprep.subr.mxu0 0.0
      %1239 = vmatpush1.msra.mxu0 0.0
      %1240 = vmatprep.subr.mxu0 0.0
      %1241 = vmatpush1.msra.mxu0 0.0
      %1242 = vmatprep.subr.mxu0 0.0
      %1243 = vmatpush1.msra.mxu0 0.0
      %1244 = vmatprep.subr.mxu0 0.0
      %1245 = vmatpush1.msra.mxu0 0.0
      %1246 = vmatprep.subr.mxu0 0.0
      %1247 = vmatpush1.msra.mxu0 0.0
      %1248 = vmatprep.subr.mxu0 0.0
      %1249 = vmatpush1.msra.mxu0 0.0
      %1250 = vmatprep.subr.mxu0 0.0
      %1251 = vmatpush1.msra.mxu0 0.0
      %1252 = vmatprep.subr.mxu0 0.0
      %1253 = vmatpush1.msra.mxu0 0.0
      %1254 = vmatprep.subr.mxu0 0.0
      %1255 = vmatpush1.msra.mxu0 0.0
      %1256 = vmatprep.subr.mxu0 0.0
      %1257 = vmatpush1.msra.mxu0 0.0
      %1258 = vmatprep.subr.mxu0 0.0
      %1259 = vmatpush1.msra.mxu0 0.0
      %1260 = vmatprep.subr.mxu0 0.0
      %1261 = vmatpush1.msra.mxu0 0.0
      %1262 = vmatprep.subr.mxu0 0.0
      %1263 = vmatpush1.msra.mxu0 0.0
      %1264 = vmatprep.subr.mxu0 0.0
      %1265 = vmatpush1.msra.mxu0 0.0
      %1266 = vmatprep.subr.mxu0 0.0
      %1267 = vmatpush1.msra.mxu0 0.0
      %1268 = vmatprep.subr.mxu0 0.0
      %1269 = vmatpush1.msra.mxu0 0.0
      %1270 = vmatprep.subr.mxu0 0.0
      %1271 = vmatpush1.msra.mxu0 0.0
      %1272 = vmatprep.subr.mxu0 0.0
      %1273 = vmatpush1.msra.mxu0 0.0
      %1274 = vmatprep.subr.mxu0 0.0
      %1275 = vmatpush1.msra.mxu0 0.0
      %1276 = vmatprep.subr.mxu0 0.0
      %1277 = vmatpush1.msra.mxu0 0.0
      %1278 = vmatprep.subr.mxu0 0.0
      %1279 = vmatpush1.msra.mxu0 0.0
      %1280 = vmatprep.subr.mxu0 0.0
      %1281 = vmatpush1.msra.mxu0 0.0
      %1282 = vmatprep.subr.mxu0 0.0
      %1283 = vmatpush1.msra.mxu0 0.0
      %1284 = vmatprep.subr.mxu0 0.0
      %1285 = vmatpush1.msra.mxu0 0.0
      %1286 = vmatprep.subr.mxu0 0.0
      %1287 = vmatpush1.msra.mxu0 0.0
      %1288 = vmatprep.subr.mxu0 0.0
      %1289 = vmatpush1.msra.mxu0 0.0
      %1290 = vmatprep.subr.mxu0 0.0
      %1291 = vmatpush1.msra.mxu0 0.0
      %1292 = vmatprep.subr.mxu0 0.0
      %1293 = vmatpush1.msra.mxu0 0.0
      %1294 = vmatprep.subr.mxu0 0.0
      %1295 = vmatpush1.msra.mxu0 0.0
      %1296 = vmatprep.mubr.f32.mxu0 0.0
      %1297 = vmatmul.mubr.f32.gmra.mrb[0].mxu0 %v1224
      %v1298 = vpop.f32.mrb[0].mxu0
      %v1299 = vadd.f32 0.0, %v1298
      %v1300 = vpop.f32.mrb[0].mxu0
      %v1301 = vadd.f32 0.0, %v1300
      %1302 = vdwg.mxu0
      %1303 = vmatprep.subr.mxu0 0.0
      %1304 = vmatpush1.msra.mxu0 %v1230
      %1305 = vmatprep.subr.mxu0 0.0
      %1306 = vmatpush1.msra.mxu0 0.0
      %1307 = vmatprep.subr.mxu0 0.0
      %1308 = vmatpush1.msra.mxu0 0.0
      %1309 = vmatprep.subr.mxu0 0.0
      %1310 = vmatpush1.msra.mxu0 0.0
      %1311 = vmatprep.subr.mxu0 0.0
      %1312 = vmatpush1.msra.mxu0 0.0
      %1313 = vmatprep.subr.mxu0 0.0
      %1314 = vmatpush1.msra.mxu0 0.0
      %1315 = vmatprep.subr.mxu0 0.0
      %1316 = vmatpush1.msra.mxu0 0.0
      %1317 = vmatprep.subr.mxu0 0.0
      %1318 = vmatpush1.msra.mxu0 0.0
      %1319 = vmatprep.subr.mxu0 0.0
      %1320 = vmatpush1.msra.mxu0 0.0
      %1321 = vmatprep.subr.mxu0 0.0
      %1322 = vmatpush1.msra.mxu0 0.0
      %1323 = vmatprep.subr.mxu0 0.0
      %1324 = vmatpush1.msra.mxu0 0.0
      %1325 = vmatprep.subr.mxu0 0.0
      %1326 = vmatpush1.msra.mxu0 0.0
      %1327 = vmatprep.subr.mxu0 0.0
      %1328 = vmatpush1.msra.mxu0 0.0
      %1329 = vmatprep.subr.mxu0 0.0
      %1330 = vmatpush1.msra.mxu0 0.0
      %1331 = vmatprep.subr.mxu0 0.0
      %1332 = vmatpush1.msra.mxu0 0.0
      %1333 = vmatprep.subr.mxu0 0.0
      %1334 = vmatpush1.msra.mxu0 0.0
      %1335 = vmatprep.subr.mxu0 0.0
      %1336 = vmatpush1.msra.mxu0 0.0
      %1337 = vmatprep.subr.mxu0 0.0
      %1338 = vmatpush1.msra.mxu0 0.0
      %1339 = vmatprep.subr.mxu0 0.0
      %1340 = vmatpush1.msra.mxu0 0.0
      %1341 = vmatprep.subr.mxu0 0.0
      %1342 = vmatpush1.msra.mxu0 0.0
      %1343 = vmatprep.subr.mxu0 0.0
      %1344 = vmatpush1.msra.mxu0 0.0
      %1345 = vmatprep.subr.mxu0 0.0
      %1346 = vmatpush1.msra.mxu0 0.0
      %1347 = vmatprep.subr.mxu0 0.0
      %1348 = vmatpush1.msra.mxu0 0.0
      %1349 = vmatprep.subr.mxu0 0.0
      %1350 = vmatpush1.msra.mxu0 0.0
      %1351 = vmatprep.subr.mxu0 0.0
      %1352 = vmatpush1.msra.mxu0 0.0
      %1353 = vmatprep.subr.mxu0 0.0
      %1354 = vmatpush1.msra.mxu0 0.0
      %1355 = vmatprep.subr.mxu0 0.0
      %1356 = vmatpush1.msra.mxu0 0.0
      %1357 = vmatprep.subr.mxu0 0.0
      %1358 = vmatpush1.msra.mxu0 0.0
      %1359 = vmatprep.subr.mxu0 0.0
      %1360 = vmatpush1.msra.mxu0 0.0
      %1361 = vmatprep.subr.mxu0 0.0
      %1362 = vmatpush1.msra.mxu0 0.0
      %1363 = vmatprep.subr.mxu0 0.0
      %1364 = vmatpush1.msra.mxu0 0.0
      %1365 = vmatprep.subr.mxu0 0.0
      %1366 = vmatpush1.msra.mxu0 0.0
      %1367 = vmatprep.mubr.f32.mxu0 0.0
      %1368 = vmatmul.mubr.f32.gmra.mrb[0].mxu0 %v1224
      %v1369 = vpop.f32.mrb[0].mxu0
      %v1370 = vadd.f32 0.0, %v1369
      %v1371 = vpop.f32.mrb[0].mxu0
      %1372 = vdwg.mxu0
      %v1373 = vadd.f32 %v1204, %v1299
      %v1374 = vadd.f32 %v1205, %v1301
      %v1375 = vadd.f32 %v1206, %v1370
      %s1376 = scalar_lea.vmem %s3, 24
      %v1377 = vld [vmem:[%s1376] sm:$0xf]
      %v1378 = vld [vmem:[%s370] sm:$0xff]
      %v1379 = vld [vmem:[%s370 + $0x8] sm:$0xf]
      %v1382 = vcombine.high %v1378, %v1378
      %1383 = vrot.lane.b32.xlu0 %v1378, 92
      %v1384 = vpop.permute.xlu0 %1383
      %1385 = vrot.lane.b32.xlu0 %v1382, 92
      %v1386 = vpop.permute.xlu0 %1385
      %1387 = vrot.lane.b32.xlu0 %v1379, 92
      %v1388 = vpop.permute.xlu0 %1387
      %vm1389 = vcmask 752640
      %v1390 = vsel %vm1389, %v1384, %v1386
      %v1391 = vsel %vm1389, %v1386, %v1388
      %v1393 = vsel %vm398, %v1377, 0
      %v1395 = vsel %vm402, %v1390, 0
      %v1397 = vsel %vm402, %v1391, 0
      %v1399 = vsel %vm402, %v1388, 0
      %1401 = vmatprep.subr.mxu0 %v1397
      %1402 = vmatpush1.msra.mxu0 %v1395
      %1403 = vmatprep.subr.mxu0 0.0
      %1404 = vmatpush1.msra.mxu0 0.0
      %1405 = vmatprep.subr.mxu0 0.0
      %1406 = vmatpush1.msra.mxu0 0.0
      %1407 = vmatprep.subr.mxu0 0.0
      %1408 = vmatpush1.msra.mxu0 0.0
      %1409 = vmatprep.subr.mxu0 0.0
      %1410 = vmatpush1.msra.mxu0 0.0
      %1411 = vmatprep.subr.mxu0 0.0
      %1412 = vmatpush1.msra.mxu0 0.0
      %1413 = vmatprep.subr.mxu0 0.0
      %1414 = vmatpush1.msra.mxu0 0.0
      %1415 = vmatprep.subr.mxu0 0.0
      %1416 = vmatpush1.msra.mxu0 0.0
      %1417 = vmatprep.subr.mxu0 0.0
      %1418 = vmatpush1.msra.mxu0 0.0
      %1419 = vmatprep.subr.mxu0 0.0
      %1420 = vmatpush1.msra.mxu0 0.0
      %1421 = vmatprep.subr.mxu0 0.0
      %1422 = vmatpush1.msra.mxu0 0.0
      %1423 = vmatprep.subr.mxu0 0.0
      %1424 = vmatpush1.msra.mxu0 0.0
      %1425 = vmatprep.subr.mxu0 0.0
      %1426 = vmatpush1.msra.mxu0 0.0
      %1427 = vmatprep.subr.mxu0 0.0
      %1428 = vmatpush1.msra.mxu0 0.0
      %1429 = vmatprep.subr.mxu0 0.0
      %1430 = vmatpush1.msra.mxu0 0.0
      %1431 = vmatprep.subr.mxu0 0.0
      %1432 = vmatpush1.msra.mxu0 0.0
      %1433 = vmatprep.subr.mxu0 0.0
      %1434 = vmatpush1.msra.mxu0 0.0
      %1435 = vmatprep.subr.mxu0 0.0
      %1436 = vmatpush1.msra.mxu0 0.0
      %1437 = vmatprep.subr.mxu0 0.0
      %1438 = vmatpush1.msra.mxu0 0.0
      %1439 = vmatprep.subr.mxu0 0.0
      %1440 = vmatpush1.msra.mxu0 0.0
      %1441 = vmatprep.subr.mxu0 0.0
      %1442 = vmatpush1.msra.mxu0 0.0
      %1443 = vmatprep.subr.mxu0 0.0
      %1444 = vmatpush1.msra.mxu0 0.0
      %1445 = vmatprep.subr.mxu0 0.0
      %1446 = vmatpush1.msra.mxu0 0.0
      %1447 = vmatprep.subr.mxu0 0.0
      %1448 = vmatpush1.msra.mxu0 0.0
      %1449 = vmatprep.subr.mxu0 0.0
      %1450 = vmatpush1.msra.mxu0 0.0
      %1451 = vmatprep.subr.mxu0 0.0
      %1452 = vmatpush1.msra.mxu0 0.0
      %1453 = vmatprep.subr.mxu0 0.0
      %1454 = vmatpush1.msra.mxu0 0.0
      %1455 = vmatprep.subr.mxu0 0.0
      %1456 = vmatpush1.msra.mxu0 0.0
      %1457 = vmatprep.subr.mxu0 0.0
      %1458 = vmatpush1.msra.mxu0 0.0
      %1459 = vmatprep.subr.mxu0 0.0
      %1460 = vmatpush1.msra.mxu0 0.0
      %1461 = vmatprep.subr.mxu0 0.0
      %1462 = vmatpush1.msra.mxu0 0.0
      %1463 = vmatprep.subr.mxu0 0.0
      %1464 = vmatpush1.msra.mxu0 0.0
      %1465 = vmatprep.mubr.f32.mxu0 0.0
      %1466 = vmatmul.mubr.f32.gmra.mrb[0].mxu0 %v1393
      %v1467 = vpop.f32.mrb[0].mxu0
      %v1468 = vadd.f32 0.0, %v1467
      %v1469 = vpop.f32.mrb[0].mxu0
      %v1470 = vadd.f32 0.0, %v1469
      %1471 = vdwg.mxu0
      %1472 = vmatprep.subr.mxu0 0.0
      %1473 = vmatpush1.msra.mxu0 %v1399
      %1474 = vmatprep.subr.mxu0 0.0
      %1475 = vmatpush1.msra.mxu0 0.0
      %1476 = vmatprep.subr.mxu0 0.0
      %1477 = vmatpush1.msra.mxu0 0.0
      %1478 = vmatprep.subr.mxu0 0.0
      %1479 = vmatpush1.msra.mxu0 0.0
      %1480 = vmatprep.subr.mxu0 0.0
      %1481 = vmatpush1.msra.mxu0 0.0
      %1482 = vmatprep.subr.mxu0 0.0
      %1483 = vmatpush1.msra.mxu0 0.0
      %1484 = vmatprep.subr.mxu0 0.0
      %1485 = vmatpush1.msra.mxu0 0.0
      %1486 = vmatprep.subr.mxu0 0.0
      %1487 = vmatpush1.msra.mxu0 0.0
      %1488 = vmatprep.subr.mxu0 0.0
      %1489 = vmatpush1.msra.mxu0 0.0
      %1490 = vmatprep.subr.mxu0 0.0
      %1491 = vmatpush1.msra.mxu0 0.0
      %1492 = vmatprep.subr.mxu0 0.0
      %1493 = vmatpush1.msra.mxu0 0.0
      %1494 = vmatprep.subr.mxu0 0.0
      %1495 = vmatpush1.msra.mxu0 0.0
      %1496 = vmatprep.subr.mxu0 0.0
      %1497 = vmatpush1.msra.mxu0 0.0
      %1498 = vmatprep.subr.mxu0 0.0
      %1499 = vmatpush1.msra.mxu0 0.0
      %1500 = vmatprep.subr.mxu0 0.0
      %1501 = vmatpush1.msra.mxu0 0.0
      %1502 = vmatprep.subr.mxu0 0.0
      %1503 = vmatpush1.msra.mxu0 0.0
      %1504 = vmatprep.subr.mxu0 0.0
      %1505 = vmatpush1.msra.mxu0 0.0
      %1506 = vmatprep.subr.mxu0 0.0
      %1507 = vmatpush1.msra.mxu0 0.0
      %1508 = vmatprep.subr.mxu0 0.0
      %1509 = vmatpush1.msra.mxu0 0.0
      %1510 = vmatprep.subr.mxu0 0.0
      %1511 = vmatpush1.msra.mxu0 0.0
      %1512 = vmatprep.subr.mxu0 0.0
      %1513 = vmatpush1.msra.mxu0 0.0
      %1514 = vmatprep.subr.mxu0 0.0
      %1515 = vmatpush1.msra.mxu0 0.0
      %1516 = vmatprep.subr.mxu0 0.0
      %1517 = vmatpush1.msra.mxu0 0.0
      %1518 = vmatprep.subr.mxu0 0.0
      %1519 = vmatpush1.msra.mxu0 0.0
      %1520 = vmatprep.subr.mxu0 0.0
      %1521 = vmatpush1.msra.mxu0 0.0
      %1522 = vmatprep.subr.mxu0 0.0
      %1523 = vmatpush1.msra.mxu0 0.0
      %1524 = vmatprep.subr.mxu0 0.0
      %1525 = vmatpush1.msra.mxu0 0.0
      %1526 = vmatprep.subr.mxu0 0.0
      %1527 = vmatpush1.msra.mxu0 0.0
      %1528 = vmatprep.subr.mxu0 0.0
      %1529 = vmatpush1.msra.mxu0 0.0
      %1530 = vmatprep.subr.mxu0 0.0
      %1531 = vmatpush1.msra.mxu0 0.0
      %1532 = vmatprep.subr.mxu0 0.0
      %1533 = vmatpush1.msra.mxu0 0.0
      %1534 = vmatprep.subr.mxu0 0.0
      %1535 = vmatpush1.msra.mxu0 0.0
      %1536 = vmatprep.mubr.f32.mxu0 0.0
      %1537 = vmatmul.mubr.f32.gmra.mrb[0].mxu0 %v1393
      %v1538 = vpop.f32.mrb[0].mxu0
      %v1539 = vadd.f32 0.0, %v1538
      %v1540 = vpop.f32.mrb[0].mxu0
      %1541 = vdwg.mxu0
      %v1542 = vadd.f32 %v1373, %v1468
      %v1543 = vadd.f32 %v1374, %v1470
      %v1544 = vadd.f32 %v1375, %v1539
      %s1545 = scalar_lea.vmem %s3, 28
      %v1546 = vld [vmem:[%s1545] sm:$0xf]
      %v1547 = vld [vmem:[%s370] sm:$0xff]
      %v1548 = vld [vmem:[%s370 + $0x8] sm:$0xf]
      %v1551 = vcombine.high %v1547, %v1547
      %1552 = vrot.lane.b32.xlu0 %v1547, 91
      %v1553 = vpop.permute.xlu0 %1552
      %1554 = vrot.lane.b32.xlu0 %v1551, 91
      %v1555 = vpop.permute.xlu0 %1554
      %1556 = vrot.lane.b32.xlu0 %v1548, 91
      %v1557 = vpop.permute.xlu0 %1556
      %vm1558 = vcmask 744448
      %v1559 = vsel %vm1558, %v1553, %v1555
      %v1560 = vsel %vm1558, %v1555, %v1557
      %v1562 = vsel %vm398, %v1546, 0
      %v1564 = vsel %vm402, %v1559, 0
      %v1566 = vsel %vm402, %v1560, 0
      %v1568 = vsel %vm402, %v1557, 0
      %1570 = vmatprep.subr.mxu0 %v1566
      %1571 = vmatpush1.msra.mxu0 %v1564
      %1572 = vmatprep.subr.mxu0 0.0
      %1573 = vmatpush1.msra.mxu0 0.0
      %1574 = vmatprep.subr.mxu0 0.0
      %1575 = vmatpush1.msra.mxu0 0.0
      %1576 = vmatprep.subr.mxu0 0.0
      %1577 = vmatpush1.msra.mxu0 0.0
      %1578 = vmatprep.subr.mxu0 0.0
      %1579 = vmatpush1.msra.mxu0 0.0
      %1580 = vmatprep.subr.mxu0 0.0
      %1581 = vmatpush1.msra.mxu0 0.0
      %1582 = vmatprep.subr.mxu0 0.0
      %1583 = vmatpush1.msra.mxu0 0.0
      %1584 = vmatprep.subr.mxu0 0.0
      %1585 = vmatpush1.msra.mxu0 0.0
      %1586 = vmatprep.subr.mxu0 0.0
      %1587 = vmatpush1.msra.mxu0 0.0
      %1588 = vmatprep.subr.mxu0 0.0
      %1589 = vmatpush1.msra.mxu0 0.0
      %1590 = vmatprep.subr.mxu0 0.0
      %1591 = vmatpush1.msra.mxu0 0.0
      %1592 = vmatprep.subr.mxu0 0.0
      %1593 = vmatpush1.msra.mxu0 0.0
      %1594 = vmatprep.subr.mxu0 0.0
      %1595 = vmatpush1.msra.mxu0 0.0
      %1596 = vmatprep.subr.mxu0 0.0
      %1597 = vmatpush1.msra.mxu0 0.0
      %1598 = vmatprep.subr.mxu0 0.0
      %1599 = vmatpush1.msra.mxu0 0.0
      %1600 = vmatprep.subr.mxu0 0.0
      %1601 = vmatpush1.msra.mxu0 0.0
      %1602 = vmatprep.subr.mxu0 0.0
      %1603 = vmatpush1.msra.mxu0 0.0
      %1604 = vmatprep.subr.mxu0 0.0
      %1605 = vmatpush1.msra.mxu0 0.0
      %1606 = vmatprep.subr.mxu0 0.0
      %1607 = vmatpush1.msra.mxu0 0.0
      %1608 = vmatprep.subr.mxu0 0.0
      %1609 = vmatpush1.msra.mxu0 0.0
      %1610 = vmatprep.subr.mxu0 0.0
      %1611 = vmatpush1.msra.mxu0 0.0
      %1612 = vmatprep.subr.mxu0 0.0
      %1613 = vmatpush1.msra.mxu0 0.0
      %1614 = vmatprep.subr.mxu0 0.0
      %1615 = vmatpush1.msra.mxu0 0.0
      %1616 = vmatprep.subr.mxu0 0.0
      %1617 = vmatpush1.msra.mxu0 0.0
      %1618 = vmatprep.subr.mxu0 0.0
      %1619 = vmatpush1.msra.mxu0 0.0
      %1620 = vmatprep.subr.mxu0 0.0
      %1621 = vmatpush1.msra.mxu0 0.0
      %1622 = vmatprep.subr.mxu0 0.0
      %1623 = vmatpush1.msra.mxu0 0.0
      %1624 = vmatprep.subr.mxu0 0.0
      %1625 = vmatpush1.msra.mxu0 0.0
      %1626 = vmatprep.subr.mxu0 0.0
      %1627 = vmatpush1.msra.mxu0 0.0
      %1628 = vmatprep.subr.mxu0 0.0
      %1629 = vmatpush1.msra.mxu0 0.0
      %1630 = vmatprep.subr.mxu0 0.0
      %1631 = vmatpush1.msra.mxu0 0.0
      %1632 = vmatprep.subr.mxu0 0.0
      %1633 = vmatpush1.msra.mxu0 0.0
      %1634 = vmatprep.mubr.f32.mxu0 0.0
      %1635 = vmatmul.mubr.f32.gmra.mrb[0].mxu0 %v1562
      %v1636 = vpop.f32.mrb[0].mxu0
      %v1637 = vadd.f32 0.0, %v1636
      %v1638 = vpop.f32.mrb[0].mxu0
      %v1639 = vadd.f32 0.0, %v1638
      %1640 = vdwg.mxu0
      %1641 = vmatprep.subr.mxu0 0.0
      %1642 = vmatpush1.msra.mxu0 %v1568
      %1643 = vmatprep.subr.mxu0 0.0
      %1644 = vmatpush1.msra.mxu0 0.0
      %1645 = vmatprep.subr.mxu0 0.0
      %1646 = vmatpush1.msra.mxu0 0.0
      %1647 = vmatprep.subr.mxu0 0.0
      %1648 = vmatpush1.msra.mxu0 0.0
      %1649 = vmatprep.subr.mxu0 0.0
      %1650 = vmatpush1.msra.mxu0 0.0
      %1651 = vmatprep.subr.mxu0 0.0
      %1652 = vmatpush1.msra.mxu0 0.0
      %1653 = vmatprep.subr.mxu0 0.0
      %1654 = vmatpush1.msra.mxu0 0.0
      %1655 = vmatprep.subr.mxu0 0.0
      %1656 = vmatpush1.msra.mxu0 0.0
      %1657 = vmatprep.subr.mxu0 0.0
      %1658 = vmatpush1.msra.mxu0 0.0
      %1659 = vmatprep.subr.mxu0 0.0
      %1660 = vmatpush1.msra.mxu0 0.0
      %1661 = vmatprep.subr.mxu0 0.0
      %1662 = vmatpush1.msra.mxu0 0.0
      %1663 = vmatprep.subr.mxu0 0.0
      %1664 = vmatpush1.msra.mxu0 0.0
      %1665 = vmatprep.subr.mxu0 0.0
      %1666 = vmatpush1.msra.mxu0 0.0
      %1667 = vmatprep.subr.mxu0 0.0
      %1668 = vmatpush1.msra.mxu0 0.0
      %1669 = vmatprep.subr.mxu0 0.0
      %1670 = vmatpush1.msra.mxu0 0.0
      %1671 = vmatprep.subr.mxu0 0.0
      %1672 = vmatpush1.msra.mxu0 0.0
      %1673 = vmatprep.subr.mxu0 0.0
      %1674 = vmatpush1.msra.mxu0 0.0
      %1675 = vmatprep.subr.mxu0 0.0
      %1676 = vmatpush1.msra.mxu0 0.0
      %1677 = vmatprep.subr.mxu0 0.0
      %1678 = vmatpush1.msra.mxu0 0.0
      %1679 = vmatprep.subr.mxu0 0.0
      %1680 = vmatpush1.msra.mxu0 0.0
      %1681 = vmatprep.subr.mxu0 0.0
      %1682 = vmatpush1.msra.mxu0 0.0
      %1683 = vmatprep.subr.mxu0 0.0
      %1684 = vmatpush1.msra.mxu0 0.0
      %1685 = vmatprep.subr.mxu0 0.0
      %1686 = vmatpush1.msra.mxu0 0.0
      %1687 = vmatprep.subr.mxu0 0.0
      %1688 = vmatpush1.msra.mxu0 0.0
      %1689 = vmatprep.subr.mxu0 0.0
      %1690 = vmatpush1.msra.mxu0 0.0
      %1691 = vmatprep.subr.mxu0 0.0
      %1692 = vmatpush1.msra.mxu0 0.0
      %1693 = vmatprep.subr.mxu0 0.0
      %1694 = vmatpush1.msra.mxu0 0.0
      %1695 = vmatprep.subr.mxu0 0.0
      %1696 = vmatpush1.msra.mxu0 0.0
      %1697 = vmatprep.subr.mxu0 0.0
      %1698 = vmatpush1.msra.mxu0 0.0
      %1699 = vmatprep.subr.mxu0 0.0
      %1700 = vmatpush1.msra.mxu0 0.0
      %1701 = vmatprep.subr.mxu0 0.0
      %1702 = vmatpush1.msra.mxu0 0.0
      %1703 = vmatprep.subr.mxu0 0.0
      %1704 = vmatpush1.msra.mxu0 0.0
      %1705 = vmatprep.mubr.f32.mxu0 0.0
      %1706 = vmatmul.mubr.f32.gmra.mrb[0].mxu0 %v1562
      %v1707 = vpop.f32.mrb[0].mxu0
      %v1708 = vadd.f32 0.0, %v1707
      %v1709 = vpop.f32.mrb[0].mxu0
      %1710 = vdwg.mxu0
      %v1711 = vadd.f32 %v1542, %v1637
      %v1712 = vadd.f32 %v1543, %v1639
      %v1713 = vadd.f32 %v1544, %v1708
      %s1714 = scalar_lea.vmem %s3, 32
      %v1715 = vld [vmem:[%s1714] sm:$0xf]
      %v1716 = vld [vmem:[%s370] sm:$0xff]
      %v1717 = vld [vmem:[%s370 + $0x8] sm:$0xf]
      %v1720 = vcombine.high %v1716, %v1716
      %1721 = vrot.lane.b32.xlu0 %v1716, 90
      %v1722 = vpop.permute.xlu0 %1721
      %1723 = vrot.lane.b32.xlu0 %v1720, 90
      %v1724 = vpop.permute.xlu0 %1723
      %1725 = vrot.lane.b32.xlu0 %v1717, 90
      %v1726 = vpop.permute.xlu0 %1725
      %vm1727 = vcmask 736256
      %v1728 = vsel %vm1727, %v1722, %v1724
      %v1729 = vsel %vm1727, %v1724, %v1726
      %v1731 = vsel %vm398, %v1715, 0
      %v1733 = vsel %vm402, %v1728, 0
      %v1735 = vsel %vm402, %v1729, 0
      %v1737 = vsel %vm402, %v1726, 0
      %1739 = vmatprep.subr.mxu0 %v1735
      %1740 = vmatpush1.msra.mxu0 %v1733
      %1741 = vmatprep.subr.mxu0 0.0
      %1742 = vmatpush1.msra.mxu0 0.0
      %1743 = vmatprep.subr.mxu0 0.0
      %1744 = vmatpush1.msra.mxu0 0.0
      %1745 = vmatprep.subr.mxu0 0.0
      %1746 = vmatpush1.msra.mxu0 0.0
      %1747 = vmatprep.subr.mxu0 0.0
      %1748 = vmatpush1.msra.mxu0 0.0
      %1749 = vmatprep.subr.mxu0 0.0
      %1750 = vmatpush1.msra.mxu0 0.0
      %1751 = vmatprep.subr.mxu0 0.0
      %1752 = vmatpush1.msra.mxu0 0.0
      %1753 = vmatprep.subr.mxu0 0.0
      %1754 = vmatpush1.msra.mxu0 0.0
      %1755 = vmatprep.subr.mxu0 0.0
      %1756 = vmatpush1.msra.mxu0 0.0
      %1757 = vmatprep.subr.mxu0 0.0
      %1758 = vmatpush1.msra.mxu0 0.0
      %1759 = vmatprep.subr.mxu0 0.0
      %1760 = vmatpush1.msra.mxu0 0.0
      %1761 = vmatprep.subr.mxu0 0.0
      %1762 = vmatpush1.msra.mxu0 0.0
      %1763 = vmatprep.subr.mxu0 0.0
      %1764 = vmatpush1.msra.mxu0 0.0
      %1765 = vmatprep.subr.mxu0 0.0
      %1766 = vmatpush1.msra.mxu0 0.0
      %1767 = vmatprep.subr.mxu0 0.0
      %1768 = vmatpush1.msra.mxu0 0.0
      %1769 = vmatprep.subr.mxu0 0.0
      %1770 = vmatpush1.msra.mxu0 0.0
      %1771 = vmatprep.subr.mxu0 0.0
      %1772 = vmatpush1.msra.mxu0 0.0
      %1773 = vmatprep.subr.mxu0 0.0
      %1774 = vmatpush1.msra.mxu0 0.0
      %1775 = vmatprep.subr.mxu0 0.0
      %1776 = vmatpush1.msra.mxu0 0.0
      %1777 = vmatprep.subr.mxu0 0.0
      %1778 = vmatpush1.msra.mxu0 0.0
      %1779 = vmatprep.subr.mxu0 0.0
      %1780 = vmatpush1.msra.mxu0 0.0
      %1781 = vmatprep.subr.mxu0 0.0
      %1782 = vmatpush1.msra.mxu0 0.0
      %1783 = vmatprep.subr.mxu0 0.0
      %1784 = vmatpush1.msra.mxu0 0.0
      %1785 = vmatprep.subr.mxu0 0.0
      %1786 = vmatpush1.msra.mxu0 0.0
      %1787 = vmatprep.subr.mxu0 0.0
      %1788 = vmatpush1.msra.mxu0 0.0
      %1789 = vmatprep.subr.mxu0 0.0
      %1790 = vmatpush1.msra.mxu0 0.0
      %1791 = vmatprep.subr.mxu0 0.0
      %1792 = vmatpush1.msra.mxu0 0.0
      %1793 = vmatprep.subr.mxu0 0.0
      %1794 = vmatpush1.msra.mxu0 0.0
      %1795 = vmatprep.subr.mxu0 0.0
      %1796 = vmatpush1.msra.mxu0 0.0
      %1797 = vmatprep.subr.mxu0 0.0
      %1798 = vmatpush1.msra.mxu0 0.0
      %1799 = vmatprep.subr.mxu0 0.0
      %1800 = vmatpush1.msra.mxu0 0.0
      %1801 = vmatprep.subr.mxu0 0.0
      %1802 = vmatpush1.msra.mxu0 0.0
      %1803 = vmatprep.mubr.f32.mxu0 0.0
      %1804 = vmatmul.mubr.f32.gmra.mrb[0].mxu0 %v1731
      %v1805 = vpop.f32.mrb[0].mxu0
      %v1806 = vadd.f32 0.0, %v1805
      %v1807 = vpop.f32.mrb[0].mxu0
      %v1808 = vadd.f32 0.0, %v1807
      %1809 = vdwg.mxu0
      %1810 = vmatprep.subr.mxu0 0.0
      %1811 = vmatpush1.msra.mxu0 %v1737
      %1812 = vmatprep.subr.mxu0 0.0
      %1813 = vmatpush1.msra.mxu0 0.0
      %1814 = vmatprep.subr.mxu0 0.0
      %1815 = vmatpush1.msra.mxu0 0.0
      %1816 = vmatprep.subr.mxu0 0.0
      %1817 = vmatpush1.msra.mxu0 0.0
      %1818 = vmatprep.subr.mxu0 0.0
      %1819 = vmatpush1.msra.mxu0 0.0
      %1820 = vmatprep.subr.mxu0 0.0
      %1821 = vmatpush1.msra.mxu0 0.0
      %1822 = vmatprep.subr.mxu0 0.0
      %1823 = vmatpush1.msra.mxu0 0.0
      %1824 = vmatprep.subr.mxu0 0.0
      %1825 = vmatpush1.msra.mxu0 0.0
      %1826 = vmatprep.subr.mxu0 0.0
      %1827 = vmatpush1.msra.mxu0 0.0
      %1828 = vmatprep.subr.mxu0 0.0
      %1829 = vmatpush1.msra.mxu0 0.0
      %1830 = vmatprep.subr.mxu0 0.0
      %1831 = vmatpush1.msra.mxu0 0.0
      %1832 = vmatprep.subr.mxu0 0.0
      %1833 = vmatpush1.msra.mxu0 0.0
      %1834 = vmatprep.subr.mxu0 0.0
      %1835 = vmatpush1.msra.mxu0 0.0
      %1836 = vmatprep.subr.mxu0 0.0
      %1837 = vmatpush1.msra.mxu0 0.0
      %1838 = vmatprep.subr.mxu0 0.0
      %1839 = vmatpush1.msra.mxu0 0.0
      %1840 = vmatprep.subr.mxu0 0.0
      %1841 = vmatpush1.msra.mxu0 0.0
      %1842 = vmatprep.subr.mxu0 0.0
      %1843 = vmatpush1.msra.mxu0 0.0
      %1844 = vmatprep.subr.mxu0 0.0
      %1845 = vmatpush1.msra.mxu0 0.0
      %1846 = vmatprep.subr.mxu0 0.0
      %1847 = vmatpush1.msra.mxu0 0.0
      %1848 = vmatprep.subr.mxu0 0.0
      %1849 = vmatpush1.msra.mxu0 0.0
      %1850 = vmatprep.subr.mxu0 0.0
      %1851 = vmatpush1.msra.mxu0 0.0
      %1852 = vmatprep.subr.mxu0 0.0
      %1853 = vmatpush1.msra.mxu0 0.0
      %1854 = vmatprep.subr.mxu0 0.0
      %1855 = vmatpush1.msra.mxu0 0.0
      %1856 = vmatprep.subr.mxu0 0.0
      %1857 = vmatpush1.msra.mxu0 0.0
      %1858 = vmatprep.subr.mxu0 0.0
      %1859 = vmatpush1.msra.mxu0 0.0
      %1860 = vmatprep.subr.mxu0 0.0
      %1861 = vmatpush1.msra.mxu0 0.0
      %1862 = vmatprep.subr.mxu0 0.0
      %1863 = vmatpush1.msra.mxu0 0.0
      %1864 = vmatprep.subr.mxu0 0.0
      %1865 = vmatpush1.msra.mxu0 0.0
      %1866 = vmatprep.subr.mxu0 0.0
      %1867 = vmatpush1.msra.mxu0 0.0
      %1868 = vmatprep.subr.mxu0 0.0
      %1869 = vmatpush1.msra.mxu0 0.0
      %1870 = vmatprep.subr.mxu0 0.0
      %1871 = vmatpush1.msra.mxu0 0.0
      %1872 = vmatprep.subr.mxu0 0.0
      %1873 = vmatpush1.msra.mxu0 0.0
      %1874 = vmatprep.mubr.f32.mxu0 0.0
      %1875 = vmatmul.mubr.f32.gmra.mrb[0].mxu0 %v1731
      %v1876 = vpop.f32.mrb[0].mxu0
      %v1877 = vadd.f32 0.0, %v1876
      %v1878 = vpop.f32.mrb[0].mxu0
      %1879 = vdwg.mxu0
      %v1880 = vadd.f32 %v1711, %v1806
      %v1881 = vadd.f32 %v1712, %v1808
      %v1882 = vadd.f32 %v1713, %v1877
      %v1883 = vld [vmem:[%s4] sm:$0xf]
      %1885 = vset.pattern.permute.xlu0 0
      %1886 = vperm.xlu0 %1885, %v1883
      %v1887 = vpop.permute.xlu0 %1886
      %v1889 = vadd.f32 %v1880, %v1887
      %v1890 = vadd.f32 %v1881, %v1887
      %v1891 = vadd.f32 %v1882, %v1887
      %v1892 = vlaneseq
      %v1893 = vand.u32 %v1892, 127
      %v1894 = vadd.s32 %v1893, 128
      %v1895 = vadd.s32 %v1893, 256
      %vm1896 = vcmp.lt.s32.totalorder %v1893, 0
      %v1897 = vsub.s32 0, %v1893
      %v1898 = vsel %vm1896, %v1897, %v1893
      %v1899 = vmul.u32.u64.compose %v1898, 3817748708
      %v1900 = vextract.low.u32 %v1899
      %v1901 = vextract.high.u32 %v1899
      %v1902 = vshrl.u32 %v1901, 4
      %v1903 = vmul.u32 %v1902, 18
      %v1904 = vsub.s32 %v1898, %v1903
      %v1905 = vsub.s32 0, %v1904
      %v1906 = vsel %vm1896, %v1905, %v1904
      %vm1907 = vcmp.lt.s32.totalorder %v1894, 0
      %v1908 = vsub.s32 0, %v1894
      %v1909 = vsel %vm1907, %v1908, %v1894
      %v1910 = vmul.u32.u64.compose %v1909, 3817748708
      %v1911 = vextract.low.u32 %v1910
      %v1912 = vextract.high.u32 %v1910
      %v1913 = vshrl.u32 %v1912, 4
      %v1914 = vmul.u32 %v1913, 18
      %v1915 = vsub.s32 %v1909, %v1914
      %v1916 = vsub.s32 0, %v1915
      %v1917 = vsel %vm1907, %v1916, %v1915
      %vm1918 = vcmp.lt.s32.totalorder %v1895, 0
      %v1919 = vsub.s32 0, %v1895
      %v1920 = vsel %vm1918, %v1919, %v1895
      %v1921 = vmul.u32.u64.compose %v1920, 3817748708
      %v1922 = vextract.low.u32 %v1921
      %v1923 = vextract.high.u32 %v1921
      %v1924 = vshrl.u32 %v1923, 4
      %v1925 = vmul.u32 %v1924, 18
      %v1926 = vsub.s32 %v1920, %v1925
      %v1927 = vsub.s32 0, %v1926
      %v1928 = vsel %vm1918, %v1927, %v1926
      %vm1929 = vcmp.ne.s32.totalorder %v1906, 0
      %vm1930 = vcmp.ne.s32.totalorder %v1917, 0
      %vm1931 = vcmp.ne.s32.totalorder %v1928, 0
      %vm1932 = vcmp.lt.s32.totalorder %v1906, 0
      %vm1933 = vcmp.lt.s32.totalorder %v1917, 0
      %vm1934 = vcmp.lt.s32.totalorder %v1928, 0
      %vm1935 = vmand %vm1932, %vm1929
      %vm1936 = vmand %vm1933, %vm1930
      %vm1937 = vmand %vm1934, %vm1931
      %v1938 = vadd.s32 %v1906, 18
      %v1939 = vadd.s32 %v1917, 18
      %v1940 = vadd.s32 %v1928, 18
      %v1941 = vsel %vm1935, %v1938, %v1906
      %v1942 = vsel %vm1936, %v1939, %v1917
      %v1943 = vsel %vm1937, %v1940, %v1928
      %vm1944 = vcmp.lt.s32.totalorder %v1941, 16
      %vm1945 = vcmp.lt.s32.totalorder %v1942, 16
      %vm1946 = vcmp.lt.s32.totalorder %v1943, 16
      %v1947 = vsel %vm1944, 1, 0
      %v1948 = vsel %vm1945, 1, 0
      %v1949 = vsel %vm1946, 1, 0
      %vm1950 = vcmp.eq.s32.totalorder %v1947, 1
      %vm1951 = vcmp.eq.s32.totalorder %v1948, 1
      %vm1952 = vcmp.eq.s32.totalorder %v1949, 1
      %v1953 = vsel %vm1950, %v1889, 0.0
      %v1954 = vsel %vm1951, %v1890, 0.0
      %v1955 = vsel %vm1952, %v1891, 0.0
      %vm1956 = vcmask 150528
      %1957 = vst.msk [vmem:[#allocation2] sm:$0xf] %vm1956, 0.0
      %v1961 = vcombine.low %v1953, %v1954
      %1962 = vrot.lane.b32.xlu0 %v1961, 19
      %v1963 = vpop.permute.xlu0 %1962
      %1964 = vrot.lane.b32.xlu0 %v1955, 19
      %v1965 = vpop.permute.xlu0 %1964
      %v1966 = vrot.slane %v1963, 4
      %vm1967 = vcmask 154624
      %v1968 = vsel %vm1967, %v1966, %v1963
      %v1969 = vsel %vm1967, %v1966, %v1965
      %vm1972 = vcmask 1043608
      %vm1973 = vcmask 1047556
      %vm1974 = vmor %vm1973, %vm1972
      %1975 = vst.msk [vmem:[#allocation2] sm:$0xff] %vm1974, %v1968
      %vm1976 = vcmask 412672
      %1977 = vst.msk [vmem:[#allocation2 + $0x8] sm:$0xf] %vm1976, %v1969
      %vm1978 = vcmask 699800
      %1979 = vst.msk [vmem:[#allocation2 + $0x8] sm:$0xf] %vm1978, 0.0
      %v1980 = vld [vmem:[%s5] sm:$0xff]
      %v1981 = vld [vmem:[#allocation2] sm:$0xff]
      %v1982 = vld [vmem:[#allocation2 + $0x8] sm:$0xf]
      %v1983 = vld [vmem:[%s6] sm:$0xff]
      %v1984 = vld [vmem:[%s375] sm:$0xff]
      %v1985 = vld [vmem:[%s375 + $0x8] sm:$0xf]
      %v1988 = vcombine.high %v1984, %v1984
      %v1990 = vsel %vm398, %v1983, 0
      %v1992 = vsel %vm402, %v1984, 0
      %v1994 = vsel %vm402, %v1988, 0
      %v1996 = vsel %vm402, %v1985, 0
      %1998 = vmatprep.subr.mxu0 %v1994
      %1999 = vmatpush1.msra.mxu0 %v1992
      %2000 = vmatprep.subr.mxu0 0.0
      %2001 = vmatpush1.msra.mxu0 0.0
      %2002 = vmatprep.subr.mxu0 0.0
      %2003 = vmatpush1.msra.mxu0 0.0
      %2004 = vmatprep.subr.mxu0 0.0
      %2005 = vmatpush1.msra.mxu0 0.0
      %2006 = vmatprep.subr.mxu0 0.0
      %2007 = vmatpush1.msra.mxu0 0.0
      %2008 = vmatprep.subr.mxu0 0.0
      %2009 = vmatpush1.msra.mxu0 0.0
      %2010 = vmatprep.subr.mxu0 0.0
      %2011 = vmatpush1.msra.mxu0 0.0
      %2012 = vmatprep.subr.mxu0 0.0
      %2013 = vmatpush1.msra.mxu0 0.0
      %2014 = vmatprep.subr.mxu0 0.0
      %2015 = vmatpush1.msra.mxu0 0.0
      %2016 = vmatprep.subr.mxu0 0.0
      %2017 = vmatpush1.msra.mxu0 0.0
      %2018 = vmatprep.subr.mxu0 0.0
      %2019 = vmatpush1.msra.mxu0 0.0
      %2020 = vmatprep.subr.mxu0 0.0
      %2021 = vmatpush1.msra.mxu0 0.0
      %2022 = vmatprep.subr.mxu0 0.0
      %2023 = vmatpush1.msra.mxu0 0.0
      %2024 = vmatprep.subr.mxu0 0.0
      %2025 = vmatpush1.msra.mxu0 0.0
      %2026 = vmatprep.subr.mxu0 0.0
      %2027 = vmatpush1.msra.mxu0 0.0
      %2028 = vmatprep.subr.mxu0 0.0
      %2029 = vmatpush1.msra.mxu0 0.0
      %2030 = vmatprep.subr.mxu0 0.0
      %2031 = vmatpush1.msra.mxu0 0.0
      %2032 = vmatprep.subr.mxu0 0.0
      %2033 = vmatpush1.msra.mxu0 0.0
      %2034 = vmatprep.subr.mxu0 0.0
      %2035 = vmatpush1.msra.mxu0 0.0
      %2036 = vmatprep.subr.mxu0 0.0
      %2037 = vmatpush1.msra.mxu0 0.0
      %2038 = vmatprep.subr.mxu0 0.0
      %2039 = vmatpush1.msra.mxu0 0.0
      %2040 = vmatprep.subr.mxu0 0.0
      %2041 = vmatpush1.msra.mxu0 0.0
      %2042 = vmatprep.subr.mxu0 0.0
      %2043 = vmatpush1.msra.mxu0 0.0
      %2044 = vmatprep.subr.mxu0 0.0
      %2045 = vmatpush1.msra.mxu0 0.0
      %2046 = vmatprep.subr.mxu0 0.0
      %2047 = vmatpush1.msra.mxu0 0.0
      %2048 = vmatprep.subr.mxu0 0.0
      %2049 = vmatpush1.msra.mxu0 0.0
      %2050 = vmatprep.subr.mxu0 0.0
      %2051 = vmatpush1.msra.mxu0 0.0
      %2052 = vmatprep.subr.mxu0 0.0
      %2053 = vmatpush1.msra.mxu0 0.0
      %2054 = vmatprep.subr.mxu0 0.0
      %2055 = vmatpush1.msra.mxu0 0.0
      %2056 = vmatprep.subr.mxu0 0.0
      %2057 = vmatpush1.msra.mxu0 0.0
      %2058 = vmatprep.subr.mxu0 0.0
      %2059 = vmatpush1.msra.mxu0 0.0
      %2060 = vmatprep.subr.mxu0 0.0
      %2061 = vmatpush1.msra.mxu0 0.0
      %2062 = vmatprep.mubr.f32.mxu0 0.0
      %2063 = vmatmul.mubr.f32.gmra.mrb[0].mxu0 %v1990
      %v2064 = vpop.f32.mrb[0].mxu0
      %v2065 = vadd.f32 0.0, %v2064
      %v2066 = vpop.f32.mrb[0].mxu0
      %v2067 = vadd.f32 0.0, %v2066
      %2068 = vdwg.mxu0
      %2069 = vmatprep.subr.mxu0 0.0
      %2070 = vmatpush1.msra.mxu0 %v1996
      %2071 = vmatprep.subr.mxu0 0.0
      %2072 = vmatpush1.msra.mxu0 0.0
      %2073 = vmatprep.subr.mxu0 0.0
      %2074 = vmatpush1.msra.mxu0 0.0
      %2075 = vmatprep.subr.mxu0 0.0
      %2076 = vmatpush1.msra.mxu0 0.0
      %2077 = vmatprep.subr.mxu0 0.0
      %2078 = vmatpush1.msra.mxu0 0.0
      %2079 = vmatprep.subr.mxu0 0.0
      %2080 = vmatpush1.msra.mxu0 0.0
      %2081 = vmatprep.subr.mxu0 0.0
      %2082 = vmatpush1.msra.mxu0 0.0
      %2083 = vmatprep.subr.mxu0 0.0
      %2084 = vmatpush1.msra.mxu0 0.0
      %2085 = vmatprep.subr.mxu0 0.0
      %2086 = vmatpush1.msra.mxu0 0.0
      %2087 = vmatprep.subr.mxu0 0.0
      %2088 = vmatpush1.msra.mxu0 0.0
      %2089 = vmatprep.subr.mxu0 0.0
      %2090 = vmatpush1.msra.mxu0 0.0
      %2091 = vmatprep.subr.mxu0 0.0
      %2092 = vmatpush1.msra.mxu0 0.0
      %2093 = vmatprep.subr.mxu0 0.0
      %2094 = vmatpush1.msra.mxu0 0.0
      %2095 = vmatprep.subr.mxu0 0.0
      %2096 = vmatpush1.msra.mxu0 0.0
      %2097 = vmatprep.subr.mxu0 0.0
      %2098 = vmatpush1.msra.mxu0 0.0
      %2099 = vmatprep.subr.mxu0 0.0
      %2100 = vmatpush1.msra.mxu0 0.0
      %2101 = vmatprep.subr.mxu0 0.0
      %2102 = vmatpush1.msra.mxu0 0.0
      %2103 = vmatprep.subr.mxu0 0.0
      %2104 = vmatpush1.msra.mxu0 0.0
      %2105 = vmatprep.subr.mxu0 0.0
      %2106 = vmatpush1.msra.mxu0 0.0
      %2107 = vmatprep.subr.mxu0 0.0
      %2108 = vmatpush1.msra.mxu0 0.0
      %2109 = vmatprep.subr.mxu0 0.0
      %2110 = vmatpush1.msra.mxu0 0.0
      %2111 = vmatprep.subr.mxu0 0.0
      %2112 = vmatpush1.msra.mxu0 0.0
      %2113 = vmatprep.subr.mxu0 0.0
      %2114 = vmatpush1.msra.mxu0 0.0
      %2115 = vmatprep.subr.mxu0 0.0
      %2116 = vmatpush1.msra.mxu0 0.0
      %2117 = vmatprep.subr.mxu0 0.0
      %2118 = vmatpush1.msra.mxu0 0.0
      %2119 = vmatprep.subr.mxu0 0.0
      %2120 = vmatpush1.msra.mxu0 0.0
      %2121 = vmatprep.subr.mxu0 0.0
      %2122 = vmatpush1.msra.mxu0 0.0
      %2123 = vmatprep.subr.mxu0 0.0
      %2124 = vmatpush1.msra.mxu0 0.0
      %2125 = vmatprep.subr.mxu0 0.0
      %2126 = vmatpush1.msra.mxu0 0.0
      %2127 = vmatprep.subr.mxu0 0.0
      %2128 = vmatpush1.msra.mxu0 0.0
      %2129 = vmatprep.subr.mxu0 0.0
      %2130 = vmatpush1.msra.mxu0 0.0
      %2131 = vmatprep.subr.mxu0 0.0
      %2132 = vmatpush1.msra.mxu0 0.0
      %2133 = vmatprep.mubr.f32.mxu0 0.0
      %2134 = vmatmul.mubr.f32.gmra.mrb[0].mxu0 %v1990
      %v2135 = vpop.f32.mrb[0].mxu0
      %v2136 = vadd.f32 0.0, %v2135
      %v2137 = vpop.f32.mrb[0].mxu0
      %2138 = vdwg.mxu0
      %v2141 = vcombine.high %v1981, %v1981
      %v2143 = vsel %vm398, %v1980, 0
      %v2145 = vsel %vm402, %v1981, 0
      %v2147 = vsel %vm402, %v2141, 0
      %v2149 = vsel %vm402, %v1982, 0
      %2151 = vmatprep.subr.mxu0 %v2147
      %2152 = vmatpush1.msra.mxu0 %v2145
      %2153 = vmatprep.subr.mxu0 0.0
      %2154 = vmatpush1.msra.mxu0 0.0
      %2155 = vmatprep.subr.mxu0 0.0
      %2156 = vmatpush1.msra.mxu0 0.0
      %2157 = vmatprep.subr.mxu0 0.0
      %2158 = vmatpush1.msra.mxu0 0.0
      %2159 = vmatprep.subr.mxu0 0.0
      %2160 = vmatpush1.msra.mxu0 0.0
      %2161 = vmatprep.subr.mxu0 0.0
      %2162 = vmatpush1.msra.mxu0 0.0
      %2163 = vmatprep.subr.mxu0 0.0
      %2164 = vmatpush1.msra.mxu0 0.0
      %2165 = vmatprep.subr.mxu0 0.0
      %2166 = vmatpush1.msra.mxu0 0.0
      %2167 = vmatprep.subr.mxu0 0.0
      %2168 = vmatpush1.msra.mxu0 0.0
      %2169 = vmatprep.subr.mxu0 0.0
      %2170 = vmatpush1.msra.mxu0 0.0
      %2171 = vmatprep.subr.mxu0 0.0
      %2172 = vmatpush1.msra.mxu0 0.0
      %2173 = vmatprep.subr.mxu0 0.0
      %2174 = vmatpush1.msra.mxu0 0.0
      %2175 = vmatprep.subr.mxu0 0.0
      %2176 = vmatpush1.msra.mxu0 0.0
      %2177 = vmatprep.subr.mxu0 0.0
      %2178 = vmatpush1.msra.mxu0 0.0
      %2179 = vmatprep.subr.mxu0 0.0
      %2180 = vmatpush1.msra.mxu0 0.0
      %2181 = vmatprep.subr.mxu0 0.0
      %2182 = vmatpush1.msra.mxu0 0.0
      %2183 = vmatprep.subr.mxu0 0.0
      %2184 = vmatpush1.msra.mxu0 0.0
      %2185 = vmatprep.subr.mxu0 0.0
      %2186 = vmatpush1.msra.mxu0 0.0
      %2187 = vmatprep.subr.mxu0 0.0
      %2188 = vmatpush1.msra.mxu0 0.0
      %2189 = vmatprep.subr.mxu0 0.0
      %2190 = vmatpush1.msra.mxu0 0.0
      %2191 = vmatprep.subr.mxu0 0.0
      %2192 = vmatpush1.msra.mxu0 0.0
      %2193 = vmatprep.subr.mxu0 0.0
      %2194 = vmatpush1.msra.mxu0 0.0
      %2195 = vmatprep.subr.mxu0 0.0
      %2196 = vmatpush1.msra.mxu0 0.0
      %2197 = vmatprep.subr.mxu0 0.0
      %2198 = vmatpush1.msra.mxu0 0.0
      %2199 = vmatprep.subr.mxu0 0.0
      %2200 = vmatpush1.msra.mxu0 0.0
      %2201 = vmatprep.subr.mxu0 0.0
      %2202 = vmatpush1.msra.mxu0 0.0
      %2203 = vmatprep.subr.mxu0 0.0
      %2204 = vmatpush1.msra.mxu0 0.0
      %2205 = vmatprep.subr.mxu0 0.0
      %2206 = vmatpush1.msra.mxu0 0.0
      %2207 = vmatprep.subr.mxu0 0.0
      %2208 = vmatpush1.msra.mxu0 0.0
      %2209 = vmatprep.subr.mxu0 0.0
      %2210 = vmatpush1.msra.mxu0 0.0
      %2211 = vmatprep.subr.mxu0 0.0
      %2212 = vmatpush1.msra.mxu0 0.0
      %2213 = vmatprep.subr.mxu0 0.0
      %2214 = vmatpush1.msra.mxu0 0.0
      %2215 = vmatprep.mubr.f32.mxu0 0.0
      %2216 = vmatmul.mubr.f32.gmra.mrb[0].mxu0 %v2143
      %v2217 = vpop.f32.mrb[0].mxu0
      %v2218 = vadd.f32 %v2065, %v2217
      %v2219 = vpop.f32.mrb[0].mxu0
      %v2220 = vadd.f32 %v2067, %v2219
      %2221 = vdwg.mxu0
      %2222 = vmatprep.subr.mxu0 0.0
      %2223 = vmatpush1.msra.mxu0 %v2149
      %2224 = vmatprep.subr.mxu0 0.0
      %2225 = vmatpush1.msra.mxu0 0.0
      %2226 = vmatprep.subr.mxu0 0.0
      %2227 = vmatpush1.msra.mxu0 0.0
      %2228 = vmatprep.subr.mxu0 0.0
      %2229 = vmatpush1.msra.mxu0 0.0
      %2230 = vmatprep.subr.mxu0 0.0
      %2231 = vmatpush1.msra.mxu0 0.0
      %2232 = vmatprep.subr.mxu0 0.0
      %2233 = vmatpush1.msra.mxu0 0.0
      %2234 = vmatprep.subr.mxu0 0.0
      %2235 = vmatpush1.msra.mxu0 0.0
      %2236 = vmatprep.subr.mxu0 0.0
      %2237 = vmatpush1.msra.mxu0 0.0
      %2238 = vmatprep.subr.mxu0 0.0
      %2239 = vmatpush1.msra.mxu0 0.0
      %2240 = vmatprep.subr.mxu0 0.0
      %2241 = vmatpush1.msra.mxu0 0.0
      %2242 = vmatprep.subr.mxu0 0.0
      %2243 = vmatpush1.msra.mxu0 0.0
      %2244 = vmatprep.subr.mxu0 0.0
      %2245 = vmatpush1.msra.mxu0 0.0
      %2246 = vmatprep.subr.mxu0 0.0
      %2247 = vmatpush1.msra.mxu0 0.0
      %2248 = vmatprep.subr.mxu0 0.0
      %2249 = vmatpush1.msra.mxu0 0.0
      %2250 = vmatprep.subr.mxu0 0.0
      %2251 = vmatpush1.msra.mxu0 0.0
      %2252 = vmatprep.subr.mxu0 0.0
      %2253 = vmatpush1.msra.mxu0 0.0
      %2254 = vmatprep.subr.mxu0 0.0
      %2255 = vmatpush1.msra.mxu0 0.0
      %2256 = vmatprep.subr.mxu0 0.0
      %2257 = vmatpush1.msra.mxu0 0.0
      %2258 = vmatprep.subr.mxu0 0.0
      %2259 = vmatpush1.msra.mxu0 0.0
      %2260 = vmatprep.subr.mxu0 0.0
      %2261 = vmatpush1.msra.mxu0 0.0
      %2262 = vmatprep.subr.mxu0 0.0
      %2263 = vmatpush1.msra.mxu0 0.0
      %2264 = vmatprep.subr.mxu0 0.0
      %2265 = vmatpush1.msra.mxu0 0.0
      %2266 = vmatprep.subr.mxu0 0.0
      %2267 = vmatpush1.msra.mxu0 0.0
      %2268 = vmatprep.subr.mxu0 0.0
      %2269 = vmatpush1.msra.mxu0 0.0
      %2270 = vmatprep.subr.mxu0 0.0
      %2271 = vmatpush1.msra.mxu0 0.0
      %2272 = vmatprep.subr.mxu0 0.0
      %2273 = vmatpush1.msra.mxu0 0.0
      %2274 = vmatprep.subr.mxu0 0.0
      %2275 = vmatpush1.msra.mxu0 0.0
      %2276 = vmatprep.subr.mxu0 0.0
      %2277 = vmatpush1.msra.mxu0 0.0
      %2278 = vmatprep.subr.mxu0 0.0
      %2279 = vmatpush1.msra.mxu0 0.0
      %2280 = vmatprep.subr.mxu0 0.0
      %2281 = vmatpush1.msra.mxu0 0.0
      %2282 = vmatprep.subr.mxu0 0.0
      %2283 = vmatpush1.msra.mxu0 0.0
      %2284 = vmatprep.subr.mxu0 0.0
      %2285 = vmatpush1.msra.mxu0 0.0
      %2286 = vmatprep.mubr.f32.mxu0 0.0
      %2287 = vmatmul.mubr.f32.gmra.mrb[0].mxu0 %v2143
      %v2288 = vpop.f32.mrb[0].mxu0
      %v2289 = vadd.f32 %v2136, %v2288
      %v2290 = vpop.f32.mrb[0].mxu0
      %2291 = vdwg.mxu0
      %s2292 = scalar_lea.vmem %s5, 8
      %v2293 = vld [vmem:[%s2292] sm:$0xff]
      %v2294 = vld [vmem:[#allocation2] sm:$0xff]
      %v2295 = vld [vmem:[#allocation2 + $0x8] sm:$0xf]
      %v2298 = vcombine.high %v2294, %v2294
      %2299 = vrot.lane.b32.xlu0 %v2294, 127
      %v2300 = vpop.permute.xlu0 %2299
      %2301 = vrot.lane.b32.xlu0 %v2298, 127
      %v2302 = vpop.permute.xlu0 %2301
      %2303 = vrot.lane.b32.xlu0 %v2295, 127
      %v2304 = vpop.permute.xlu0 %2303
      %v2305 = vsel %vm395, %v2300, %v2302
      %v2306 = vsel %vm395, %v2302, %v2304
      %v2308 = vsel %vm398, %v2293, 0
      %v2310 = vsel %vm402, %v2305, 0
      %v2312 = vsel %vm402, %v2306, 0
      %v2314 = vsel %vm402, %v2304, 0
      %2316 = vmatprep.subr.mxu0 %v2312
      %2317 = vmatpush1.msra.mxu0 %v2310
      %2318 = vmatprep.subr.mxu0 0.0
      %2319 = vmatpush1.msra.mxu0 0.0
      %2320 = vmatprep.subr.mxu0 0.0
      %2321 = vmatpush1.msra.mxu0 0.0
      %2322 = vmatprep.subr.mxu0 0.0
      %2323 = vmatpush1.msra.mxu0 0.0
      %2324 = vmatprep.subr.mxu0 0.0
      %2325 = vmatpush1.msra.mxu0 0.0
      %2326 = vmatprep.subr.mxu0 0.0
      %2327 = vmatpush1.msra.mxu0 0.0
      %2328 = vmatprep.subr.mxu0 0.0
      %2329 = vmatpush1.msra.mxu0 0.0
      %2330 = vmatprep.subr.mxu0 0.0
      %2331 = vmatpush1.msra.mxu0 0.0
      %2332 = vmatprep.subr.mxu0 0.0
      %2333 = vmatpush1.msra.mxu0 0.0
      %2334 = vmatprep.subr.mxu0 0.0
      %2335 = vmatpush1.msra.mxu0 0.0
      %2336 = vmatprep.subr.mxu0 0.0
      %2337 = vmatpush1.msra.mxu0 0.0
      %2338 = vmatprep.subr.mxu0 0.0
      %2339 = vmatpush1.msra.mxu0 0.0
      %2340 = vmatprep.subr.mxu0 0.0
      %2341 = vmatpush1.msra.mxu0 0.0
      %2342 = vmatprep.subr.mxu0 0.0
      %2343 = vmatpush1.msra.mxu0 0.0
      %2344 = vmatprep.subr.mxu0 0.0
      %2345 = vmatpush1.msra.mxu0 0.0
      %2346 = vmatprep.subr.mxu0 0.0
      %2347 = vmatpush1.msra.mxu0 0.0
      %2348 = vmatprep.subr.mxu0 0.0
      %2349 = vmatpush1.msra.mxu0 0.0
      %2350 = vmatprep.subr.mxu0 0.0
      %2351 = vmatpush1.msra.mxu0 0.0
      %2352 = vmatprep.subr.mxu0 0.0
      %2353 = vmatpush1.msra.mxu0 0.0
      %2354 = vmatprep.subr.mxu0 0.0
      %2355 = vmatpush1.msra.mxu0 0.0
      %2356 = vmatprep.subr.mxu0 0.0
      %2357 = vmatpush1.msra.mxu0 0.0
      %2358 = vmatprep.subr.mxu0 0.0
      %2359 = vmatpush1.msra.mxu0 0.0
      %2360 = vmatprep.subr.mxu0 0.0
      %2361 = vmatpush1.msra.mxu0 0.0
      %2362 = vmatprep.subr.mxu0 0.0
      %2363 = vmatpush1.msra.mxu0 0.0
      %2364 = vmatprep.subr.mxu0 0.0
      %2365 = vmatpush1.msra.mxu0 0.0
      %2366 = vmatprep.subr.mxu0 0.0
      %2367 = vmatpush1.msra.mxu0 0.0
      %2368 = vmatprep.subr.mxu0 0.0
      %2369 = vmatpush1.msra.mxu0 0.0
      %2370 = vmatprep.subr.mxu0 0.0
      %2371 = vmatpush1.msra.mxu0 0.0
      %2372 = vmatprep.subr.mxu0 0.0
      %2373 = vmatpush1.msra.mxu0 0.0
      %2374 = vmatprep.subr.mxu0 0.0
      %2375 = vmatpush1.msra.mxu0 0.0
      %2376 = vmatprep.subr.mxu0 0.0
      %2377 = vmatpush1.msra.mxu0 0.0
      %2378 = vmatprep.subr.mxu0 0.0
      %2379 = vmatpush1.msra.mxu0 0.0
      %2380 = vmatprep.mubr.f32.mxu0 0.0
      %2381 = vmatmul.mubr.f32.gmra.mrb[0].mxu0 %v2308
      %v2382 = vpop.f32.mrb[0].mxu0
      %v2383 = vadd.f32 0.0, %v2382
      %v2384 = vpop.f32.mrb[0].mxu0
      %v2385 = vadd.f32 0.0, %v2384
      %2386 = vdwg.mxu0
      %2387 = vmatprep.subr.mxu0 0.0
      %2388 = vmatpush1.msra.mxu0 %v2314
      %2389 = vmatprep.subr.mxu0 0.0
      %2390 = vmatpush1.msra.mxu0 0.0
      %2391 = vmatprep.subr.mxu0 0.0
      %2392 = vmatpush1.msra.mxu0 0.0
      %2393 = vmatprep.subr.mxu0 0.0
      %2394 = vmatpush1.msra.mxu0 0.0
      %2395 = vmatprep.subr.mxu0 0.0
      %2396 = vmatpush1.msra.mxu0 0.0
      %2397 = vmatprep.subr.mxu0 0.0
      %2398 = vmatpush1.msra.mxu0 0.0
      %2399 = vmatprep.subr.mxu0 0.0
      %2400 = vmatpush1.msra.mxu0 0.0
      %2401 = vmatprep.subr.mxu0 0.0
      %2402 = vmatpush1.msra.mxu0 0.0
      %2403 = vmatprep.subr.mxu0 0.0
      %2404 = vmatpush1.msra.mxu0 0.0
      %2405 = vmatprep.subr.mxu0 0.0
      %2406 = vmatpush1.msra.mxu0 0.0
      %2407 = vmatprep.subr.mxu0 0.0
      %2408 = vmatpush1.msra.mxu0 0.0
      %2409 = vmatprep.subr.mxu0 0.0
      %2410 = vmatpush1.msra.mxu0 0.0
      %2411 = vmatprep.subr.mxu0 0.0
      %2412 = vmatpush1.msra.mxu0 0.0
      %2413 = vmatprep.subr.mxu0 0.0
      %2414 = vmatpush1.msra.mxu0 0.0
      %2415 = vmatprep.subr.mxu0 0.0
      %2416 = vmatpush1.msra.mxu0 0.0
      %2417 = vmatprep.subr.mxu0 0.0
      %2418 = vmatpush1.msra.mxu0 0.0
      %2419 = vmatprep.subr.mxu0 0.0
      %2420 = vmatpush1.msra.mxu0 0.0
      %2421 = vmatprep.subr.mxu0 0.0
      %2422 = vmatpush1.msra.mxu0 0.0
      %2423 = vmatprep.subr.mxu0 0.0
      %2424 = vmatpush1.msra.mxu0 0.0
      %2425 = vmatprep.subr.mxu0 0.0
      %2426 = vmatpush1.msra.mxu0 0.0
      %2427 = vmatprep.subr.mxu0 0.0
      %2428 = vmatpush1.msra.mxu0 0.0
      %2429 = vmatprep.subr.mxu0 0.0
      %2430 = vmatpush1.msra.mxu0 0.0
      %2431 = vmatprep.subr.mxu0 0.0
      %2432 = vmatpush1.msra.mxu0 0.0
      %2433 = vmatprep.subr.mxu0 0.0
      %2434 = vmatpush1.msra.mxu0 0.0
      %2435 = vmatprep.subr.mxu0 0.0
      %2436 = vmatpush1.msra.mxu0 0.0
      %2437 = vmatprep.subr.mxu0 0.0
      %2438 = vmatpush1.msra.mxu0 0.0
      %2439 = vmatprep.subr.mxu0 0.0
      %2440 = vmatpush1.msra.mxu0 0.0
      %2441 = vmatprep.subr.mxu0 0.0
      %2442 = vmatpush1.msra.mxu0 0.0
      %2443 = vmatprep.subr.mxu0 0.0
      %2444 = vmatpush1.msra.mxu0 0.0
      %2445 = vmatprep.subr.mxu0 0.0
      %2446 = vmatpush1.msra.mxu0 0.0
      %2447 = vmatprep.subr.mxu0 0.0
      %2448 = vmatpush1.msra.mxu0 0.0
      %2449 = vmatprep.subr.mxu0 0.0
      %2450 = vmatpush1.msra.mxu0 0.0
      %2451 = vmatprep.mubr.f32.mxu0 0.0
      %2452 = vmatmul.mubr.f32.gmra.mrb[0].mxu0 %v2308
      %v2453 = vpop.f32.mrb[0].mxu0
      %v2454 = vadd.f32 0.0, %v2453
      %v2455 = vpop.f32.mrb[0].mxu0
      %2456 = vdwg.mxu0
      %v2457 = vadd.f32 %v2218, %v2383
      %v2458 = vadd.f32 %v2220, %v2385
      %v2459 = vadd.f32 %v2289, %v2454
      %s2460 = scalar_lea.vmem %s6, 8
      %v2461 = vld [vmem:[%s2460] sm:$0xff]
      %v2462 = vld [vmem:[%s375] sm:$0xff]
      %v2463 = vld [vmem:[%s375 + $0x8] sm:$0xf]
      %v2466 = vcombine.high %v2462, %v2462
      %2467 = vrot.lane.b32.xlu0 %v2462, 127
      %v2468 = vpop.permute.xlu0 %2467
      %2469 = vrot.lane.b32.xlu0 %v2466, 127
      %v2470 = vpop.permute.xlu0 %2469
      %2471 = vrot.lane.b32.xlu0 %v2463, 127
      %v2472 = vpop.permute.xlu0 %2471
      %v2473 = vsel %vm395, %v2468, %v2470
      %v2474 = vsel %vm395, %v2470, %v2472
      %v2476 = vsel %vm398, %v2461, 0
      %v2478 = vsel %vm402, %v2473, 0
      %v2480 = vsel %vm402, %v2474, 0
      %v2482 = vsel %vm402, %v2472, 0
      %2484 = vmatprep.subr.mxu0 %v2480
      %2485 = vmatpush1.msra.mxu0 %v2478
      %2486 = vmatprep.subr.mxu0 0.0
      %2487 = vmatpush1.msra.mxu0 0.0
      %2488 = vmatprep.subr.mxu0 0.0
      %2489 = vmatpush1.msra.mxu0 0.0
      %2490 = vmatprep.subr.mxu0 0.0
      %2491 = vmatpush1.msra.mxu0 0.0
      %2492 = vmatprep.subr.mxu0 0.0
      %2493 = vmatpush1.msra.mxu0 0.0
      %2494 = vmatprep.subr.mxu0 0.0
      %2495 = vmatpush1.msra.mxu0 0.0
      %2496 = vmatprep.subr.mxu0 0.0
      %2497 = vmatpush1.msra.mxu0 0.0
      %2498 = vmatprep.subr.mxu0 0.0
      %2499 = vmatpush1.msra.mxu0 0.0
      %2500 = vmatprep.subr.mxu0 0.0
      %2501 = vmatpush1.msra.mxu0 0.0
      %2502 = vmatprep.subr.mxu0 0.0
      %2503 = vmatpush1.msra.mxu0 0.0
      %2504 = vmatprep.subr.mxu0 0.0
      %2505 = vmatpush1.msra.mxu0 0.0
      %2506 = vmatprep.subr.mxu0 0.0
      %2507 = vmatpush1.msra.mxu0 0.0
      %2508 = vmatprep.subr.mxu0 0.0
      %2509 = vmatpush1.msra.mxu0 0.0
      %2510 = vmatprep.subr.mxu0 0.0
      %2511 = vmatpush1.msra.mxu0 0.0
      %2512 = vmatprep.subr.mxu0 0.0
      %2513 = vmatpush1.msra.mxu0 0.0
      %2514 = vmatprep.subr.mxu0 0.0
      %2515 = vmatpush1.msra.mxu0 0.0
      %2516 = vmatprep.subr.mxu0 0.0
      %2517 = vmatpush1.msra.mxu0 0.0
      %2518 = vmatprep.subr.mxu0 0.0
      %2519 = vmatpush1.msra.mxu0 0.0
      %2520 = vmatprep.subr.mxu0 0.0
      %2521 = vmatpush1.msra.mxu0 0.0
      %2522 = vmatprep.subr.mxu0 0.0
      %2523 = vmatpush1.msra.mxu0 0.0
      %2524 = vmatprep.subr.mxu0 0.0
      %2525 = vmatpush1.msra.mxu0 0.0
      %2526 = vmatprep.subr.mxu0 0.0
      %2527 = vmatpush1.msra.mxu0 0.0
      %2528 = vmatprep.subr.mxu0 0.0
      %2529 = vmatpush1.msra.mxu0 0.0
      %2530 = vmatprep.subr.mxu0 0.0
      %2531 = vmatpush1.msra.mxu0 0.0
      %2532 = vmatprep.subr.mxu0 0.0
      %2533 = vmatpush1.msra.mxu0 0.0
      %2534 = vmatprep.subr.mxu0 0.0
      %2535 = vmatpush1.msra.mxu0 0.0
      %2536 = vmatprep.subr.mxu0 0.0
      %2537 = vmatpush1.msra.mxu0 0.0
      %2538 = vmatprep.subr.mxu0 0.0
      %2539 = vmatpush1.msra.mxu0 0.0
      %2540 = vmatprep.subr.mxu0 0.0
      %2541 = vmatpush1.msra.mxu0 0.0
      %2542 = vmatprep.subr.mxu0 0.0
      %2543 = vmatpush1.msra.mxu0 0.0
      %2544 = vmatprep.subr.mxu0 0.0
      %2545 = vmatpush1.msra.mxu0 0.0
      %2546 = vmatprep.subr.mxu0 0.0
      %2547 = vmatpush1.msra.mxu0 0.0
      %2548 = vmatprep.mubr.f32.mxu0 0.0
      %2549 = vmatmul.mubr.f32.gmra.mrb[0].mxu0 %v2476
      %v2550 = vpop.f32.mrb[0].mxu0
      %v2551 = vadd.f32 0.0, %v2550
      %v2552 = vpop.f32.mrb[0].mxu0
      %v2553 = vadd.f32 0.0, %v2552
      %2554 = vdwg.mxu0
      %2555 = vmatprep.subr.mxu0 0.0
      %2556 = vmatpush1.msra.mxu0 %v2482
      %2557 = vmatprep.subr.mxu0 0.0
      %2558 = vmatpush1.msra.mxu0 0.0
      %2559 = vmatprep.subr.mxu0 0.0
      %2560 = vmatpush1.msra.mxu0 0.0
      %2561 = vmatprep.subr.mxu0 0.0
      %2562 = vmatpush1.msra.mxu0 0.0
      %2563 = vmatprep.subr.mxu0 0.0
      %2564 = vmatpush1.msra.mxu0 0.0
      %2565 = vmatprep.subr.mxu0 0.0
      %2566 = vmatpush1.msra.mxu0 0.0
      %2567 = vmatprep.subr.mxu0 0.0
      %2568 = vmatpush1.msra.mxu0 0.0
      %2569 = vmatprep.subr.mxu0 0.0
      %2570 = vmatpush1.msra.mxu0 0.0
      %2571 = vmatprep.subr.mxu0 0.0
      %2572 = vmatpush1.msra.mxu0 0.0
      %2573 = vmatprep.subr.mxu0 0.0
      %2574 = vmatpush1.msra.mxu0 0.0
      %2575 = vmatprep.subr.mxu0 0.0
      %2576 = vmatpush1.msra.mxu0 0.0
      %2577 = vmatprep.subr.mxu0 0.0
      %2578 = vmatpush1.msra.mxu0 0.0
      %2579 = vmatprep.subr.mxu0 0.0
      %2580 = vmatpush1.msra.mxu0 0.0
      %2581 = vmatprep.subr.mxu0 0.0
      %2582 = vmatpush1.msra.mxu0 0.0
      %2583 = vmatprep.subr.mxu0 0.0
      %2584 = vmatpush1.msra.mxu0 0.0
      %2585 = vmatprep.subr.mxu0 0.0
      %2586 = vmatpush1.msra.mxu0 0.0
      %2587 = vmatprep.subr.mxu0 0.0
      %2588 = vmatpush1.msra.mxu0 0.0
      %2589 = vmatprep.subr.mxu0 0.0
      %2590 = vmatpush1.msra.mxu0 0.0
      %2591 = vmatprep.subr.mxu0 0.0
      %2592 = vmatpush1.msra.mxu0 0.0
      %2593 = vmatprep.subr.mxu0 0.0
      %2594 = vmatpush1.msra.mxu0 0.0
      %2595 = vmatprep.subr.mxu0 0.0
      %2596 = vmatpush1.msra.mxu0 0.0
      %2597 = vmatprep.subr.mxu0 0.0
      %2598 = vmatpush1.msra.mxu0 0.0
      %2599 = vmatprep.subr.mxu0 0.0
      %2600 = vmatpush1.msra.mxu0 0.0
      %2601 = vmatprep.subr.mxu0 0.0
      %2602 = vmatpush1.msra.mxu0 0.0
      %2603 = vmatprep.subr.mxu0 0.0
      %2604 = vmatpush1.msra.mxu0 0.0
      %2605 = vmatprep.subr.mxu0 0.0
      %2606 = vmatpush1.msra.mxu0 0.0
      %2607 = vmatprep.subr.mxu0 0.0
      %2608 = vmatpush1.msra.mxu0 0.0
      %2609 = vmatprep.subr.mxu0 0.0
      %2610 = vmatpush1.msra.mxu0 0.0
      %2611 = vmatprep.subr.mxu0 0.0
      %2612 = vmatpush1.msra.mxu0 0.0
      %2613 = vmatprep.subr.mxu0 0.0
      %2614 = vmatpush1.msra.mxu0 0.0
      %2615 = vmatprep.subr.mxu0 0.0
      %2616 = vmatpush1.msra.mxu0 0.0
      %2617 = vmatprep.subr.mxu0 0.0
      %2618 = vmatpush1.msra.mxu0 0.0
      %2619 = vmatprep.mubr.f32.mxu0 0.0
      %2620 = vmatmul.mubr.f32.gmra.mrb[0].mxu0 %v2476
      %v2621 = vpop.f32.mrb[0].mxu0
      %v2622 = vadd.f32 0.0, %v2621
      %v2623 = vpop.f32.mrb[0].mxu0
      %2624 = vdwg.mxu0
      %v2625 = vadd.f32 %v2457, %v2551
      %v2626 = vadd.f32 %v2458, %v2553
      %v2627 = vadd.f32 %v2459, %v2622
      %s2628 = scalar_lea.vmem %s5, 16
      %v2629 = vld [vmem:[%s2628] sm:$0xff]
      %v2630 = vld [vmem:[#allocation2] sm:$0xff]
      %v2631 = vld [vmem:[#allocation2 + $0x8] sm:$0xf]
      %v2634 = vcombine.high %v2630, %v2630
      %2635 = vrot.lane.b32.xlu0 %v2630, 126
      %v2636 = vpop.permute.xlu0 %2635
      %2637 = vrot.lane.b32.xlu0 %v2634, 126
      %v2638 = vpop.permute.xlu0 %2637
      %2639 = vrot.lane.b32.xlu0 %v2631, 126
      %v2640 = vpop.permute.xlu0 %2639
      %v2641 = vsel %vm713, %v2636, %v2638
      %v2642 = vsel %vm713, %v2638, %v2640
      %v2644 = vsel %vm398, %v2629, 0
      %v2646 = vsel %vm402, %v2641, 0
      %v2648 = vsel %vm402, %v2642, 0
      %v2650 = vsel %vm402, %v2640, 0
      %2652 = vmatprep.subr.mxu0 %v2648
      %2653 = vmatpush1.msra.mxu0 %v2646
      %2654 = vmatprep.subr.mxu0 0.0
      %2655 = vmatpush1.msra.mxu0 0.0
      %2656 = vmatprep.subr.mxu0 0.0
      %2657 = vmatpush1.msra.mxu0 0.0
      %2658 = vmatprep.subr.mxu0 0.0
      %2659 = vmatpush1.msra.mxu0 0.0
      %2660 = vmatprep.subr.mxu0 0.0
      %2661 = vmatpush1.msra.mxu0 0.0
      %2662 = vmatprep.subr.mxu0 0.0
      %2663 = vmatpush1.msra.mxu0 0.0
      %2664 = vmatprep.subr.mxu0 0.0
      %2665 = vmatpush1.msra.mxu0 0.0
      %2666 = vmatprep.subr.mxu0 0.0
      %2667 = vmatpush1.msra.mxu0 0.0
      %2668 = vmatprep.subr.mxu0 0.0
      %2669 = vmatpush1.msra.mxu0 0.0
      %2670 = vmatprep.subr.mxu0 0.0
      %2671 = vmatpush1.msra.mxu0 0.0
      %2672 = vmatprep.subr.mxu0 0.0
      %2673 = vmatpush1.msra.mxu0 0.0
      %2674 = vmatprep.subr.mxu0 0.0
      %2675 = vmatpush1.msra.mxu0 0.0
      %2676 = vmatprep.subr.mxu0 0.0
      %2677 = vmatpush1.msra.mxu0 0.0
      %2678 = vmatprep.subr.mxu0 0.0
      %2679 = vmatpush1.msra.mxu0 0.0
      %2680 = vmatprep.subr.mxu0 0.0
      %2681 = vmatpush1.msra.mxu0 0.0
      %2682 = vmatprep.subr.mxu0 0.0
      %2683 = vmatpush1.msra.mxu0 0.0
      %2684 = vmatprep.subr.mxu0 0.0
      %2685 = vmatpush1.msra.mxu0 0.0
      %2686 = vmatprep.subr.mxu0 0.0
      %2687 = vmatpush1.msra.mxu0 0.0
      %2688 = vmatprep.subr.mxu0 0.0
      %2689 = vmatpush1.msra.mxu0 0.0
      %2690 = vmatprep.subr.mxu0 0.0
      %2691 = vmatpush1.msra.mxu0 0.0
      %2692 = vmatprep.subr.mxu0 0.0
      %2693 = vmatpush1.msra.mxu0 0.0
      %2694 = vmatprep.subr.mxu0 0.0
      %2695 = vmatpush1.msra.mxu0 0.0
      %2696 = vmatprep.subr.mxu0 0.0
      %2697 = vmatpush1.msra.mxu0 0.0
      %2698 = vmatprep.subr.mxu0 0.0
      %2699 = vmatpush1.msra.mxu0 0.0
      %2700 = vmatprep.subr.mxu0 0.0
      %2701 = vmatpush1.msra.mxu0 0.0
      %2702 = vmatprep.subr.mxu0 0.0
      %2703 = vmatpush1.msra.mxu0 0.0
      %2704 = vmatprep.subr.mxu0 0.0
      %2705 = vmatpush1.msra.mxu0 0.0
      %2706 = vmatprep.subr.mxu0 0.0
      %2707 = vmatpush1.msra.mxu0 0.0
      %2708 = vmatprep.subr.mxu0 0.0
      %2709 = vmatpush1.msra.mxu0 0.0
      %2710 = vmatprep.subr.mxu0 0.0
      %2711 = vmatpush1.msra.mxu0 0.0
      %2712 = vmatprep.subr.mxu0 0.0
      %2713 = vmatpush1.msra.mxu0 0.0
      %2714 = vmatprep.subr.mxu0 0.0
      %2715 = vmatpush1.msra.mxu0 0.0
      %2716 = vmatprep.mubr.f32.mxu0 0.0
      %2717 = vmatmul.mubr.f32.gmra.mrb[0].mxu0 %v2644
      %v2718 = vpop.f32.mrb[0].mxu0
      %v2719 = vadd.f32 0.0, %v2718
      %v2720 = vpop.f32.mrb[0].mxu0
      %v2721 = vadd.f32 0.0, %v2720
      %2722 = vdwg.mxu0
      %2723 = vmatprep.subr.mxu0 0.0
      %2724 = vmatpush1.msra.mxu0 %v2650
      %2725 = vmatprep.subr.mxu0 0.0
      %2726 = vmatpush1.msra.mxu0 0.0
      %2727 = vmatprep.subr.mxu0 0.0
      %2728 = vmatpush1.msra.mxu0 0.0
      %2729 = vmatprep.subr.mxu0 0.0
      %2730 = vmatpush1.msra.mxu0 0.0
      %2731 = vmatprep.subr.mxu0 0.0
      %2732 = vmatpush1.msra.mxu0 0.0
      %2733 = vmatprep.subr.mxu0 0.0
      %2734 = vmatpush1.msra.mxu0 0.0
      %2735 = vmatprep.subr.mxu0 0.0
      %2736 = vmatpush1.msra.mxu0 0.0
      %2737 = vmatprep.subr.mxu0 0.0
      %2738 = vmatpush1.msra.mxu0 0.0
      %2739 = vmatprep.subr.mxu0 0.0
      %2740 = vmatpush1.msra.mxu0 0.0
      %2741 = vmatprep.subr.mxu0 0.0
      %2742 = vmatpush1.msra.mxu0 0.0
      %2743 = vmatprep.subr.mxu0 0.0
      %2744 = vmatpush1.msra.mxu0 0.0
      %2745 = vmatprep.subr.mxu0 0.0
      %2746 = vmatpush1.msra.mxu0 0.0
      %2747 = vmatprep.subr.mxu0 0.0
      %2748 = vmatpush1.msra.mxu0 0.0
      %2749 = vmatprep.subr.mxu0 0.0
      %2750 = vmatpush1.msra.mxu0 0.0
      %2751 = vmatprep.subr.mxu0 0.0
      %2752 = vmatpush1.msra.mxu0 0.0
      %2753 = vmatprep.subr.mxu0 0.0
      %2754 = vmatpush1.msra.mxu0 0.0
      %2755 = vmatprep.subr.mxu0 0.0
      %2756 = vmatpush1.msra.mxu0 0.0
      %2757 = vmatprep.subr.mxu0 0.0
      %2758 = vmatpush1.msra.mxu0 0.0
      %2759 = vmatprep.subr.mxu0 0.0
      %2760 = vmatpush1.msra.mxu0 0.0
      %2761 = vmatprep.subr.mxu0 0.0
      %2762 = vmatpush1.msra.mxu0 0.0
      %2763 = vmatprep.subr.mxu0 0.0
      %2764 = vmatpush1.msra.mxu0 0.0
      %2765 = vmatprep.subr.mxu0 0.0
      %2766 = vmatpush1.msra.mxu0 0.0
      %2767 = vmatprep.subr.mxu0 0.0
      %2768 = vmatpush1.msra.mxu0 0.0
      %2769 = vmatprep.subr.mxu0 0.0
      %2770 = vmatpush1.msra.mxu0 0.0
      %2771 = vmatprep.subr.mxu0 0.0
      %2772 = vmatpush1.msra.mxu0 0.0
      %2773 = vmatprep.subr.mxu0 0.0
      %2774 = vmatpush1.msra.mxu0 0.0
      %2775 = vmatprep.subr.mxu0 0.0
      %2776 = vmatpush1.msra.mxu0 0.0
      %2777 = vmatprep.subr.mxu0 0.0
      %2778 = vmatpush1.msra.mxu0 0.0
      %2779 = vmatprep.subr.mxu0 0.0
      %2780 = vmatpush1.msra.mxu0 0.0
      %2781 = vmatprep.subr.mxu0 0.0
      %2782 = vmatpush1.msra.mxu0 0.0
      %2783 = vmatprep.subr.mxu0 0.0
      %2784 = vmatpush1.msra.mxu0 0.0
      %2785 = vmatprep.subr.mxu0 0.0
      %2786 = vmatpush1.msra.mxu0 0.0
      %2787 = vmatprep.mubr.f32.mxu0 0.0
      %2788 = vmatmul.mubr.f32.gmra.mrb[0].mxu0 %v2644
      %v2789 = vpop.f32.mrb[0].mxu0
      %v2790 = vadd.f32 0.0, %v2789
      %v2791 = vpop.f32.mrb[0].mxu0
      %2792 = vdwg.mxu0
      %v2793 = vadd.f32 %v2625, %v2719
      %v2794 = vadd.f32 %v2626, %v2721
      %v2795 = vadd.f32 %v2627, %v2790
      %s2796 = scalar_lea.vmem %s6, 16
      %v2797 = vld [vmem:[%s2796] sm:$0xff]
      %v2798 = vld [vmem:[%s375] sm:$0xff]
      %v2799 = vld [vmem:[%s375 + $0x8] sm:$0xf]
      %v2802 = vcombine.high %v2798, %v2798
      %2803 = vrot.lane.b32.xlu0 %v2798, 126
      %v2804 = vpop.permute.xlu0 %2803
      %2805 = vrot.lane.b32.xlu0 %v2802, 126
      %v2806 = vpop.permute.xlu0 %2805
      %2807 = vrot.lane.b32.xlu0 %v2799, 126
      %v2808 = vpop.permute.xlu0 %2807
      %v2809 = vsel %vm713, %v2804, %v2806
      %v2810 = vsel %vm713, %v2806, %v2808
      %v2812 = vsel %vm398, %v2797, 0
      %v2814 = vsel %vm402, %v2809, 0
      %v2816 = vsel %vm402, %v2810, 0
      %v2818 = vsel %vm402, %v2808, 0
      %2820 = vmatprep.subr.mxu0 %v2816
      %2821 = vmatpush1.msra.mxu0 %v2814
      %2822 = vmatprep.subr.mxu0 0.0
      %2823 = vmatpush1.msra.mxu0 0.0
      %2824 = vmatprep.subr.mxu0 0.0
      %2825 = vmatpush1.msra.mxu0 0.0
      %2826 = vmatprep.subr.mxu0 0.0
      %2827 = vmatpush1.msra.mxu0 0.0
      %2828 = vmatprep.subr.mxu0 0.0
      %2829 = vmatpush1.msra.mxu0 0.0
      %2830 = vmatprep.subr.mxu0 0.0
      %2831 = vmatpush1.msra.mxu0 0.0
      %2832 = vmatprep.subr.mxu0 0.0
      %2833 = vmatpush1.msra.mxu0 0.0
      %2834 = vmatprep.subr.mxu0 0.0
      %2835 = vmatpush1.msra.mxu0 0.0
      %2836 = vmatprep.subr.mxu0 0.0
      %2837 = vmatpush1.msra.mxu0 0.0
      %2838 = vmatprep.subr.mxu0 0.0
      %2839 = vmatpush1.msra.mxu0 0.0
      %2840 = vmatprep.subr.mxu0 0.0
      %2841 = vmatpush1.msra.mxu0 0.0
      %2842 = vmatprep.subr.mxu0 0.0
      %2843 = vmatpush1.msra.mxu0 0.0
      %2844 = vmatprep.subr.mxu0 0.0
      %2845 = vmatpush1.msra.mxu0 0.0
      %2846 = vmatprep.subr.mxu0 0.0
      %2847 = vmatpush1.msra.mxu0 0.0
      %2848 = vmatprep.subr.mxu0 0.0
      %2849 = vmatpush1.msra.mxu0 0.0
      %2850 = vmatprep.subr.mxu0 0.0
      %2851 = vmatpush1.msra.mxu0 0.0
      %2852 = vmatprep.subr.mxu0 0.0
      %2853 = vmatpush1.msra.mxu0 0.0
      %2854 = vmatprep.subr.mxu0 0.0
      %2855 = vmatpush1.msra.mxu0 0.0
      %2856 = vmatprep.subr.mxu0 0.0
      %2857 = vmatpush1.msra.mxu0 0.0
      %2858 = vmatprep.subr.mxu0 0.0
      %2859 = vmatpush1.msra.mxu0 0.0
      %2860 = vmatprep.subr.mxu0 0.0
      %2861 = vmatpush1.msra.mxu0 0.0
      %2862 = vmatprep.subr.mxu0 0.0
      %2863 = vmatpush1.msra.mxu0 0.0
      %2864 = vmatprep.subr.mxu0 0.0
      %2865 = vmatpush1.msra.mxu0 0.0
      %2866 = vmatprep.subr.mxu0 0.0
      %2867 = vmatpush1.msra.mxu0 0.0
      %2868 = vmatprep.subr.mxu0 0.0
      %2869 = vmatpush1.msra.mxu0 0.0
      %2870 = vmatprep.subr.mxu0 0.0
      %2871 = vmatpush1.msra.mxu0 0.0
      %2872 = vmatprep.subr.mxu0 0.0
      %2873 = vmatpush1.msra.mxu0 0.0
      %2874 = vmatprep.subr.mxu0 0.0
      %2875 = vmatpush1.msra.mxu0 0.0
      %2876 = vmatprep.subr.mxu0 0.0
      %2877 = vmatpush1.msra.mxu0 0.0
      %2878 = vmatprep.subr.mxu0 0.0
      %2879 = vmatpush1.msra.mxu0 0.0
      %2880 = vmatprep.subr.mxu0 0.0
      %2881 = vmatpush1.msra.mxu0 0.0
      %2882 = vmatprep.subr.mxu0 0.0
      %2883 = vmatpush1.msra.mxu0 0.0
      %2884 = vmatprep.mubr.f32.mxu0 0.0
      %2885 = vmatmul.mubr.f32.gmra.mrb[0].mxu0 %v2812
      %v2886 = vpop.f32.mrb[0].mxu0
      %v2887 = vadd.f32 0.0, %v2886
      %v2888 = vpop.f32.mrb[0].mxu0
      %v2889 = vadd.f32 0.0, %v2888
      %2890 = vdwg.mxu0
      %2891 = vmatprep.subr.mxu0 0.0
      %2892 = vmatpush1.msra.mxu0 %v2818
      %2893 = vmatprep.subr.mxu0 0.0
      %2894 = vmatpush1.msra.mxu0 0.0
      %2895 = vmatprep.subr.mxu0 0.0
      %2896 = vmatpush1.msra.mxu0 0.0
      %2897 = vmatprep.subr.mxu0 0.0
      %2898 = vmatpush1.msra.mxu0 0.0
      %2899 = vmatprep.subr.mxu0 0.0
      %2900 = vmatpush1.msra.mxu0 0.0
      %2901 = vmatprep.subr.mxu0 0.0
      %2902 = vmatpush1.msra.mxu0 0.0
      %2903 = vmatprep.subr.mxu0 0.0
      %2904 = vmatpush1.msra.mxu0 0.0
      %2905 = vmatprep.subr.mxu0 0.0
      %2906 = vmatpush1.msra.mxu0 0.0
      %2907 = vmatprep.subr.mxu0 0.0
      %2908 = vmatpush1.msra.mxu0 0.0
      %2909 = vmatprep.subr.mxu0 0.0
      %2910 = vmatpush1.msra.mxu0 0.0
      %2911 = vmatprep.subr.mxu0 0.0
      %2912 = vmatpush1.msra.mxu0 0.0
      %2913 = vmatprep.subr.mxu0 0.0
      %2914 = vmatpush1.msra.mxu0 0.0
      %2915 = vmatprep.subr.mxu0 0.0
      %2916 = vmatpush1.msra.mxu0 0.0
      %2917 = vmatprep.subr.mxu0 0.0
      %2918 = vmatpush1.msra.mxu0 0.0
      %2919 = vmatprep.subr.mxu0 0.0
      %2920 = vmatpush1.msra.mxu0 0.0
      %2921 = vmatprep.subr.mxu0 0.0
      %2922 = vmatpush1.msra.mxu0 0.0
      %2923 = vmatprep.subr.mxu0 0.0
      %2924 = vmatpush1.msra.mxu0 0.0
      %2925 = vmatprep.subr.mxu0 0.0
      %2926 = vmatpush1.msra.mxu0 0.0
      %2927 = vmatprep.subr.mxu0 0.0
      %2928 = vmatpush1.msra.mxu0 0.0
      %2929 = vmatprep.subr.mxu0 0.0
      %2930 = vmatpush1.msra.mxu0 0.0
      %2931 = vmatprep.subr.mxu0 0.0
      %2932 = vmatpush1.msra.mxu0 0.0
      %2933 = vmatprep.subr.mxu0 0.0
      %2934 = vmatpush1.msra.mxu0 0.0
      %2935 = vmatprep.subr.mxu0 0.0
      %2936 = vmatpush1.msra.mxu0 0.0
      %2937 = vmatprep.subr.mxu0 0.0
      %2938 = vmatpush1.msra.mxu0 0.0
      %2939 = vmatprep.subr.mxu0 0.0
      %2940 = vmatpush1.msra.mxu0 0.0
      %2941 = vmatprep.subr.mxu0 0.0
      %2942 = vmatpush1.msra.mxu0 0.0
      %2943 = vmatprep.subr.mxu0 0.0
      %2944 = vmatpush1.msra.mxu0 0.0
      %2945 = vmatprep.subr.mxu0 0.0
      %2946 = vmatpush1.msra.mxu0 0.0
      %2947 = vmatprep.subr.mxu0 0.0
      %2948 = vmatpush1.msra.mxu0 0.0
      %2949 = vmatprep.subr.mxu0 0.0
      %2950 = vmatpush1.msra.mxu0 0.0
      %2951 = vmatprep.subr.mxu0 0.0
      %2952 = vmatpush1.msra.mxu0 0.0
      %2953 = vmatprep.subr.mxu0 0.0
      %2954 = vmatpush1.msra.mxu0 0.0
      %2955 = vmatprep.mubr.f32.mxu0 0.0
      %2956 = vmatmul.mubr.f32.gmra.mrb[0].mxu0 %v2812
      %v2957 = vpop.f32.mrb[0].mxu0
      %v2958 = vadd.f32 0.0, %v2957
      %v2959 = vpop.f32.mrb[0].mxu0
      %2960 = vdwg.mxu0
      %v2961 = vadd.f32 %v2793, %v2887
      %v2962 = vadd.f32 %v2794, %v2889
      %v2963 = vadd.f32 %v2795, %v2958
      %s2964 = scalar_lea.vmem %s5, 24
      %v2965 = vld [vmem:[%s2964] sm:$0xff]
      %v2966 = vld [vmem:[#allocation2] sm:$0xff]
      %v2967 = vld [vmem:[#allocation2 + $0x8] sm:$0xf]
      %v2970 = vcombine.high %v2966, %v2966
      %2971 = vrot.lane.b32.xlu0 %v2966, 110
      %v2972 = vpop.permute.xlu0 %2971
      %2973 = vrot.lane.b32.xlu0 %v2970, 110
      %v2974 = vpop.permute.xlu0 %2973
      %2975 = vrot.lane.b32.xlu0 %v2967, 110
      %v2976 = vpop.permute.xlu0 %2975
      %v2977 = vsel %vm882, %v2972, %v2974
      %v2978 = vsel %vm882, %v2974, %v2976
      %v2980 = vsel %vm398, %v2965, 0
      %v2982 = vsel %vm402, %v2977, 0
      %v2984 = vsel %vm402, %v2978, 0
      %v2986 = vsel %vm402, %v2976, 0
      %2988 = vmatprep.subr.mxu0 %v2984
      %2989 = vmatpush1.msra.mxu0 %v2982
      %2990 = vmatprep.subr.mxu0 0.0
      %2991 = vmatpush1.msra.mxu0 0.0
      %2992 = vmatprep.subr.mxu0 0.0
      %2993 = vmatpush1.msra.mxu0 0.0
      %2994 = vmatprep.subr.mxu0 0.0
      %2995 = vmatpush1.msra.mxu0 0.0
      %2996 = vmatprep.subr.mxu0 0.0
      %2997 = vmatpush1.msra.mxu0 0.0
      %2998 = vmatprep.subr.mxu0 0.0
      %2999 = vmatpush1.msra.mxu0 0.0
      %3000 = vmatprep.subr.mxu0 0.0
      %3001 = vmatpush1.msra.mxu0 0.0
      %3002 = vmatprep.subr.mxu0 0.0
      %3003 = vmatpush1.msra.mxu0 0.0
      %3004 = vmatprep.subr.mxu0 0.0
      %3005 = vmatpush1.msra.mxu0 0.0
      %3006 = vmatprep.subr.mxu0 0.0
      %3007 = vmatpush1.msra.mxu0 0.0
      %3008 = vmatprep.subr.mxu0 0.0
      %3009 = vmatpush1.msra.mxu0 0.0
      %3010 = vmatprep.subr.mxu0 0.0
      %3011 = vmatpush1.msra.mxu0 0.0
      %3012 = vmatprep.subr.mxu0 0.0
      %3013 = vmatpush1.msra.mxu0 0.0
      %3014 = vmatprep.subr.mxu0 0.0
      %3015 = vmatpush1.msra.mxu0 0.0
      %3016 = vmatprep.subr.mxu0 0.0
      %3017 = vmatpush1.msra.mxu0 0.0
      %3018 = vmatprep.subr.mxu0 0.0
      %3019 = vmatpush1.msra.mxu0 0.0
      %3020 = vmatprep.subr.mxu0 0.0
      %3021 = vmatpush1.msra.mxu0 0.0
      %3022 = vmatprep.subr.mxu0 0.0
      %3023 = vmatpush1.msra.mxu0 0.0
      %3024 = vmatprep.subr.mxu0 0.0
      %3025 = vmatpush1.msra.mxu0 0.0
      %3026 = vmatprep.subr.mxu0 0.0
      %3027 = vmatpush1.msra.mxu0 0.0
      %3028 = vmatprep.subr.mxu0 0.0
      %3029 = vmatpush1.msra.mxu0 0.0
      %3030 = vmatprep.subr.mxu0 0.0
      %3031 = vmatpush1.msra.mxu0 0.0
      %3032 = vmatprep.subr.mxu0 0.0
      %3033 = vmatpush1.msra.mxu0 0.0
      %3034 = vmatprep.subr.mxu0 0.0
      %3035 = vmatpush1.msra.mxu0 0.0
      %3036 = vmatprep.subr.mxu0 0.0
      %3037 = vmatpush1.msra.mxu0 0.0
      %3038 = vmatprep.subr.mxu0 0.0
      %3039 = vmatpush1.msra.mxu0 0.0
      %3040 = vmatprep.subr.mxu0 0.0
      %3041 = vmatpush1.msra.mxu0 0.0
      %3042 = vmatprep.subr.mxu0 0.0
      %3043 = vmatpush1.msra.mxu0 0.0
      %3044 = vmatprep.subr.mxu0 0.0
      %3045 = vmatpush1.msra.mxu0 0.0
      %3046 = vmatprep.subr.mxu0 0.0
      %3047 = vmatpush1.msra.mxu0 0.0
      %3048 = vmatprep.subr.mxu0 0.0
      %3049 = vmatpush1.msra.mxu0 0.0
      %3050 = vmatprep.subr.mxu0 0.0
      %3051 = vmatpush1.msra.mxu0 0.0
      %3052 = vmatprep.mubr.f32.mxu0 0.0
      %3053 = vmatmul.mubr.f32.gmra.mrb[0].mxu0 %v2980
      %v3054 = vpop.f32.mrb[0].mxu0
      %v3055 = vadd.f32 0.0, %v3054
      %v3056 = vpop.f32.mrb[0].mxu0
      %v3057 = vadd.f32 0.0, %v3056
      %3058 = vdwg.mxu0
      %3059 = vmatprep.subr.mxu0 0.0
      %3060 = vmatpush1.msra.mxu0 %v2986
      %3061 = vmatprep.subr.mxu0 0.0
      %3062 = vmatpush1.msra.mxu0 0.0
      %3063 = vmatprep.subr.mxu0 0.0
      %3064 = vmatpush1.msra.mxu0 0.0
      %3065 = vmatprep.subr.mxu0 0.0
      %3066 = vmatpush1.msra.mxu0 0.0
      %3067 = vmatprep.subr.mxu0 0.0
      %3068 = vmatpush1.msra.mxu0 0.0
      %3069 = vmatprep.subr.mxu0 0.0
      %3070 = vmatpush1.msra.mxu0 0.0
      %3071 = vmatprep.subr.mxu0 0.0
      %3072 = vmatpush1.msra.mxu0 0.0
      %3073 = vmatprep.subr.mxu0 0.0
      %3074 = vmatpush1.msra.mxu0 0.0
      %3075 = vmatprep.subr.mxu0 0.0
      %3076 = vmatpush1.msra.mxu0 0.0
      %3077 = vmatprep.subr.mxu0 0.0
      %3078 = vmatpush1.msra.mxu0 0.0
      %3079 = vmatprep.subr.mxu0 0.0
      %3080 = vmatpush1.msra.mxu0 0.0
      %3081 = vmatprep.subr.mxu0 0.0
      %3082 = vmatpush1.msra.mxu0 0.0
      %3083 = vmatprep.subr.mxu0 0.0
      %3084 = vmatpush1.msra.mxu0 0.0
      %3085 = vmatprep.subr.mxu0 0.0
      %3086 = vmatpush1.msra.mxu0 0.0
      %3087 = vmatprep.subr.mxu0 0.0
      %3088 = vmatpush1.msra.mxu0 0.0
      %3089 = vmatprep.subr.mxu0 0.0
      %3090 = vmatpush1.msra.mxu0 0.0
      %3091 = vmatprep.subr.mxu0 0.0
      %3092 = vmatpush1.msra.mxu0 0.0
      %3093 = vmatprep.subr.mxu0 0.0
      %3094 = vmatpush1.msra.mxu0 0.0
      %3095 = vmatprep.subr.mxu0 0.0
      %3096 = vmatpush1.msra.mxu0 0.0
      %3097 = vmatprep.subr.mxu0 0.0
      %3098 = vmatpush1.msra.mxu0 0.0
      %3099 = vmatprep.subr.mxu0 0.0
      %3100 = vmatpush1.msra.mxu0 0.0
      %3101 = vmatprep.subr.mxu0 0.0
      %3102 = vmatpush1.msra.mxu0 0.0
      %3103 = vmatprep.subr.mxu0 0.0
      %3104 = vmatpush1.msra.mxu0 0.0
      %3105 = vmatprep.subr.mxu0 0.0
      %3106 = vmatpush1.msra.mxu0 0.0
      %3107 = vmatprep.subr.mxu0 0.0
      %3108 = vmatpush1.msra.mxu0 0.0
      %3109 = vmatprep.subr.mxu0 0.0
      %3110 = vmatpush1.msra.mxu0 0.0
      %3111 = vmatprep.subr.mxu0 0.0
      %3112 = vmatpush1.msra.mxu0 0.0
      %3113 = vmatprep.subr.mxu0 0.0
      %3114 = vmatpush1.msra.mxu0 0.0
      %3115 = vmatprep.subr.mxu0 0.0
      %3116 = vmatpush1.msra.mxu0 0.0
      %3117 = vmatprep.subr.mxu0 0.0
      %3118 = vmatpush1.msra.mxu0 0.0
      %3119 = vmatprep.subr.mxu0 0.0
      %3120 = vmatpush1.msra.mxu0 0.0
      %3121 = vmatprep.subr.mxu0 0.0
      %3122 = vmatpush1.msra.mxu0 0.0
      %3123 = vmatprep.mubr.f32.mxu0 0.0
      %3124 = vmatmul.mubr.f32.gmra.mrb[0].mxu0 %v2980
      %v3125 = vpop.f32.mrb[0].mxu0
      %v3126 = vadd.f32 0.0, %v3125
      %v3127 = vpop.f32.mrb[0].mxu0
      %3128 = vdwg.mxu0
      %v3129 = vadd.f32 %v2961, %v3055
      %v3130 = vadd.f32 %v2962, %v3057
      %v3131 = vadd.f32 %v2963, %v3126
      %s3132 = scalar_lea.vmem %s6, 24
      %v3133 = vld [vmem:[%s3132] sm:$0xff]
      %v3134 = vld [vmem:[%s375] sm:$0xff]
      %v3135 = vld [vmem:[%s375 + $0x8] sm:$0xf]
      %v3138 = vcombine.high %v3134, %v3134
      %3139 = vrot.lane.b32.xlu0 %v3134, 110
      %v3140 = vpop.permute.xlu0 %3139
      %3141 = vrot.lane.b32.xlu0 %v3138, 110
      %v3142 = vpop.permute.xlu0 %3141
      %3143 = vrot.lane.b32.xlu0 %v3135, 110
      %v3144 = vpop.permute.xlu0 %3143
      %v3145 = vsel %vm882, %v3140, %v3142
      %v3146 = vsel %vm882, %v3142, %v3144
      %v3148 = vsel %vm398, %v3133, 0
      %v3150 = vsel %vm402, %v3145, 0
      %v3152 = vsel %vm402, %v3146, 0
      %v3154 = vsel %vm402, %v3144, 0
      %3156 = vmatprep.subr.mxu0 %v3152
      %3157 = vmatpush1.msra.mxu0 %v3150
      %3158 = vmatprep.subr.mxu0 0.0
      %3159 = vmatpush1.msra.mxu0 0.0
      %3160 = vmatprep.subr.mxu0 0.0
      %3161 = vmatpush1.msra.mxu0 0.0
      %3162 = vmatprep.subr.mxu0 0.0
      %3163 = vmatpush1.msra.mxu0 0.0
      %3164 = vmatprep.subr.mxu0 0.0
      %3165 = vmatpush1.msra.mxu0 0.0
      %3166 = vmatprep.subr.mxu0 0.0
      %3167 = vmatpush1.msra.mxu0 0.0
      %3168 = vmatprep.subr.mxu0 0.0
      %3169 = vmatpush1.msra.mxu0 0.0
      %3170 = vmatprep.subr.mxu0 0.0
      %3171 = vmatpush1.msra.mxu0 0.0
      %3172 = vmatprep.subr.mxu0 0.0
      %3173 = vmatpush1.msra.mxu0 0.0
      %3174 = vmatprep.subr.mxu0 0.0
      %3175 = vmatpush1.msra.mxu0 0.0
      %3176 = vmatprep.subr.mxu0 0.0
      %3177 = vmatpush1.msra.mxu0 0.0
      %3178 = vmatprep.subr.mxu0 0.0
      %3179 = vmatpush1.msra.mxu0 0.0
      %3180 = vmatprep.subr.mxu0 0.0
      %3181 = vmatpush1.msra.mxu0 0.0
      %3182 = vmatprep.subr.mxu0 0.0
      %3183 = vmatpush1.msra.mxu0 0.0
      %3184 = vmatprep.subr.mxu0 0.0
      %3185 = vmatpush1.msra.mxu0 0.0
      %3186 = vmatprep.subr.mxu0 0.0
      %3187 = vmatpush1.msra.mxu0 0.0
      %3188 = vmatprep.subr.mxu0 0.0
      %3189 = vmatpush1.msra.mxu0 0.0
      %3190 = vmatprep.subr.mxu0 0.0
      %3191 = vmatpush1.msra.mxu0 0.0
      %3192 = vmatprep.subr.mxu0 0.0
      %3193 = vmatpush1.msra.mxu0 0.0
      %3194 = vmatprep.subr.mxu0 0.0
      %3195 = vmatpush1.msra.mxu0 0.0
      %3196 = vmatprep.subr.mxu0 0.0
      %3197 = vmatpush1.msra.mxu0 0.0
      %3198 = vmatprep.subr.mxu0 0.0
      %3199 = vmatpush1.msra.mxu0 0.0
      %3200 = vmatprep.subr.mxu0 0.0
      %3201 = vmatpush1.msra.mxu0 0.0
      %3202 = vmatprep.subr.mxu0 0.0
      %3203 = vmatpush1.msra.mxu0 0.0
      %3204 = vmatprep.subr.mxu0 0.0
      %3205 = vmatpush1.msra.mxu0 0.0
      %3206 = vmatprep.subr.mxu0 0.0
      %3207 = vmatpush1.msra.mxu0 0.0
      %3208 = vmatprep.subr.mxu0 0.0
      %3209 = vmatpush1.msra.mxu0 0.0
      %3210 = vmatprep.subr.mxu0 0.0
      %3211 = vmatpush1.msra.mxu0 0.0
      %3212 = vmatprep.subr.mxu0 0.0
      %3213 = vmatpush1.msra.mxu0 0.0
      %3214 = vmatprep.subr.mxu0 0.0
      %3215 = vmatpush1.msra.mxu0 0.0
      %3216 = vmatprep.subr.mxu0 0.0
      %3217 = vmatpush1.msra.mxu0 0.0
      %3218 = vmatprep.subr.mxu0 0.0
      %3219 = vmatpush1.msra.mxu0 0.0
      %3220 = vmatprep.mubr.f32.mxu0 0.0
      %3221 = vmatmul.mubr.f32.gmra.mrb[0].mxu0 %v3148
      %v3222 = vpop.f32.mrb[0].mxu0
      %v3223 = vadd.f32 0.0, %v3222
      %v3224 = vpop.f32.mrb[0].mxu0
      %v3225 = vadd.f32 0.0, %v3224
      %3226 = vdwg.mxu0
      %3227 = vmatprep.subr.mxu0 0.0
      %3228 = vmatpush1.msra.mxu0 %v3154
      %3229 = vmatprep.subr.mxu0 0.0
      %3230 = vmatpush1.msra.mxu0 0.0
      %3231 = vmatprep.subr.mxu0 0.0
      %3232 = vmatpush1.msra.mxu0 0.0
      %3233 = vmatprep.subr.mxu0 0.0
      %3234 = vmatpush1.msra.mxu0 0.0
      %3235 = vmatprep.subr.mxu0 0.0
      %3236 = vmatpush1.msra.mxu0 0.0
      %3237 = vmatprep.subr.mxu0 0.0
      %3238 = vmatpush1.msra.mxu0 0.0
      %3239 = vmatprep.subr.mxu0 0.0
      %3240 = vmatpush1.msra.mxu0 0.0
      %3241 = vmatprep.subr.mxu0 0.0
      %3242 = vmatpush1.msra.mxu0 0.0
      %3243 = vmatprep.subr.mxu0 0.0
      %3244 = vmatpush1.msra.mxu0 0.0
      %3245 = vmatprep.subr.mxu0 0.0
      %3246 = vmatpush1.msra.mxu0 0.0
      %3247 = vmatprep.subr.mxu0 0.0
      %3248 = vmatpush1.msra.mxu0 0.0
      %3249 = vmatprep.subr.mxu0 0.0
      %3250 = vmatpush1.msra.mxu0 0.0
      %3251 = vmatprep.subr.mxu0 0.0
      %3252 = vmatpush1.msra.mxu0 0.0
      %3253 = vmatprep.subr.mxu0 0.0
      %3254 = vmatpush1.msra.mxu0 0.0
      %3255 = vmatprep.subr.mxu0 0.0
      %3256 = vmatpush1.msra.mxu0 0.0
      %3257 = vmatprep.subr.mxu0 0.0
      %3258 = vmatpush1.msra.mxu0 0.0
      %3259 = vmatprep.subr.mxu0 0.0
      %3260 = vmatpush1.msra.mxu0 0.0
      %3261 = vmatprep.subr.mxu0 0.0
      %3262 = vmatpush1.msra.mxu0 0.0
      %3263 = vmatprep.subr.mxu0 0.0
      %3264 = vmatpush1.msra.mxu0 0.0
      %3265 = vmatprep.subr.mxu0 0.0
      %3266 = vmatpush1.msra.mxu0 0.0
      %3267 = vmatprep.subr.mxu0 0.0
      %3268 = vmatpush1.msra.mxu0 0.0
      %3269 = vmatprep.subr.mxu0 0.0
      %3270 = vmatpush1.msra.mxu0 0.0
      %3271 = vmatprep.subr.mxu0 0.0
      %3272 = vmatpush1.msra.mxu0 0.0
      %3273 = vmatprep.subr.mxu0 0.0
      %3274 = vmatpush1.msra.mxu0 0.0
      %3275 = vmatprep.subr.mxu0 0.0
      %3276 = vmatpush1.msra.mxu0 0.0
      %3277 = vmatprep.subr.mxu0 0.0
      %3278 = vmatpush1.msra.mxu0 0.0
      %3279 = vmatprep.subr.mxu0 0.0
      %3280 = vmatpush1.msra.mxu0 0.0
      %3281 = vmatprep.subr.mxu0 0.0
      %3282 = vmatpush1.msra.mxu0 0.0
      %3283 = vmatprep.subr.mxu0 0.0
      %3284 = vmatpush1.msra.mxu0 0.0
      %3285 = vmatprep.subr.mxu0 0.0
      %3286 = vmatpush1.msra.mxu0 0.0
      %3287 = vmatprep.subr.mxu0 0.0
      %3288 = vmatpush1.msra.mxu0 0.0
      %3289 = vmatprep.subr.mxu0 0.0
      %3290 = vmatpush1.msra.mxu0 0.0
      %3291 = vmatprep.mubr.f32.mxu0 0.0
      %3292 = vmatmul.mubr.f32.gmra.mrb[0].mxu0 %v3148
      %v3293 = vpop.f32.mrb[0].mxu0
      %v3294 = vadd.f32 0.0, %v3293
      %v3295 = vpop.f32.mrb[0].mxu0
      %3296 = vdwg.mxu0
      %v3297 = vadd.f32 %v3129, %v3223
      %v3298 = vadd.f32 %v3130, %v3225
      %v3299 = vadd.f32 %v3131, %v3294
      %s3300 = scalar_lea.vmem %s5, 32
      %v3301 = vld [vmem:[%s3300] sm:$0xff]
      %v3302 = vld [vmem:[#allocation2] sm:$0xff]
      %v3303 = vld [vmem:[#allocation2 + $0x8] sm:$0xf]
      %v3306 = vcombine.high %v3302, %v3302
      %3307 = vrot.lane.b32.xlu0 %v3302, 109
      %v3308 = vpop.permute.xlu0 %3307
      %3309 = vrot.lane.b32.xlu0 %v3306, 109
      %v3310 = vpop.permute.xlu0 %3309
      %3311 = vrot.lane.b32.xlu0 %v3303, 109
      %v3312 = vpop.permute.xlu0 %3311
      %v3313 = vsel %vm1051, %v3308, %v3310
      %v3314 = vsel %vm1051, %v3310, %v3312
      %v3316 = vsel %vm398, %v3301, 0
      %v3318 = vsel %vm402, %v3313, 0
      %v3320 = vsel %vm402, %v3314, 0
      %v3322 = vsel %vm402, %v3312, 0
      %3324 = vmatprep.subr.mxu0 %v3320
      %3325 = vmatpush1.msra.mxu0 %v3318
      %3326 = vmatprep.subr.mxu0 0.0
      %3327 = vmatpush1.msra.mxu0 0.0
      %3328 = vmatprep.subr.mxu0 0.0
      %3329 = vmatpush1.msra.mxu0 0.0
      %3330 = vmatprep.subr.mxu0 0.0
      %3331 = vmatpush1.msra.mxu0 0.0
      %3332 = vmatprep.subr.mxu0 0.0
      %3333 = vmatpush1.msra.mxu0 0.0
      %3334 = vmatprep.subr.mxu0 0.0
      %3335 = vmatpush1.msra.mxu0 0.0
      %3336 = vmatprep.subr.mxu0 0.0
      %3337 = vmatpush1.msra.mxu0 0.0
      %3338 = vmatprep.subr.mxu0 0.0
      %3339 = vmatpush1.msra.mxu0 0.0
      %3340 = vmatprep.subr.mxu0 0.0
      %3341 = vmatpush1.msra.mxu0 0.0
      %3342 = vmatprep.subr.mxu0 0.0
      %3343 = vmatpush1.msra.mxu0 0.0
      %3344 = vmatprep.subr.mxu0 0.0
      %3345 = vmatpush1.msra.mxu0 0.0
      %3346 = vmatprep.subr.mxu0 0.0
      %3347 = vmatpush1.msra.mxu0 0.0
      %3348 = vmatprep.subr.mxu0 0.0
      %3349 = vmatpush1.msra.mxu0 0.0
      %3350 = vmatprep.subr.mxu0 0.0
      %3351 = vmatpush1.msra.mxu0 0.0
      %3352 = vmatprep.subr.mxu0 0.0
      %3353 = vmatpush1.msra.mxu0 0.0
      %3354 = vmatprep.subr.mxu0 0.0
      %3355 = vmatpush1.msra.mxu0 0.0
      %3356 = vmatprep.subr.mxu0 0.0
      %3357 = vmatpush1.msra.mxu0 0.0
      %3358 = vmatprep.subr.mxu0 0.0
      %3359 = vmatpush1.msra.mxu0 0.0
      %3360 = vmatprep.subr.mxu0 0.0
      %3361 = vmatpush1.msra.mxu0 0.0
      %3362 = vmatprep.subr.mxu0 0.0
      %3363 = vmatpush1.msra.mxu0 0.0
      %3364 = vmatprep.subr.mxu0 0.0
      %3365 = vmatpush1.msra.mxu0 0.0
      %3366 = vmatprep.subr.mxu0 0.0
      %3367 = vmatpush1.msra.mxu0 0.0
      %3368 = vmatprep.subr.mxu0 0.0
      %3369 = vmatpush1.msra.mxu0 0.0
      %3370 = vmatprep.subr.mxu0 0.0
      %3371 = vmatpush1.msra.mxu0 0.0
      %3372 = vmatprep.subr.mxu0 0.0
      %3373 = vmatpush1.msra.mxu0 0.0
      %3374 = vmatprep.subr.mxu0 0.0
      %3375 = vmatpush1.msra.mxu0 0.0
      %3376 = vmatprep.subr.mxu0 0.0
      %3377 = vmatpush1.msra.mxu0 0.0
      %3378 = vmatprep.subr.mxu0 0.0
      %3379 = vmatpush1.msra.mxu0 0.0
      %3380 = vmatprep.subr.mxu0 0.0
      %3381 = vmatpush1.msra.mxu0 0.0
      %3382 = vmatprep.subr.mxu0 0.0
      %3383 = vmatpush1.msra.mxu0 0.0
      %3384 = vmatprep.subr.mxu0 0.0
      %3385 = vmatpush1.msra.mxu0 0.0
      %3386 = vmatprep.subr.mxu0 0.0
      %3387 = vmatpush1.msra.mxu0 0.0
      %3388 = vmatprep.mubr.f32.mxu0 0.0
      %3389 = vmatmul.mubr.f32.gmra.mrb[0].mxu0 %v3316
      %v3390 = vpop.f32.mrb[0].mxu0
      %v3391 = vadd.f32 0.0, %v3390
      %v3392 = vpop.f32.mrb[0].mxu0
      %v3393 = vadd.f32 0.0, %v3392
      %3394 = vdwg.mxu0
      %3395 = vmatprep.subr.mxu0 0.0
      %3396 = vmatpush1.msra.mxu0 %v3322
      %3397 = vmatprep.subr.mxu0 0.0
      %3398 = vmatpush1.msra.mxu0 0.0
      %3399 = vmatprep.subr.mxu0 0.0
      %3400 = vmatpush1.msra.mxu0 0.0
      %3401 = vmatprep.subr.mxu0 0.0
      %3402 = vmatpush1.msra.mxu0 0.0
      %3403 = vmatprep.subr.mxu0 0.0
      %3404 = vmatpush1.msra.mxu0 0.0
      %3405 = vmatprep.subr.mxu0 0.0
      %3406 = vmatpush1.msra.mxu0 0.0
      %3407 = vmatprep.subr.mxu0 0.0
      %3408 = vmatpush1.msra.mxu0 0.0
      %3409 = vmatprep.subr.mxu0 0.0
      %3410 = vmatpush1.msra.mxu0 0.0
      %3411 = vmatprep.subr.mxu0 0.0
      %3412 = vmatpush1.msra.mxu0 0.0
      %3413 = vmatprep.subr.mxu0 0.0
      %3414 = vmatpush1.msra.mxu0 0.0
      %3415 = vmatprep.subr.mxu0 0.0
      %3416 = vmatpush1.msra.mxu0 0.0
      %3417 = vmatprep.subr.mxu0 0.0
      %3418 = vmatpush1.msra.mxu0 0.0
      %3419 = vmatprep.subr.mxu0 0.0
      %3420 = vmatpush1.msra.mxu0 0.0
      %3421 = vmatprep.subr.mxu0 0.0
      %3422 = vmatpush1.msra.mxu0 0.0
      %3423 = vmatprep.subr.mxu0 0.0
      %3424 = vmatpush1.msra.mxu0 0.0
      %3425 = vmatprep.subr.mxu0 0.0
      %3426 = vmatpush1.msra.mxu0 0.0
      %3427 = vmatprep.subr.mxu0 0.0
      %3428 = vmatpush1.msra.mxu0 0.0
      %3429 = vmatprep.subr.mxu0 0.0
      %3430 = vmatpush1.msra.mxu0 0.0
      %3431 = vmatprep.subr.mxu0 0.0
      %3432 = vmatpush1.msra.mxu0 0.0
      %3433 = vmatprep.subr.mxu0 0.0
      %3434 = vmatpush1.msra.mxu0 0.0
      %3435 = vmatprep.subr.mxu0 0.0
      %3436 = vmatpush1.msra.mxu0 0.0
      %3437 = vmatprep.subr.mxu0 0.0
      %3438 = vmatpush1.msra.mxu0 0.0
      %3439 = vmatprep.subr.mxu0 0.0
      %3440 = vmatpush1.msra.mxu0 0.0
      %3441 = vmatprep.subr.mxu0 0.0
      %3442 = vmatpush1.msra.mxu0 0.0
      %3443 = vmatprep.subr.mxu0 0.0
      %3444 = vmatpush1.msra.mxu0 0.0
      %3445 = vmatprep.subr.mxu0 0.0
      %3446 = vmatpush1.msra.mxu0 0.0
      %3447 = vmatprep.subr.mxu0 0.0
      %3448 = vmatpush1.msra.mxu0 0.0
      %3449 = vmatprep.subr.mxu0 0.0
      %3450 = vmatpush1.msra.mxu0 0.0
      %3451 = vmatprep.subr.mxu0 0.0
      %3452 = vmatpush1.msra.mxu0 0.0
      %3453 = vmatprep.subr.mxu0 0.0
      %3454 = vmatpush1.msra.mxu0 0.0
      %3455 = vmatprep.subr.mxu0 0.0
      %3456 = vmatpush1.msra.mxu0 0.0
      %3457 = vmatprep.subr.mxu0 0.0
      %3458 = vmatpush1.msra.mxu0 0.0
      %3459 = vmatprep.mubr.f32.mxu0 0.0
      %3460 = vmatmul.mubr.f32.gmra.mrb[0].mxu0 %v3316
      %v3461 = vpop.f32.mrb[0].mxu0
      %v3462 = vadd.f32 0.0, %v3461
      %v3463 = vpop.f32.mrb[0].mxu0
      %3464 = vdwg.mxu0
      %v3465 = vadd.f32 %v3297, %v3391
      %v3466 = vadd.f32 %v3298, %v3393
      %v3467 = vadd.f32 %v3299, %v3462
      %s3468 = scalar_lea.vmem %s6, 32
      %v3469 = vld [vmem:[%s3468] sm:$0xff]
      %v3470 = vld [vmem:[%s375] sm:$0xff]
      %v3471 = vld [vmem:[%s375 + $0x8] sm:$0xf]
      %v3474 = vcombine.high %v3470, %v3470
      %3475 = vrot.lane.b32.xlu0 %v3470, 109
      %v3476 = vpop.permute.xlu0 %3475
      %3477 = vrot.lane.b32.xlu0 %v3474, 109
      %v3478 = vpop.permute.xlu0 %3477
      %3479 = vrot.lane.b32.xlu0 %v3471, 109
      %v3480 = vpop.permute.xlu0 %3479
      %v3481 = vsel %vm1051, %v3476, %v3478
      %v3482 = vsel %vm1051, %v3478, %v3480
      %v3484 = vsel %vm398, %v3469, 0
      %v3486 = vsel %vm402, %v3481, 0
      %v3488 = vsel %vm402, %v3482, 0
      %v3490 = vsel %vm402, %v3480, 0
      %3492 = vmatprep.subr.mxu0 %v3488
      %3493 = vmatpush1.msra.mxu0 %v3486
      %3494 = vmatprep.subr.mxu0 0.0
      %3495 = vmatpush1.msra.mxu0 0.0
      %3496 = vmatprep.subr.mxu0 0.0
      %3497 = vmatpush1.msra.mxu0 0.0
      %3498 = vmatprep.subr.mxu0 0.0
      %3499 = vmatpush1.msra.mxu0 0.0
      %3500 = vmatprep.subr.mxu0 0.0
      %3501 = vmatpush1.msra.mxu0 0.0
      %3502 = vmatprep.subr.mxu0 0.0
      %3503 = vmatpush1.msra.mxu0 0.0
      %3504 = vmatprep.subr.mxu0 0.0
      %3505 = vmatpush1.msra.mxu0 0.0
      %3506 = vmatprep.subr.mxu0 0.0
      %3507 = vmatpush1.msra.mxu0 0.0
      %3508 = vmatprep.subr.mxu0 0.0
      %3509 = vmatpush1.msra.mxu0 0.0
      %3510 = vmatprep.subr.mxu0 0.0
      %3511 = vmatpush1.msra.mxu0 0.0
      %3512 = vmatprep.subr.mxu0 0.0
      %3513 = vmatpush1.msra.mxu0 0.0
      %3514 = vmatprep.subr.mxu0 0.0
      %3515 = vmatpush1.msra.mxu0 0.0
      %3516 = vmatprep.subr.mxu0 0.0
      %3517 = vmatpush1.msra.mxu0 0.0
      %3518 = vmatprep.subr.mxu0 0.0
      %3519 = vmatpush1.msra.mxu0 0.0
      %3520 = vmatprep.subr.mxu0 0.0
      %3521 = vmatpush1.msra.mxu0 0.0
      %3522 = vmatprep.subr.mxu0 0.0
      %3523 = vmatpush1.msra.mxu0 0.0
      %3524 = vmatprep.subr.mxu0 0.0
      %3525 = vmatpush1.msra.mxu0 0.0
      %3526 = vmatprep.subr.mxu0 0.0
      %3527 = vmatpush1.msra.mxu0 0.0
      %3528 = vmatprep.subr.mxu0 0.0
      %3529 = vmatpush1.msra.mxu0 0.0
      %3530 = vmatprep.subr.mxu0 0.0
      %3531 = vmatpush1.msra.mxu0 0.0
      %3532 = vmatprep.subr.mxu0 0.0
      %3533 = vmatpush1.msra.mxu0 0.0
      %3534 = vmatprep.subr.mxu0 0.0
      %3535 = vmatpush1.msra.mxu0 0.0
      %3536 = vmatprep.subr.mxu0 0.0
      %3537 = vmatpush1.msra.mxu0 0.0
      %3538 = vmatprep.subr.mxu0 0.0
      %3539 = vmatpush1.msra.mxu0 0.0
      %3540 = vmatprep.subr.mxu0 0.0
      %3541 = vmatpush1.msra.mxu0 0.0
      %3542 = vmatprep.subr.mxu0 0.0
      %3543 = vmatpush1.msra.mxu0 0.0
      %3544 = vmatprep.subr.mxu0 0.0
      %3545 = vmatpush1.msra.mxu0 0.0
      %3546 = vmatprep.subr.mxu0 0.0
      %3547 = vmatpush1.msra.mxu0 0.0
      %3548 = vmatprep.subr.mxu0 0.0
      %3549 = vmatpush1.msra.mxu0 0.0
      %3550 = vmatprep.subr.mxu0 0.0
      %3551 = vmatpush1.msra.mxu0 0.0
      %3552 = vmatprep.subr.mxu0 0.0
      %3553 = vmatpush1.msra.mxu0 0.0
      %3554 = vmatprep.subr.mxu0 0.0
      %3555 = vmatpush1.msra.mxu0 0.0
      %3556 = vmatprep.mubr.f32.mxu0 0.0
      %3557 = vmatmul.mubr.f32.gmra.mrb[0].mxu0 %v3484
      %v3558 = vpop.f32.mrb[0].mxu0
      %v3559 = vadd.f32 0.0, %v3558
      %v3560 = vpop.f32.mrb[0].mxu0
      %v3561 = vadd.f32 0.0, %v3560
      %3562 = vdwg.mxu0
      %3563 = vmatprep.subr.mxu0 0.0
      %3564 = vmatpush1.msra.mxu0 %v3490
      %3565 = vmatprep.subr.mxu0 0.0
      %3566 = vmatpush1.msra.mxu0 0.0
      %3567 = vmatprep.subr.mxu0 0.0
      %3568 = vmatpush1.msra.mxu0 0.0
      %3569 = vmatprep.subr.mxu0 0.0
      %3570 = vmatpush1.msra.mxu0 0.0
      %3571 = vmatprep.subr.mxu0 0.0
      %3572 = vmatpush1.msra.mxu0 0.0
      %3573 = vmatprep.subr.mxu0 0.0
      %3574 = vmatpush1.msra.mxu0 0.0
      %3575 = vmatprep.subr.mxu0 0.0
      %3576 = vmatpush1.msra.mxu0 0.0
      %3577 = vmatprep.subr.mxu0 0.0
      %3578 = vmatpush1.msra.mxu0 0.0
      %3579 = vmatprep.subr.mxu0 0.0
      %3580 = vmatpush1.msra.mxu0 0.0
      %3581 = vmatprep.subr.mxu0 0.0
      %3582 = vmatpush1.msra.mxu0 0.0
      %3583 = vmatprep.subr.mxu0 0.0
      %3584 = vmatpush1.msra.mxu0 0.0
      %3585 = vmatprep.subr.mxu0 0.0
      %3586 = vmatpush1.msra.mxu0 0.0
      %3587 = vmatprep.subr.mxu0 0.0
      %3588 = vmatpush1.msra.mxu0 0.0
      %3589 = vmatprep.subr.mxu0 0.0
      %3590 = vmatpush1.msra.mxu0 0.0
      %3591 = vmatprep.subr.mxu0 0.0
      %3592 = vmatpush1.msra.mxu0 0.0
      %3593 = vmatprep.subr.mxu0 0.0
      %3594 = vmatpush1.msra.mxu0 0.0
      %3595 = vmatprep.subr.mxu0 0.0
      %3596 = vmatpush1.msra.mxu0 0.0
      %3597 = vmatprep.subr.mxu0 0.0
      %3598 = vmatpush1.msra.mxu0 0.0
      %3599 = vmatprep.subr.mxu0 0.0
      %3600 = vmatpush1.msra.mxu0 0.0
      %3601 = vmatprep.subr.mxu0 0.0
      %3602 = vmatpush1.msra.mxu0 0.0
      %3603 = vmatprep.subr.mxu0 0.0
      %3604 = vmatpush1.msra.mxu0 0.0
      %3605 = vmatprep.subr.mxu0 0.0
      %3606 = vmatpush1.msra.mxu0 0.0
      %3607 = vmatprep.subr.mxu0 0.0
      %3608 = vmatpush1.msra.mxu0 0.0
      %3609 = vmatprep.subr.mxu0 0.0
      %3610 = vmatpush1.msra.mxu0 0.0
      %3611 = vmatprep.subr.mxu0 0.0
      %3612 = vmatpush1.msra.mxu0 0.0
      %3613 = vmatprep.subr.mxu0 0.0
      %3614 = vmatpush1.msra.mxu0 0.0
      %3615 = vmatprep.subr.mxu0 0.0
      %3616 = vmatpush1.msra.mxu0 0.0
      %3617 = vmatprep.subr.mxu0 0.0
      %3618 = vmatpush1.msra.mxu0 0.0
      %3619 = vmatprep.subr.mxu0 0.0
      %3620 = vmatpush1.msra.mxu0 0.0
      %3621 = vmatprep.subr.mxu0 0.0
      %3622 = vmatpush1.msra.mxu0 0.0
      %3623 = vmatprep.subr.mxu0 0.0
      %3624 = vmatpush1.msra.mxu0 0.0
      %3625 = vmatprep.subr.mxu0 0.0
      %3626 = vmatpush1.msra.mxu0 0.0
      %3627 = vmatprep.mubr.f32.mxu0 0.0
      %3628 = vmatmul.mubr.f32.gmra.mrb[0].mxu0 %v3484
      %v3629 = vpop.f32.mrb[0].mxu0
      %v3630 = vadd.f32 0.0, %v3629
      %v3631 = vpop.f32.mrb[0].mxu0
      %3632 = vdwg.mxu0
      %v3633 = vadd.f32 %v3465, %v3559
      %v3634 = vadd.f32 %v3466, %v3561
      %v3635 = vadd.f32 %v3467, %v3630
      %s3636 = scalar_lea.vmem %s5, 40
      %v3637 = vld [vmem:[%s3636] sm:$0xff]
      %v3638 = vld [vmem:[#allocation2] sm:$0xff]
      %v3639 = vld [vmem:[#allocation2 + $0x8] sm:$0xf]
      %v3642 = vcombine.high %v3638, %v3638
      %3643 = vrot.lane.b32.xlu0 %v3638, 108
      %v3644 = vpop.permute.xlu0 %3643
      %3645 = vrot.lane.b32.xlu0 %v3642, 108
      %v3646 = vpop.permute.xlu0 %3645
      %3647 = vrot.lane.b32.xlu0 %v3639, 108
      %v3648 = vpop.permute.xlu0 %3647
      %v3649 = vsel %vm1220, %v3644, %v3646
      %v3650 = vsel %vm1220, %v3646, %v3648
      %v3652 = vsel %vm398, %v3637, 0
      %v3654 = vsel %vm402, %v3649, 0
      %v3656 = vsel %vm402, %v3650, 0
      %v3658 = vsel %vm402, %v3648, 0
      %3660 = vmatprep.subr.mxu0 %v3656
      %3661 = vmatpush1.msra.mxu0 %v3654
      %3662 = vmatprep.subr.mxu0 0.0
      %3663 = vmatpush1.msra.mxu0 0.0
      %3664 = vmatprep.subr.mxu0 0.0
      %3665 = vmatpush1.msra.mxu0 0.0
      %3666 = vmatprep.subr.mxu0 0.0
      %3667 = vmatpush1.msra.mxu0 0.0
      %3668 = vmatprep.subr.mxu0 0.0
      %3669 = vmatpush1.msra.mxu0 0.0
      %3670 = vmatprep.subr.mxu0 0.0
      %3671 = vmatpush1.msra.mxu0 0.0
      %3672 = vmatprep.subr.mxu0 0.0
      %3673 = vmatpush1.msra.mxu0 0.0
      %3674 = vmatprep.subr.mxu0 0.0
      %3675 = vmatpush1.msra.mxu0 0.0
      %3676 = vmatprep.subr.mxu0 0.0
      %3677 = vmatpush1.msra.mxu0 0.0
      %3678 = vmatprep.subr.mxu0 0.0
      %3679 = vmatpush1.msra.mxu0 0.0
      %3680 = vmatprep.subr.mxu0 0.0
      %3681 = vmatpush1.msra.mxu0 0.0
      %3682 = vmatprep.subr.mxu0 0.0
      %3683 = vmatpush1.msra.mxu0 0.0
      %3684 = vmatprep.subr.mxu0 0.0
      %3685 = vmatpush1.msra.mxu0 0.0
      %3686 = vmatprep.subr.mxu0 0.0
      %3687 = vmatpush1.msra.mxu0 0.0
      %3688 = vmatprep.subr.mxu0 0.0
      %3689 = vmatpush1.msra.mxu0 0.0
      %3690 = vmatprep.subr.mxu0 0.0
      %3691 = vmatpush1.msra.mxu0 0.0
      %3692 = vmatprep.subr.mxu0 0.0
      %3693 = vmatpush1.msra.mxu0 0.0
      %3694 = vmatprep.subr.mxu0 0.0
      %3695 = vmatpush1.msra.mxu0 0.0
      %3696 = vmatprep.subr.mxu0 0.0
      %3697 = vmatpush1.msra.mxu0 0.0
      %3698 = vmatprep.subr.mxu0 0.0
      %3699 = vmatpush1.msra.mxu0 0.0
      %3700 = vmatprep.subr.mxu0 0.0
      %3701 = vmatpush1.msra.mxu0 0.0
      %3702 = vmatprep.subr.mxu0 0.0
      %3703 = vmatpush1.msra.mxu0 0.0
      %3704 = vmatprep.subr.mxu0 0.0
      %3705 = vmatpush1.msra.mxu0 0.0
      %3706 = vmatprep.subr.mxu0 0.0
      %3707 = vmatpush1.msra.mxu0 0.0
      %3708 = vmatprep.subr.mxu0 0.0
      %3709 = vmatpush1.msra.mxu0 0.0
      %3710 = vmatprep.subr.mxu0 0.0
      %3711 = vmatpush1.msra.mxu0 0.0
      %3712 = vmatprep.subr.mxu0 0.0
      %3713 = vmatpush1.msra.mxu0 0.0
      %3714 = vmatprep.subr.mxu0 0.0
      %3715 = vmatpush1.msra.mxu0 0.0
      %3716 = vmatprep.subr.mxu0 0.0
      %3717 = vmatpush1.msra.mxu0 0.0
      %3718 = vmatprep.subr.mxu0 0.0
      %3719 = vmatpush1.msra.mxu0 0.0
      %3720 = vmatprep.subr.mxu0 0.0
      %3721 = vmatpush1.msra.mxu0 0.0
      %3722 = vmatprep.subr.mxu0 0.0
      %3723 = vmatpush1.msra.mxu0 0.0
      %3724 = vmatprep.mubr.f32.mxu0 0.0
      %3725 = vmatmul.mubr.f32.gmra.mrb[0].mxu0 %v3652
      %v3726 = vpop.f32.mrb[0].mxu0
      %v3727 = vadd.f32 0.0, %v3726
      %v3728 = vpop.f32.mrb[0].mxu0
      %v3729 = vadd.f32 0.0, %v3728
      %3730 = vdwg.mxu0
      %3731 = vmatprep.subr.mxu0 0.0
      %3732 = vmatpush1.msra.mxu0 %v3658
      %3733 = vmatprep.subr.mxu0 0.0
      %3734 = vmatpush1.msra.mxu0 0.0
      %3735 = vmatprep.subr.mxu0 0.0
      %3736 = vmatpush1.msra.mxu0 0.0
      %3737 = vmatprep.subr.mxu0 0.0
      %3738 = vmatpush1.msra.mxu0 0.0
      %3739 = vmatprep.subr.mxu0 0.0
      %3740 = vmatpush1.msra.mxu0 0.0
      %3741 = vmatprep.subr.mxu0 0.0
      %3742 = vmatpush1.msra.mxu0 0.0
      %3743 = vmatprep.subr.mxu0 0.0
      %3744 = vmatpush1.msra.mxu0 0.0
      %3745 = vmatprep.subr.mxu0 0.0
      %3746 = vmatpush1.msra.mxu0 0.0
      %3747 = vmatprep.subr.mxu0 0.0
      %3748 = vmatpush1.msra.mxu0 0.0
      %3749 = vmatprep.subr.mxu0 0.0
      %3750 = vmatpush1.msra.mxu0 0.0
      %3751 = vmatprep.subr.mxu0 0.0
      %3752 = vmatpush1.msra.mxu0 0.0
      %3753 = vmatprep.subr.mxu0 0.0
      %3754 = vmatpush1.msra.mxu0 0.0
      %3755 = vmatprep.subr.mxu0 0.0
      %3756 = vmatpush1.msra.mxu0 0.0
      %3757 = vmatprep.subr.mxu0 0.0
      %3758 = vmatpush1.msra.mxu0 0.0
      %3759 = vmatprep.subr.mxu0 0.0
      %3760 = vmatpush1.msra.mxu0 0.0
      %3761 = vmatprep.subr.mxu0 0.0
      %3762 = vmatpush1.msra.mxu0 0.0
      %3763 = vmatprep.subr.mxu0 0.0
      %3764 = vmatpush1.msra.mxu0 0.0
      %3765 = vmatprep.subr.mxu0 0.0
      %3766 = vmatpush1.msra.mxu0 0.0
      %3767 = vmatprep.subr.mxu0 0.0
      %3768 = vmatpush1.msra.mxu0 0.0
      %3769 = vmatprep.subr.mxu0 0.0
      %3770 = vmatpush1.msra.mxu0 0.0
      %3771 = vmatprep.subr.mxu0 0.0
      %3772 = vmatpush1.msra.mxu0 0.0
      %3773 = vmatprep.subr.mxu0 0.0
      %3774 = vmatpush1.msra.mxu0 0.0
      %3775 = vmatprep.subr.mxu0 0.0
      %3776 = vmatpush1.msra.mxu0 0.0
      %3777 = vmatprep.subr.mxu0 0.0
      %3778 = vmatpush1.msra.mxu0 0.0
      %3779 = vmatprep.subr.mxu0 0.0
      %3780 = vmatpush1.msra.mxu0 0.0
      %3781 = vmatprep.subr.mxu0 0.0
      %3782 = vmatpush1.msra.mxu0 0.0
      %3783 = vmatprep.subr.mxu0 0.0
      %3784 = vmatpush1.msra.mxu0 0.0
      %3785 = vmatprep.subr.mxu0 0.0
      %3786 = vmatpush1.msra.mxu0 0.0
      %3787 = vmatprep.subr.mxu0 0.0
      %3788 = vmatpush1.msra.mxu0 0.0
      %3789 = vmatprep.subr.mxu0 0.0
      %3790 = vmatpush1.msra.mxu0 0.0
      %3791 = vmatprep.subr.mxu0 0.0
      %3792 = vmatpush1.msra.mxu0 0.0
      %3793 = vmatprep.subr.mxu0 0.0
      %3794 = vmatpush1.msra.mxu0 0.0
      %3795 = vmatprep.mubr.f32.mxu0 0.0
      %3796 = vmatmul.mubr.f32.gmra.mrb[0].mxu0 %v3652
      %v3797 = vpop.f32.mrb[0].mxu0
      %v3798 = vadd.f32 0.0, %v3797
      %v3799 = vpop.f32.mrb[0].mxu0
      %3800 = vdwg.mxu0
      %v3801 = vadd.f32 %v3633, %v3727
      %v3802 = vadd.f32 %v3634, %v3729
      %v3803 = vadd.f32 %v3635, %v3798
      %s3804 = scalar_lea.vmem %s6, 40
      %v3805 = vld [vmem:[%s3804] sm:$0xff]
      %v3806 = vld [vmem:[%s375] sm:$0xff]
      %v3807 = vld [vmem:[%s375 + $0x8] sm:$0xf]
      %v3810 = vcombine.high %v3806, %v3806
      %3811 = vrot.lane.b32.xlu0 %v3806, 108
      %v3812 = vpop.permute.xlu0 %3811
      %3813 = vrot.lane.b32.xlu0 %v3810, 108
      %v3814 = vpop.permute.xlu0 %3813
      %3815 = vrot.lane.b32.xlu0 %v3807, 108
      %v3816 = vpop.permute.xlu0 %3815
      %v3817 = vsel %vm1220, %v3812, %v3814
      %v3818 = vsel %vm1220, %v3814, %v3816
      %v3820 = vsel %vm398, %v3805, 0
      %v3822 = vsel %vm402, %v3817, 0
      %v3824 = vsel %vm402, %v3818, 0
      %v3826 = vsel %vm402, %v3816, 0
      %3828 = vmatprep.subr.mxu0 %v3824
      %3829 = vmatpush1.msra.mxu0 %v3822
      %3830 = vmatprep.subr.mxu0 0.0
      %3831 = vmatpush1.msra.mxu0 0.0
      %3832 = vmatprep.subr.mxu0 0.0
      %3833 = vmatpush1.msra.mxu0 0.0
      %3834 = vmatprep.subr.mxu0 0.0
      %3835 = vmatpush1.msra.mxu0 0.0
      %3836 = vmatprep.subr.mxu0 0.0
      %3837 = vmatpush1.msra.mxu0 0.0
      %3838 = vmatprep.subr.mxu0 0.0
      %3839 = vmatpush1.msra.mxu0 0.0
      %3840 = vmatprep.subr.mxu0 0.0
      %3841 = vmatpush1.msra.mxu0 0.0
      %3842 = vmatprep.subr.mxu0 0.0
      %3843 = vmatpush1.msra.mxu0 0.0
      %3844 = vmatprep.subr.mxu0 0.0
      %3845 = vmatpush1.msra.mxu0 0.0
      %3846 = vmatprep.subr.mxu0 0.0
      %3847 = vmatpush1.msra.mxu0 0.0
      %3848 = vmatprep.subr.mxu0 0.0
      %3849 = vmatpush1.msra.mxu0 0.0
      %3850 = vmatprep.subr.mxu0 0.0
      %3851 = vmatpush1.msra.mxu0 0.0
      %3852 = vmatprep.subr.mxu0 0.0
      %3853 = vmatpush1.msra.mxu0 0.0
      %3854 = vmatprep.subr.mxu0 0.0
      %3855 = vmatpush1.msra.mxu0 0.0
      %3856 = vmatprep.subr.mxu0 0.0
      %3857 = vmatpush1.msra.mxu0 0.0
      %3858 = vmatprep.subr.mxu0 0.0
      %3859 = vmatpush1.msra.mxu0 0.0
      %3860 = vmatprep.subr.mxu0 0.0
      %3861 = vmatpush1.msra.mxu0 0.0
      %3862 = vmatprep.subr.mxu0 0.0
      %3863 = vmatpush1.msra.mxu0 0.0
      %3864 = vmatprep.subr.mxu0 0.0
      %3865 = vmatpush1.msra.mxu0 0.0
      %3866 = vmatprep.subr.mxu0 0.0
      %3867 = vmatpush1.msra.mxu0 0.0
      %3868 = vmatprep.subr.mxu0 0.0
      %3869 = vmatpush1.msra.mxu0 0.0
      %3870 = vmatprep.subr.mxu0 0.0
      %3871 = vmatpush1.msra.mxu0 0.0
      %3872 = vmatprep.subr.mxu0 0.0
      %3873 = vmatpush1.msra.mxu0 0.0
      %3874 = vmatprep.subr.mxu0 0.0
      %3875 = vmatpush1.msra.mxu0 0.0
      %3876 = vmatprep.subr.mxu0 0.0
      %3877 = vmatpush1.msra.mxu0 0.0
      %3878 = vmatprep.subr.mxu0 0.0
      %3879 = vmatpush1.msra.mxu0 0.0
      %3880 = vmatprep.subr.mxu0 0.0
      %3881 = vmatpush1.msra.mxu0 0.0
      %3882 = vmatprep.subr.mxu0 0.0
      %3883 = vmatpush1.msra.mxu0 0.0
      %3884 = vmatprep.subr.mxu0 0.0
      %3885 = vmatpush1.msra.mxu0 0.0
      %3886 = vmatprep.subr.mxu0 0.0
      %3887 = vmatpush1.msra.mxu0 0.0
      %3888 = vmatprep.subr.mxu0 0.0
      %3889 = vmatpush1.msra.mxu0 0.0
      %3890 = vmatprep.subr.mxu0 0.0
      %3891 = vmatpush1.msra.mxu0 0.0
      %3892 = vmatprep.mubr.f32.mxu0 0.0
      %3893 = vmatmul.mubr.f32.gmra.mrb[0].mxu0 %v3820
      %v3894 = vpop.f32.mrb[0].mxu0
      %v3895 = vadd.f32 0.0, %v3894
      %v3896 = vpop.f32.mrb[0].mxu0
      %v3897 = vadd.f32 0.0, %v3896
      %3898 = vdwg.mxu0
      %3899 = vmatprep.subr.mxu0 0.0
      %3900 = vmatpush1.msra.mxu0 %v3826
      %3901 = vmatprep.subr.mxu0 0.0
      %3902 = vmatpush1.msra.mxu0 0.0
      %3903 = vmatprep.subr.mxu0 0.0
      %3904 = vmatpush1.msra.mxu0 0.0
      %3905 = vmatprep.subr.mxu0 0.0
      %3906 = vmatpush1.msra.mxu0 0.0
      %3907 = vmatprep.subr.mxu0 0.0
      %3908 = vmatpush1.msra.mxu0 0.0
      %3909 = vmatprep.subr.mxu0 0.0
      %3910 = vmatpush1.msra.mxu0 0.0
      %3911 = vmatprep.subr.mxu0 0.0
      %3912 = vmatpush1.msra.mxu0 0.0
      %3913 = vmatprep.subr.mxu0 0.0
      %3914 = vmatpush1.msra.mxu0 0.0
      %3915 = vmatprep.subr.mxu0 0.0
      %3916 = vmatpush1.msra.mxu0 0.0
      %3917 = vmatprep.subr.mxu0 0.0
      %3918 = vmatpush1.msra.mxu0 0.0
      %3919 = vmatprep.subr.mxu0 0.0
      %3920 = vmatpush1.msra.mxu0 0.0
      %3921 = vmatprep.subr.mxu0 0.0
      %3922 = vmatpush1.msra.mxu0 0.0
      %3923 = vmatprep.subr.mxu0 0.0
      %3924 = vmatpush1.msra.mxu0 0.0
      %3925 = vmatprep.subr.mxu0 0.0
      %3926 = vmatpush1.msra.mxu0 0.0
      %3927 = vmatprep.subr.mxu0 0.0
      %3928 = vmatpush1.msra.mxu0 0.0
      %3929 = vmatprep.subr.mxu0 0.0
      %3930 = vmatpush1.msra.mxu0 0.0
      %3931 = vmatprep.subr.mxu0 0.0
      %3932 = vmatpush1.msra.mxu0 0.0
      %3933 = vmatprep.subr.mxu0 0.0
      %3934 = vmatpush1.msra.mxu0 0.0
      %3935 = vmatprep.subr.mxu0 0.0
      %3936 = vmatpush1.msra.mxu0 0.0
      %3937 = vmatprep.subr.mxu0 0.0
      %3938 = vmatpush1.msra.mxu0 0.0
      %3939 = vmatprep.subr.mxu0 0.0
      %3940 = vmatpush1.msra.mxu0 0.0
      %3941 = vmatprep.subr.mxu0 0.0
      %3942 = vmatpush1.msra.mxu0 0.0
      %3943 = vmatprep.subr.mxu0 0.0
      %3944 = vmatpush1.msra.mxu0 0.0
      %3945 = vmatprep.subr.mxu0 0.0
      %3946 = vmatpush1.msra.mxu0 0.0
      %3947 = vmatprep.subr.mxu0 0.0
      %3948 = vmatpush1.msra.mxu0 0.0
      %3949 = vmatprep.subr.mxu0 0.0
      %3950 = vmatpush1.msra.mxu0 0.0
      %3951 = vmatprep.subr.mxu0 0.0
      %3952 = vmatpush1.msra.mxu0 0.0
      %3953 = vmatprep.subr.mxu0 0.0
      %3954 = vmatpush1.msra.mxu0 0.0
      %3955 = vmatprep.subr.mxu0 0.0
      %3956 = vmatpush1.msra.mxu0 0.0
      %3957 = vmatprep.subr.mxu0 0.0
      %3958 = vmatpush1.msra.mxu0 0.0
      %3959 = vmatprep.subr.mxu0 0.0
      %3960 = vmatpush1.msra.mxu0 0.0
      %3961 = vmatprep.subr.mxu0 0.0
      %3962 = vmatpush1.msra.mxu0 0.0
      %3963 = vmatprep.mubr.f32.mxu0 0.0
      %3964 = vmatmul.mubr.f32.gmra.mrb[0].mxu0 %v3820
      %v3965 = vpop.f32.mrb[0].mxu0
      %v3966 = vadd.f32 0.0, %v3965
      %v3967 = vpop.f32.mrb[0].mxu0
      %3968 = vdwg.mxu0
      %v3969 = vadd.f32 %v3801, %v3895
      %v3970 = vadd.f32 %v3802, %v3897
      %v3971 = vadd.f32 %v3803, %v3966
      %s3972 = scalar_lea.vmem %s5, 48
      %v3973 = vld [vmem:[%s3972] sm:$0xff]
      %v3974 = vld [vmem:[#allocation2] sm:$0xff]
      %v3975 = vld [vmem:[#allocation2 + $0x8] sm:$0xf]
      %v3978 = vcombine.high %v3974, %v3974
      %3979 = vrot.lane.b32.xlu0 %v3974, 92
      %v3980 = vpop.permute.xlu0 %3979
      %3981 = vrot.lane.b32.xlu0 %v3978, 92
      %v3982 = vpop.permute.xlu0 %3981
      %3983 = vrot.lane.b32.xlu0 %v3975, 92
      %v3984 = vpop.permute.xlu0 %3983
      %v3985 = vsel %vm1389, %v3980, %v3982
      %v3986 = vsel %vm1389, %v3982, %v3984
      %v3988 = vsel %vm398, %v3973, 0
      %v3990 = vsel %vm402, %v3985, 0
      %v3992 = vsel %vm402, %v3986, 0
      %v3994 = vsel %vm402, %v3984, 0
      %3996 = vmatprep.subr.mxu0 %v3992
      %3997 = vmatpush1.msra.mxu0 %v3990
      %3998 = vmatprep.subr.mxu0 0.0
      %3999 = vmatpush1.msra.mxu0 0.0
      %4000 = vmatprep.subr.mxu0 0.0
      %4001 = vmatpush1.msra.mxu0 0.0
      %4002 = vmatprep.subr.mxu0 0.0
      %4003 = vmatpush1.msra.mxu0 0.0
      %4004 = vmatprep.subr.mxu0 0.0
      %4005 = vmatpush1.msra.mxu0 0.0
      %4006 = vmatprep.subr.mxu0 0.0
      %4007 = vmatpush1.msra.mxu0 0.0
      %4008 = vmatprep.subr.mxu0 0.0
      %4009 = vmatpush1.msra.mxu0 0.0
      %4010 = vmatprep.subr.mxu0 0.0
      %4011 = vmatpush1.msra.mxu0 0.0
      %4012 = vmatprep.subr.mxu0 0.0
      %4013 = vmatpush1.msra.mxu0 0.0
      %4014 = vmatprep.subr.mxu0 0.0
      %4015 = vmatpush1.msra.mxu0 0.0
      %4016 = vmatprep.subr.mxu0 0.0
      %4017 = vmatpush1.msra.mxu0 0.0
      %4018 = vmatprep.subr.mxu0 0.0
      %4019 = vmatpush1.msra.mxu0 0.0
      %4020 = vmatprep.subr.mxu0 0.0
      %4021 = vmatpush1.msra.mxu0 0.0
      %4022 = vmatprep.subr.mxu0 0.0
      %4023 = vmatpush1.msra.mxu0 0.0
      %4024 = vmatprep.subr.mxu0 0.0
      %4025 = vmatpush1.msra.mxu0 0.0
      %4026 = vmatprep.subr.mxu0 0.0
      %4027 = vmatpush1.msra.mxu0 0.0
      %4028 = vmatprep.subr.mxu0 0.0
      %4029 = vmatpush1.msra.mxu0 0.0
      %4030 = vmatprep.subr.mxu0 0.0
      %4031 = vmatpush1.msra.mxu0 0.0
      %4032 = vmatprep.subr.mxu0 0.0
      %4033 = vmatpush1.msra.mxu0 0.0
      %4034 = vmatprep.subr.mxu0 0.0
      %4035 = vmatpush1.msra.mxu0 0.0
      %4036 = vmatprep.subr.mxu0 0.0
      %4037 = vmatpush1.msra.mxu0 0.0
      %4038 = vmatprep.subr.mxu0 0.0
      %4039 = vmatpush1.msra.mxu0 0.0
      %4040 = vmatprep.subr.mxu0 0.0
      %4041 = vmatpush1.msra.mxu0 0.0
      %4042 = vmatprep.subr.mxu0 0.0
      %4043 = vmatpush1.msra.mxu0 0.0
      %4044 = vmatprep.subr.mxu0 0.0
      %4045 = vmatpush1.msra.mxu0 0.0
      %4046 = vmatprep.subr.mxu0 0.0
      %4047 = vmatpush1.msra.mxu0 0.0
      %4048 = vmatprep.subr.mxu0 0.0
      %4049 = vmatpush1.msra.mxu0 0.0
      %4050 = vmatprep.subr.mxu0 0.0
      %4051 = vmatpush1.msra.mxu0 0.0
      %4052 = vmatprep.subr.mxu0 0.0
      %4053 = vmatpush1.msra.mxu0 0.0
      %4054 = vmatprep.subr.mxu0 0.0
      %4055 = vmatpush1.msra.mxu0 0.0
      %4056 = vmatprep.subr.mxu0 0.0
      %4057 = vmatpush1.msra.mxu0 0.0
      %4058 = vmatprep.subr.mxu0 0.0
      %4059 = vmatpush1.msra.mxu0 0.0
      %4060 = vmatprep.mubr.f32.mxu0 0.0
      %4061 = vmatmul.mubr.f32.gmra.mrb[0].mxu0 %v3988
      %v4062 = vpop.f32.mrb[0].mxu0
      %v4063 = vadd.f32 0.0, %v4062
      %v4064 = vpop.f32.mrb[0].mxu0
      %v4065 = vadd.f32 0.0, %v4064
      %4066 = vdwg.mxu0
      %4067 = vmatprep.subr.mxu0 0.0
      %4068 = vmatpush1.msra.mxu0 %v3994
      %4069 = vmatprep.subr.mxu0 0.0
      %4070 = vmatpush1.msra.mxu0 0.0
      %4071 = vmatprep.subr.mxu0 0.0
      %4072 = vmatpush1.msra.mxu0 0.0
      %4073 = vmatprep.subr.mxu0 0.0
      %4074 = vmatpush1.msra.mxu0 0.0
      %4075 = vmatprep.subr.mxu0 0.0
      %4076 = vmatpush1.msra.mxu0 0.0
      %4077 = vmatprep.subr.mxu0 0.0
      %4078 = vmatpush1.msra.mxu0 0.0
      %4079 = vmatprep.subr.mxu0 0.0
      %4080 = vmatpush1.msra.mxu0 0.0
      %4081 = vmatprep.subr.mxu0 0.0
      %4082 = vmatpush1.msra.mxu0 0.0
      %4083 = vmatprep.subr.mxu0 0.0
      %4084 = vmatpush1.msra.mxu0 0.0
      %4085 = vmatprep.subr.mxu0 0.0
      %4086 = vmatpush1.msra.mxu0 0.0
      %4087 = vmatprep.subr.mxu0 0.0
      %4088 = vmatpush1.msra.mxu0 0.0
      %4089 = vmatprep.subr.mxu0 0.0
      %4090 = vmatpush1.msra.mxu0 0.0
      %4091 = vmatprep.subr.mxu0 0.0
      %4092 = vmatpush1.msra.mxu0 0.0
      %4093 = vmatprep.subr.mxu0 0.0
      %4094 = vmatpush1.msra.mxu0 0.0
      %4095 = vmatprep.subr.mxu0 0.0
      %4096 = vmatpush1.msra.mxu0 0.0
      %4097 = vmatprep.subr.mxu0 0.0
      %4098 = vmatpush1.msra.mxu0 0.0
      %4099 = vmatprep.subr.mxu0 0.0
      %4100 = vmatpush1.msra.mxu0 0.0
      %4101 = vmatprep.subr.mxu0 0.0
      %4102 = vmatpush1.msra.mxu0 0.0
      %4103 = vmatprep.subr.mxu0 0.0
      %4104 = vmatpush1.msra.mxu0 0.0
      %4105 = vmatprep.subr.mxu0 0.0
      %4106 = vmatpush1.msra.mxu0 0.0
      %4107 = vmatprep.subr.mxu0 0.0
      %4108 = vmatpush1.msra.mxu0 0.0
      %4109 = vmatprep.subr.mxu0 0.0
      %4110 = vmatpush1.msra.mxu0 0.0
      %4111 = vmatprep.subr.mxu0 0.0
      %4112 = vmatpush1.msra.mxu0 0.0
      %4113 = vmatprep.subr.mxu0 0.0
      %4114 = vmatpush1.msra.mxu0 0.0
      %4115 = vmatprep.subr.mxu0 0.0
      %4116 = vmatpush1.msra.mxu0 0.0
      %4117 = vmatprep.subr.mxu0 0.0
      %4118 = vmatpush1.msra.mxu0 0.0
      %4119 = vmatprep.subr.mxu0 0.0
      %4120 = vmatpush1.msra.mxu0 0.0
      %4121 = vmatprep.subr.mxu0 0.0
      %4122 = vmatpush1.msra.mxu0 0.0
      %4123 = vmatprep.subr.mxu0 0.0
      %4124 = vmatpush1.msra.mxu0 0.0
      %4125 = vmatprep.subr.mxu0 0.0
      %4126 = vmatpush1.msra.mxu0 0.0
      %4127 = vmatprep.subr.mxu0 0.0
      %4128 = vmatpush1.msra.mxu0 0.0
      %4129 = vmatprep.subr.mxu0 0.0
      %4130 = vmatpush1.msra.mxu0 0.0
      %4131 = vmatprep.mubr.f32.mxu0 0.0
      %4132 = vmatmul.mubr.f32.gmra.mrb[0].mxu0 %v3988
      %v4133 = vpop.f32.mrb[0].mxu0
      %v4134 = vadd.f32 0.0, %v4133
      %v4135 = vpop.f32.mrb[0].mxu0
      %4136 = vdwg.mxu0
      %v4137 = vadd.f32 %v3969, %v4063
      %v4138 = vadd.f32 %v3970, %v4065
      %v4139 = vadd.f32 %v3971, %v4134
      %s4140 = scalar_lea.vmem %s6, 48
      %v4141 = vld [vmem:[%s4140] sm:$0xff]
      %v4142 = vld [vmem:[%s375] sm:$0xff]
      %v4143 = vld [vmem:[%s375 + $0x8] sm:$0xf]
      %v4146 = vcombine.high %v4142, %v4142
      %4147 = vrot.lane.b32.xlu0 %v4142, 92
      %v4148 = vpop.permute.xlu0 %4147
      %4149 = vrot.lane.b32.xlu0 %v4146, 92
      %v4150 = vpop.permute.xlu0 %4149
      %4151 = vrot.lane.b32.xlu0 %v4143, 92
      %v4152 = vpop.permute.xlu0 %4151
      %v4153 = vsel %vm1389, %v4148, %v4150
      %v4154 = vsel %vm1389, %v4150, %v4152
      %v4156 = vsel %vm398, %v4141, 0
      %v4158 = vsel %vm402, %v4153, 0
      %v4160 = vsel %vm402, %v4154, 0
      %v4162 = vsel %vm402, %v4152, 0
      %4164 = vmatprep.subr.mxu0 %v4160
      %4165 = vmatpush1.msra.mxu0 %v4158
      %4166 = vmatprep.subr.mxu0 0.0
      %4167 = vmatpush1.msra.mxu0 0.0
      %4168 = vmatprep.subr.mxu0 0.0
      %4169 = vmatpush1.msra.mxu0 0.0
      %4170 = vmatprep.subr.mxu0 0.0
      %4171 = vmatpush1.msra.mxu0 0.0
      %4172 = vmatprep.subr.mxu0 0.0
      %4173 = vmatpush1.msra.mxu0 0.0
      %4174 = vmatprep.subr.mxu0 0.0
      %4175 = vmatpush1.msra.mxu0 0.0
      %4176 = vmatprep.subr.mxu0 0.0
      %4177 = vmatpush1.msra.mxu0 0.0
      %4178 = vmatprep.subr.mxu0 0.0
      %4179 = vmatpush1.msra.mxu0 0.0
      %4180 = vmatprep.subr.mxu0 0.0
      %4181 = vmatpush1.msra.mxu0 0.0
      %4182 = vmatprep.subr.mxu0 0.0
      %4183 = vmatpush1.msra.mxu0 0.0
      %4184 = vmatprep.subr.mxu0 0.0
      %4185 = vmatpush1.msra.mxu0 0.0
      %4186 = vmatprep.subr.mxu0 0.0
      %4187 = vmatpush1.msra.mxu0 0.0
      %4188 = vmatprep.subr.mxu0 0.0
      %4189 = vmatpush1.msra.mxu0 0.0
      %4190 = vmatprep.subr.mxu0 0.0
      %4191 = vmatpush1.msra.mxu0 0.0
      %4192 = vmatprep.subr.mxu0 0.0
      %4193 = vmatpush1.msra.mxu0 0.0
      %4194 = vmatprep.subr.mxu0 0.0
      %4195 = vmatpush1.msra.mxu0 0.0
      %4196 = vmatprep.subr.mxu0 0.0
      %4197 = vmatpush1.msra.mxu0 0.0
      %4198 = vmatprep.subr.mxu0 0.0
      %4199 = vmatpush1.msra.mxu0 0.0
      %4200 = vmatprep.subr.mxu0 0.0
      %4201 = vmatpush1.msra.mxu0 0.0
      %4202 = vmatprep.subr.mxu0 0.0
      %4203 = vmatpush1.msra.mxu0 0.0
      %4204 = vmatprep.subr.mxu0 0.0
      %4205 = vmatpush1.msra.mxu0 0.0
      %4206 = vmatprep.subr.mxu0 0.0
      %4207 = vmatpush1.msra.mxu0 0.0
      %4208 = vmatprep.subr.mxu0 0.0
      %4209 = vmatpush1.msra.mxu0 0.0
      %4210 = vmatprep.subr.mxu0 0.0
      %4211 = vmatpush1.msra.mxu0 0.0
      %4212 = vmatprep.subr.mxu0 0.0
      %4213 = vmatpush1.msra.mxu0 0.0
      %4214 = vmatprep.subr.mxu0 0.0
      %4215 = vmatpush1.msra.mxu0 0.0
      %4216 = vmatprep.subr.mxu0 0.0
      %4217 = vmatpush1.msra.mxu0 0.0
      %4218 = vmatprep.subr.mxu0 0.0
      %4219 = vmatpush1.msra.mxu0 0.0
      %4220 = vmatprep.subr.mxu0 0.0
      %4221 = vmatpush1.msra.mxu0 0.0
      %4222 = vmatprep.subr.mxu0 0.0
      %4223 = vmatpush1.msra.mxu0 0.0
      %4224 = vmatprep.subr.mxu0 0.0
      %4225 = vmatpush1.msra.mxu0 0.0
      %4226 = vmatprep.subr.mxu0 0.0
      %4227 = vmatpush1.msra.mxu0 0.0
      %4228 = vmatprep.mubr.f32.mxu0 0.0
      %4229 = vmatmul.mubr.f32.gmra.mrb[0].mxu0 %v4156
      %v4230 = vpop.f32.mrb[0].mxu0
      %v4231 = vadd.f32 0.0, %v4230
      %v4232 = vpop.f32.mrb[0].mxu0
      %v4233 = vadd.f32 0.0, %v4232
      %4234 = vdwg.mxu0
      %4235 = vmatprep.subr.mxu0 0.0
      %4236 = vmatpush1.msra.mxu0 %v4162
      %4237 = vmatprep.subr.mxu0 0.0
      %4238 = vmatpush1.msra.mxu0 0.0
      %4239 = vmatprep.subr.mxu0 0.0
      %4240 = vmatpush1.msra.mxu0 0.0
      %4241 = vmatprep.subr.mxu0 0.0
      %4242 = vmatpush1.msra.mxu0 0.0
      %4243 = vmatprep.subr.mxu0 0.0
      %4244 = vmatpush1.msra.mxu0 0.0
      %4245 = vmatprep.subr.mxu0 0.0
      %4246 = vmatpush1.msra.mxu0 0.0
      %4247 = vmatprep.subr.mxu0 0.0
      %4248 = vmatpush1.msra.mxu0 0.0
      %4249 = vmatprep.subr.mxu0 0.0
      %4250 = vmatpush1.msra.mxu0 0.0
      %4251 = vmatprep.subr.mxu0 0.0
      %4252 = vmatpush1.msra.mxu0 0.0
      %4253 = vmatprep.subr.mxu0 0.0
      %4254 = vmatpush1.msra.mxu0 0.0
      %4255 = vmatprep.subr.mxu0 0.0
      %4256 = vmatpush1.msra.mxu0 0.0
      %4257 = vmatprep.subr.mxu0 0.0
      %4258 = vmatpush1.msra.mxu0 0.0
      %4259 = vmatprep.subr.mxu0 0.0
      %4260 = vmatpush1.msra.mxu0 0.0
      %4261 = vmatprep.subr.mxu0 0.0
      %4262 = vmatpush1.msra.mxu0 0.0
      %4263 = vmatprep.subr.mxu0 0.0
      %4264 = vmatpush1.msra.mxu0 0.0
      %4265 = vmatprep.subr.mxu0 0.0
      %4266 = vmatpush1.msra.mxu0 0.0
      %4267 = vmatprep.subr.mxu0 0.0
      %4268 = vmatpush1.msra.mxu0 0.0
      %4269 = vmatprep.subr.mxu0 0.0
      %4270 = vmatpush1.msra.mxu0 0.0
      %4271 = vmatprep.subr.mxu0 0.0
      %4272 = vmatpush1.msra.mxu0 0.0
      %4273 = vmatprep.subr.mxu0 0.0
      %4274 = vmatpush1.msra.mxu0 0.0
      %4275 = vmatprep.subr.mxu0 0.0
      %4276 = vmatpush1.msra.mxu0 0.0
      %4277 = vmatprep.subr.mxu0 0.0
      %4278 = vmatpush1.msra.mxu0 0.0
      %4279 = vmatprep.subr.mxu0 0.0
      %4280 = vmatpush1.msra.mxu0 0.0
      %4281 = vmatprep.subr.mxu0 0.0
      %4282 = vmatpush1.msra.mxu0 0.0
      %4283 = vmatprep.subr.mxu0 0.0
      %4284 = vmatpush1.msra.mxu0 0.0
      %4285 = vmatprep.subr.mxu0 0.0
      %4286 = vmatpush1.msra.mxu0 0.0
      %4287 = vmatprep.subr.mxu0 0.0
      %4288 = vmatpush1.msra.mxu0 0.0
      %4289 = vmatprep.subr.mxu0 0.0
      %4290 = vmatpush1.msra.mxu0 0.0
      %4291 = vmatprep.subr.mxu0 0.0
      %4292 = vmatpush1.msra.mxu0 0.0
      %4293 = vmatprep.subr.mxu0 0.0
      %4294 = vmatpush1.msra.mxu0 0.0
      %4295 = vmatprep.subr.mxu0 0.0
      %4296 = vmatpush1.msra.mxu0 0.0
      %4297 = vmatprep.subr.mxu0 0.0
      %4298 = vmatpush1.msra.mxu0 0.0
      %4299 = vmatprep.mubr.f32.mxu0 0.0
      %4300 = vmatmul.mubr.f32.gmra.mrb[0].mxu0 %v4156
      %v4301 = vpop.f32.mrb[0].mxu0
      %v4302 = vadd.f32 0.0, %v4301
      %v4303 = vpop.f32.mrb[0].mxu0
      %4304 = vdwg.mxu0
      %v4305 = vadd.f32 %v4137, %v4231
      %v4306 = vadd.f32 %v4138, %v4233
      %v4307 = vadd.f32 %v4139, %v4302
      %s4308 = scalar_lea.vmem %s5, 56
      %v4309 = vld [vmem:[%s4308] sm:$0xff]
      %v4310 = vld [vmem:[#allocation2] sm:$0xff]
      %v4311 = vld [vmem:[#allocation2 + $0x8] sm:$0xf]
      %v4314 = vcombine.high %v4310, %v4310
      %4315 = vrot.lane.b32.xlu0 %v4310, 91
      %v4316 = vpop.permute.xlu0 %4315
      %4317 = vrot.lane.b32.xlu0 %v4314, 91
      %v4318 = vpop.permute.xlu0 %4317
      %4319 = vrot.lane.b32.xlu0 %v4311, 91
      %v4320 = vpop.permute.xlu0 %4319
      %v4321 = vsel %vm1558, %v4316, %v4318
      %v4322 = vsel %vm1558, %v4318, %v4320
      %v4324 = vsel %vm398, %v4309, 0
      %v4326 = vsel %vm402, %v4321, 0
      %v4328 = vsel %vm402, %v4322, 0
      %v4330 = vsel %vm402, %v4320, 0
      %4332 = vmatprep.subr.mxu0 %v4328
      %4333 = vmatpush1.msra.mxu0 %v4326
      %4334 = vmatprep.subr.mxu0 0.0
      %4335 = vmatpush1.msra.mxu0 0.0
      %4336 = vmatprep.subr.mxu0 0.0
      %4337 = vmatpush1.msra.mxu0 0.0
      %4338 = vmatprep.subr.mxu0 0.0
      %4339 = vmatpush1.msra.mxu0 0.0
      %4340 = vmatprep.subr.mxu0 0.0
      %4341 = vmatpush1.msra.mxu0 0.0
      %4342 = vmatprep.subr.mxu0 0.0
      %4343 = vmatpush1.msra.mxu0 0.0
      %4344 = vmatprep.subr.mxu0 0.0
      %4345 = vmatpush1.msra.mxu0 0.0
      %4346 = vmatprep.subr.mxu0 0.0
      %4347 = vmatpush1.msra.mxu0 0.0
      %4348 = vmatprep.subr.mxu0 0.0
      %4349 = vmatpush1.msra.mxu0 0.0
      %4350 = vmatprep.subr.mxu0 0.0
      %4351 = vmatpush1.msra.mxu0 0.0
      %4352 = vmatprep.subr.mxu0 0.0
      %4353 = vmatpush1.msra.mxu0 0.0
      %4354 = vmatprep.subr.mxu0 0.0
      %4355 = vmatpush1.msra.mxu0 0.0
      %4356 = vmatprep.subr.mxu0 0.0
      %4357 = vmatpush1.msra.mxu0 0.0
      %4358 = vmatprep.subr.mxu0 0.0
      %4359 = vmatpush1.msra.mxu0 0.0
      %4360 = vmatprep.subr.mxu0 0.0
      %4361 = vmatpush1.msra.mxu0 0.0
      %4362 = vmatprep.subr.mxu0 0.0
      %4363 = vmatpush1.msra.mxu0 0.0
      %4364 = vmatprep.subr.mxu0 0.0
      %4365 = vmatpush1.msra.mxu0 0.0
      %4366 = vmatprep.subr.mxu0 0.0
      %4367 = vmatpush1.msra.mxu0 0.0
      %4368 = vmatprep.subr.mxu0 0.0
      %4369 = vmatpush1.msra.mxu0 0.0
      %4370 = vmatprep.subr.mxu0 0.0
      %4371 = vmatpush1.msra.mxu0 0.0
      %4372 = vmatprep.subr.mxu0 0.0
      %4373 = vmatpush1.msra.mxu0 0.0
      %4374 = vmatprep.subr.mxu0 0.0
      %4375 = vmatpush1.msra.mxu0 0.0
      %4376 = vmatprep.subr.mxu0 0.0
      %4377 = vmatpush1.msra.mxu0 0.0
      %4378 = vmatprep.subr.mxu0 0.0
      %4379 = vmatpush1.msra.mxu0 0.0
      %4380 = vmatprep.subr.mxu0 0.0
      %4381 = vmatpush1.msra.mxu0 0.0
      %4382 = vmatprep.subr.mxu0 0.0
      %4383 = vmatpush1.msra.mxu0 0.0
      %4384 = vmatprep.subr.mxu0 0.0
      %4385 = vmatpush1.msra.mxu0 0.0
      %4386 = vmatprep.subr.mxu0 0.0
      %4387 = vmatpush1.msra.mxu0 0.0
      %4388 = vmatprep.subr.mxu0 0.0
      %4389 = vmatpush1.msra.mxu0 0.0
      %4390 = vmatprep.subr.mxu0 0.0
      %4391 = vmatpush1.msra.mxu0 0.0
      %4392 = vmatprep.subr.mxu0 0.0
      %4393 = vmatpush1.msra.mxu0 0.0
      %4394 = vmatprep.subr.mxu0 0.0
      %4395 = vmatpush1.msra.mxu0 0.0
      %4396 = vmatprep.mubr.f32.mxu0 0.0
      %4397 = vmatmul.mubr.f32.gmra.mrb[0].mxu0 %v4324
      %v4398 = vpop.f32.mrb[0].mxu0
      %v4399 = vadd.f32 0.0, %v4398
      %v4400 = vpop.f32.mrb[0].mxu0
      %v4401 = vadd.f32 0.0, %v4400
      %4402 = vdwg.mxu0
      %4403 = vmatprep.subr.mxu0 0.0
      %4404 = vmatpush1.msra.mxu0 %v4330
      %4405 = vmatprep.subr.mxu0 0.0
      %4406 = vmatpush1.msra.mxu0 0.0
      %4407 = vmatprep.subr.mxu0 0.0
      %4408 = vmatpush1.msra.mxu0 0.0
      %4409 = vmatprep.subr.mxu0 0.0
      %4410 = vmatpush1.msra.mxu0 0.0
      %4411 = vmatprep.subr.mxu0 0.0
      %4412 = vmatpush1.msra.mxu0 0.0
      %4413 = vmatprep.subr.mxu0 0.0
      %4414 = vmatpush1.msra.mxu0 0.0
      %4415 = vmatprep.subr.mxu0 0.0
      %4416 = vmatpush1.msra.mxu0 0.0
      %4417 = vmatprep.subr.mxu0 0.0
      %4418 = vmatpush1.msra.mxu0 0.0
      %4419 = vmatprep.subr.mxu0 0.0
      %4420 = vmatpush1.msra.mxu0 0.0
      %4421 = vmatprep.subr.mxu0 0.0
      %4422 = vmatpush1.msra.mxu0 0.0
      %4423 = vmatprep.subr.mxu0 0.0
      %4424 = vmatpush1.msra.mxu0 0.0
      %4425 = vmatprep.subr.mxu0 0.0
      %4426 = vmatpush1.msra.mxu0 0.0
      %4427 = vmatprep.subr.mxu0 0.0
      %4428 = vmatpush1.msra.mxu0 0.0
      %4429 = vmatprep.subr.mxu0 0.0
      %4430 = vmatpush1.msra.mxu0 0.0
      %4431 = vmatprep.subr.mxu0 0.0
      %4432 = vmatpush1.msra.mxu0 0.0
      %4433 = vmatprep.subr.mxu0 0.0
      %4434 = vmatpush1.msra.mxu0 0.0
      %4435 = vmatprep.subr.mxu0 0.0
      %4436 = vmatpush1.msra.mxu0 0.0
      %4437 = vmatprep.subr.mxu0 0.0
      %4438 = vmatpush1.msra.mxu0 0.0
      %4439 = vmatprep.subr.mxu0 0.0
      %4440 = vmatpush1.msra.mxu0 0.0
      %4441 = vmatprep.subr.mxu0 0.0
      %4442 = vmatpush1.msra.mxu0 0.0
      %4443 = vmatprep.subr.mxu0 0.0
      %4444 = vmatpush1.msra.mxu0 0.0
      %4445 = vmatprep.subr.mxu0 0.0
      %4446 = vmatpush1.msra.mxu0 0.0
      %4447 = vmatprep.subr.mxu0 0.0
      %4448 = vmatpush1.msra.mxu0 0.0
      %4449 = vmatprep.subr.mxu0 0.0
      %4450 = vmatpush1.msra.mxu0 0.0
      %4451 = vmatprep.subr.mxu0 0.0
      %4452 = vmatpush1.msra.mxu0 0.0
      %4453 = vmatprep.subr.mxu0 0.0
      %4454 = vmatpush1.msra.mxu0 0.0
      %4455 = vmatprep.subr.mxu0 0.0
      %4456 = vmatpush1.msra.mxu0 0.0
      %4457 = vmatprep.subr.mxu0 0.0
      %4458 = vmatpush1.msra.mxu0 0.0
      %4459 = vmatprep.subr.mxu0 0.0
      %4460 = vmatpush1.msra.mxu0 0.0
      %4461 = vmatprep.subr.mxu0 0.0
      %4462 = vmatpush1.msra.mxu0 0.0
      %4463 = vmatprep.subr.mxu0 0.0
      %4464 = vmatpush1.msra.mxu0 0.0
      %4465 = vmatprep.subr.mxu0 0.0
      %4466 = vmatpush1.msra.mxu0 0.0
      %4467 = vmatprep.mubr.f32.mxu0 0.0
      %4468 = vmatmul.mubr.f32.gmra.mrb[0].mxu0 %v4324
      %v4469 = vpop.f32.mrb[0].mxu0
      %v4470 = vadd.f32 0.0, %v4469
      %v4471 = vpop.f32.mrb[0].mxu0
      %4472 = vdwg.mxu0
      %v4473 = vadd.f32 %v4305, %v4399
      %v4474 = vadd.f32 %v4306, %v4401
      %v4475 = vadd.f32 %v4307, %v4470
      %s4476 = scalar_lea.vmem %s6, 56
      %v4477 = vld [vmem:[%s4476] sm:$0xff]
      %v4478 = vld [vmem:[%s375] sm:$0xff]
      %v4479 = vld [vmem:[%s375 + $0x8] sm:$0xf]
      %v4482 = vcombine.high %v4478, %v4478
      %4483 = vrot.lane.b32.xlu0 %v4478, 91
      %v4484 = vpop.permute.xlu0 %4483
      %4485 = vrot.lane.b32.xlu0 %v4482, 91
      %v4486 = vpop.permute.xlu0 %4485
      %4487 = vrot.lane.b32.xlu0 %v4479, 91
      %v4488 = vpop.permute.xlu0 %4487
      %v4489 = vsel %vm1558, %v4484, %v4486
      %v4490 = vsel %vm1558, %v4486, %v4488
      %v4492 = vsel %vm398, %v4477, 0
      %v4494 = vsel %vm402, %v4489, 0
      %v4496 = vsel %vm402, %v4490, 0
      %v4498 = vsel %vm402, %v4488, 0
      %4500 = vmatprep.subr.mxu0 %v4496
      %4501 = vmatpush1.msra.mxu0 %v4494
      %4502 = vmatprep.subr.mxu0 0.0
      %4503 = vmatpush1.msra.mxu0 0.0
      %4504 = vmatprep.subr.mxu0 0.0
      %4505 = vmatpush1.msra.mxu0 0.0
      %4506 = vmatprep.subr.mxu0 0.0
      %4507 = vmatpush1.msra.mxu0 0.0
      %4508 = vmatprep.subr.mxu0 0.0
      %4509 = vmatpush1.msra.mxu0 0.0
      %4510 = vmatprep.subr.mxu0 0.0
      %4511 = vmatpush1.msra.mxu0 0.0
      %4512 = vmatprep.subr.mxu0 0.0
      %4513 = vmatpush1.msra.mxu0 0.0
      %4514 = vmatprep.subr.mxu0 0.0
      %4515 = vmatpush1.msra.mxu0 0.0
      %4516 = vmatprep.subr.mxu0 0.0
      %4517 = vmatpush1.msra.mxu0 0.0
      %4518 = vmatprep.subr.mxu0 0.0
      %4519 = vmatpush1.msra.mxu0 0.0
      %4520 = vmatprep.subr.mxu0 0.0
      %4521 = vmatpush1.msra.mxu0 0.0
      %4522 = vmatprep.subr.mxu0 0.0
      %4523 = vmatpush1.msra.mxu0 0.0
      %4524 = vmatprep.subr.mxu0 0.0
      %4525 = vmatpush1.msra.mxu0 0.0
      %4526 = vmatprep.subr.mxu0 0.0
      %4527 = vmatpush1.msra.mxu0 0.0
      %4528 = vmatprep.subr.mxu0 0.0
      %4529 = vmatpush1.msra.mxu0 0.0
      %4530 = vmatprep.subr.mxu0 0.0
      %4531 = vmatpush1.msra.mxu0 0.0
      %4532 = vmatprep.subr.mxu0 0.0
      %4533 = vmatpush1.msra.mxu0 0.0
      %4534 = vmatprep.subr.mxu0 0.0
      %4535 = vmatpush1.msra.mxu0 0.0
      %4536 = vmatprep.subr.mxu0 0.0
      %4537 = vmatpush1.msra.mxu0 0.0
      %4538 = vmatprep.subr.mxu0 0.0
      %4539 = vmatpush1.msra.mxu0 0.0
      %4540 = vmatprep.subr.mxu0 0.0
      %4541 = vmatpush1.msra.mxu0 0.0
      %4542 = vmatprep.subr.mxu0 0.0
      %4543 = vmatpush1.msra.mxu0 0.0
      %4544 = vmatprep.subr.mxu0 0.0
      %4545 = vmatpush1.msra.mxu0 0.0
      %4546 = vmatprep.subr.mxu0 0.0
      %4547 = vmatpush1.msra.mxu0 0.0
      %4548 = vmatprep.subr.mxu0 0.0
      %4549 = vmatpush1.msra.mxu0 0.0
      %4550 = vmatprep.subr.mxu0 0.0
      %4551 = vmatpush1.msra.mxu0 0.0
      %4552 = vmatprep.subr.mxu0 0.0
      %4553 = vmatpush1.msra.mxu0 0.0
      %4554 = vmatprep.subr.mxu0 0.0
      %4555 = vmatpush1.msra.mxu0 0.0
      %4556 = vmatprep.subr.mxu0 0.0
      %4557 = vmatpush1.msra.mxu0 0.0
      %4558 = vmatprep.subr.mxu0 0.0
      %4559 = vmatpush1.msra.mxu0 0.0
      %4560 = vmatprep.subr.mxu0 0.0
      %4561 = vmatpush1.msra.mxu0 0.0
      %4562 = vmatprep.subr.mxu0 0.0
      %4563 = vmatpush1.msra.mxu0 0.0
      %4564 = vmatprep.mubr.f32.mxu0 0.0
      %4565 = vmatmul.mubr.f32.gmra.mrb[0].mxu0 %v4492
      %v4566 = vpop.f32.mrb[0].mxu0
      %v4567 = vadd.f32 0.0, %v4566
      %v4568 = vpop.f32.mrb[0].mxu0
      %v4569 = vadd.f32 0.0, %v4568
      %4570 = vdwg.mxu0
      %4571 = vmatprep.subr.mxu0 0.0
      %4572 = vmatpush1.msra.mxu0 %v4498
      %4573 = vmatprep.subr.mxu0 0.0
      %4574 = vmatpush1.msra.mxu0 0.0
      %4575 = vmatprep.subr.mxu0 0.0
      %4576 = vmatpush1.msra.mxu0 0.0
      %4577 = vmatprep.subr.mxu0 0.0
      %4578 = vmatpush1.msra.mxu0 0.0
      %4579 = vmatprep.subr.mxu0 0.0
      %4580 = vmatpush1.msra.mxu0 0.0
      %4581 = vmatprep.subr.mxu0 0.0
      %4582 = vmatpush1.msra.mxu0 0.0
      %4583 = vmatprep.subr.mxu0 0.0
      %4584 = vmatpush1.msra.mxu0 0.0
      %4585 = vmatprep.subr.mxu0 0.0
      %4586 = vmatpush1.msra.mxu0 0.0
      %4587 = vmatprep.subr.mxu0 0.0
      %4588 = vmatpush1.msra.mxu0 0.0
      %4589 = vmatprep.subr.mxu0 0.0
      %4590 = vmatpush1.msra.mxu0 0.0
      %4591 = vmatprep.subr.mxu0 0.0
      %4592 = vmatpush1.msra.mxu0 0.0
      %4593 = vmatprep.subr.mxu0 0.0
      %4594 = vmatpush1.msra.mxu0 0.0
      %4595 = vmatprep.subr.mxu0 0.0
      %4596 = vmatpush1.msra.mxu0 0.0
      %4597 = vmatprep.subr.mxu0 0.0
      %4598 = vmatpush1.msra.mxu0 0.0
      %4599 = vmatprep.subr.mxu0 0.0
      %4600 = vmatpush1.msra.mxu0 0.0
      %4601 = vmatprep.subr.mxu0 0.0
      %4602 = vmatpush1.msra.mxu0 0.0
      %4603 = vmatprep.subr.mxu0 0.0
      %4604 = vmatpush1.msra.mxu0 0.0
      %4605 = vmatprep.subr.mxu0 0.0
      %4606 = vmatpush1.msra.mxu0 0.0
      %4607 = vmatprep.subr.mxu0 0.0
      %4608 = vmatpush1.msra.mxu0 0.0
      %4609 = vmatprep.subr.mxu0 0.0
      %4610 = vmatpush1.msra.mxu0 0.0
      %4611 = vmatprep.subr.mxu0 0.0
      %4612 = vmatpush1.msra.mxu0 0.0
      %4613 = vmatprep.subr.mxu0 0.0
      %4614 = vmatpush1.msra.mxu0 0.0
      %4615 = vmatprep.subr.mxu0 0.0
      %4616 = vmatpush1.msra.mxu0 0.0
      %4617 = vmatprep.subr.mxu0 0.0
      %4618 = vmatpush1.msra.mxu0 0.0
      %4619 = vmatprep.subr.mxu0 0.0
      %4620 = vmatpush1.msra.mxu0 0.0
      %4621 = vmatprep.subr.mxu0 0.0
      %4622 = vmatpush1.msra.mxu0 0.0
      %4623 = vmatprep.subr.mxu0 0.0
      %4624 = vmatpush1.msra.mxu0 0.0
      %4625 = vmatprep.subr.mxu0 0.0
      %4626 = vmatpush1.msra.mxu0 0.0
      %4627 = vmatprep.subr.mxu0 0.0
      %4628 = vmatpush1.msra.mxu0 0.0
      %4629 = vmatprep.subr.mxu0 0.0
      %4630 = vmatpush1.msra.mxu0 0.0
      %4631 = vmatprep.subr.mxu0 0.0
      %4632 = vmatpush1.msra.mxu0 0.0
      %4633 = vmatprep.subr.mxu0 0.0
      %4634 = vmatpush1.msra.mxu0 0.0
      %4635 = vmatprep.mubr.f32.mxu0 0.0
      %4636 = vmatmul.mubr.f32.gmra.mrb[0].mxu0 %v4492
      %v4637 = vpop.f32.mrb[0].mxu0
      %v4638 = vadd.f32 0.0, %v4637
      %v4639 = vpop.f32.mrb[0].mxu0
      %4640 = vdwg.mxu0
      %v4641 = vadd.f32 %v4473, %v4567
      %v4642 = vadd.f32 %v4474, %v4569
      %v4643 = vadd.f32 %v4475, %v4638
      %s4644 = scalar_lea.vmem %s5, 64
      %v4645 = vld [vmem:[%s4644] sm:$0xff]
      %v4646 = vld [vmem:[#allocation2] sm:$0xff]
      %v4647 = vld [vmem:[#allocation2 + $0x8] sm:$0xf]
      %v4650 = vcombine.high %v4646, %v4646
      %4651 = vrot.lane.b32.xlu0 %v4646, 90
      %v4652 = vpop.permute.xlu0 %4651
      %4653 = vrot.lane.b32.xlu0 %v4650, 90
      %v4654 = vpop.permute.xlu0 %4653
      %4655 = vrot.lane.b32.xlu0 %v4647, 90
      %v4656 = vpop.permute.xlu0 %4655
      %v4657 = vsel %vm1727, %v4652, %v4654
      %v4658 = vsel %vm1727, %v4654, %v4656
      %v4660 = vsel %vm398, %v4645, 0
      %v4662 = vsel %vm402, %v4657, 0
      %v4664 = vsel %vm402, %v4658, 0
      %v4666 = vsel %vm402, %v4656, 0
      %4668 = vmatprep.subr.mxu0 %v4664
      %4669 = vmatpush1.msra.mxu0 %v4662
      %4670 = vmatprep.subr.mxu0 0.0
      %4671 = vmatpush1.msra.mxu0 0.0
      %4672 = vmatprep.subr.mxu0 0.0
      %4673 = vmatpush1.msra.mxu0 0.0
      %4674 = vmatprep.subr.mxu0 0.0
      %4675 = vmatpush1.msra.mxu0 0.0
      %4676 = vmatprep.subr.mxu0 0.0
      %4677 = vmatpush1.msra.mxu0 0.0
      %4678 = vmatprep.subr.mxu0 0.0
      %4679 = vmatpush1.msra.mxu0 0.0
      %4680 = vmatprep.subr.mxu0 0.0
      %4681 = vmatpush1.msra.mxu0 0.0
      %4682 = vmatprep.subr.mxu0 0.0
      %4683 = vmatpush1.msra.mxu0 0.0
      %4684 = vmatprep.subr.mxu0 0.0
      %4685 = vmatpush1.msra.mxu0 0.0
      %4686 = vmatprep.subr.mxu0 0.0
      %4687 = vmatpush1.msra.mxu0 0.0
      %4688 = vmatprep.subr.mxu0 0.0
      %4689 = vmatpush1.msra.mxu0 0.0
      %4690 = vmatprep.subr.mxu0 0.0
      %4691 = vmatpush1.msra.mxu0 0.0
      %4692 = vmatprep.subr.mxu0 0.0
      %4693 = vmatpush1.msra.mxu0 0.0
      %4694 = vmatprep.subr.mxu0 0.0
      %4695 = vmatpush1.msra.mxu0 0.0
      %4696 = vmatprep.subr.mxu0 0.0
      %4697 = vmatpush1.msra.mxu0 0.0
      %4698 = vmatprep.subr.mxu0 0.0
      %4699 = vmatpush1.msra.mxu0 0.0
      %4700 = vmatprep.subr.mxu0 0.0
      %4701 = vmatpush1.msra.mxu0 0.0
      %4702 = vmatprep.subr.mxu0 0.0
      %4703 = vmatpush1.msra.mxu0 0.0
      %4704 = vmatprep.subr.mxu0 0.0
      %4705 = vmatpush1.msra.mxu0 0.0
      %4706 = vmatprep.subr.mxu0 0.0
      %4707 = vmatpush1.msra.mxu0 0.0
      %4708 = vmatprep.subr.mxu0 0.0
      %4709 = vmatpush1.msra.mxu0 0.0
      %4710 = vmatprep.subr.mxu0 0.0
      %4711 = vmatpush1.msra.mxu0 0.0
      %4712 = vmatprep.subr.mxu0 0.0
      %4713 = vmatpush1.msra.mxu0 0.0
      %4714 = vmatprep.subr.mxu0 0.0
      %4715 = vmatpush1.msra.mxu0 0.0
      %4716 = vmatprep.subr.mxu0 0.0
      %4717 = vmatpush1.msra.mxu0 0.0
      %4718 = vmatprep.subr.mxu0 0.0
      %4719 = vmatpush1.msra.mxu0 0.0
      %4720 = vmatprep.subr.mxu0 0.0
      %4721 = vmatpush1.msra.mxu0 0.0
      %4722 = vmatprep.subr.mxu0 0.0
      %4723 = vmatpush1.msra.mxu0 0.0
      %4724 = vmatprep.subr.mxu0 0.0
      %4725 = vmatpush1.msra.mxu0 0.0
      %4726 = vmatprep.subr.mxu0 0.0
      %4727 = vmatpush1.msra.mxu0 0.0
      %4728 = vmatprep.subr.mxu0 0.0
      %4729 = vmatpush1.msra.mxu0 0.0
      %4730 = vmatprep.subr.mxu0 0.0
      %4731 = vmatpush1.msra.mxu0 0.0
      %4732 = vmatprep.mubr.f32.mxu0 0.0
      %4733 = vmatmul.mubr.f32.gmra.mrb[0].mxu0 %v4660
      %v4734 = vpop.f32.mrb[0].mxu0
      %v4735 = vadd.f32 0.0, %v4734
      %v4736 = vpop.f32.mrb[0].mxu0
      %v4737 = vadd.f32 0.0, %v4736
      %4738 = vdwg.mxu0
      %4739 = vmatprep.subr.mxu0 0.0
      %4740 = vmatpush1.msra.mxu0 %v4666
      %4741 = vmatprep.subr.mxu0 0.0
      %4742 = vmatpush1.msra.mxu0 0.0
      %4743 = vmatprep.subr.mxu0 0.0
      %4744 = vmatpush1.msra.mxu0 0.0
      %4745 = vmatprep.subr.mxu0 0.0
      %4746 = vmatpush1.msra.mxu0 0.0
      %4747 = vmatprep.subr.mxu0 0.0
      %4748 = vmatpush1.msra.mxu0 0.0
      %4749 = vmatprep.subr.mxu0 0.0
      %4750 = vmatpush1.msra.mxu0 0.0
      %4751 = vmatprep.subr.mxu0 0.0
      %4752 = vmatpush1.msra.mxu0 0.0
      %4753 = vmatprep.subr.mxu0 0.0
      %4754 = vmatpush1.msra.mxu0 0.0
      %4755 = vmatprep.subr.mxu0 0.0
      %4756 = vmatpush1.msra.mxu0 0.0
      %4757 = vmatprep.subr.mxu0 0.0
      %4758 = vmatpush1.msra.mxu0 0.0
      %4759 = vmatprep.subr.mxu0 0.0
      %4760 = vmatpush1.msra.mxu0 0.0
      %4761 = vmatprep.subr.mxu0 0.0
      %4762 = vmatpush1.msra.mxu0 0.0
      %4763 = vmatprep.subr.mxu0 0.0
      %4764 = vmatpush1.msra.mxu0 0.0
      %4765 = vmatprep.subr.mxu0 0.0
      %4766 = vmatpush1.msra.mxu0 0.0
      %4767 = vmatprep.subr.mxu0 0.0
      %4768 = vmatpush1.msra.mxu0 0.0
      %4769 = vmatprep.subr.mxu0 0.0
      %4770 = vmatpush1.msra.mxu0 0.0
      %4771 = vmatprep.subr.mxu0 0.0
      %4772 = vmatpush1.msra.mxu0 0.0
      %4773 = vmatprep.subr.mxu0 0.0
      %4774 = vmatpush1.msra.mxu0 0.0
      %4775 = vmatprep.subr.mxu0 0.0
      %4776 = vmatpush1.msra.mxu0 0.0
      %4777 = vmatprep.subr.mxu0 0.0
      %4778 = vmatpush1.msra.mxu0 0.0
      %4779 = vmatprep.subr.mxu0 0.0
      %4780 = vmatpush1.msra.mxu0 0.0
      %4781 = vmatprep.subr.mxu0 0.0
      %4782 = vmatpush1.msra.mxu0 0.0
      %4783 = vmatprep.subr.mxu0 0.0
      %4784 = vmatpush1.msra.mxu0 0.0
      %4785 = vmatprep.subr.mxu0 0.0
      %4786 = vmatpush1.msra.mxu0 0.0
      %4787 = vmatprep.subr.mxu0 0.0
      %4788 = vmatpush1.msra.mxu0 0.0
      %4789 = vmatprep.subr.mxu0 0.0
      %4790 = vmatpush1.msra.mxu0 0.0
      %4791 = vmatprep.subr.mxu0 0.0
      %4792 = vmatpush1.msra.mxu0 0.0
      %4793 = vmatprep.subr.mxu0 0.0
      %4794 = vmatpush1.msra.mxu0 0.0
      %4795 = vmatprep.subr.mxu0 0.0
      %4796 = vmatpush1.msra.mxu0 0.0
      %4797 = vmatprep.subr.mxu0 0.0
      %4798 = vmatpush1.msra.mxu0 0.0
      %4799 = vmatprep.subr.mxu0 0.0
      %4800 = vmatpush1.msra.mxu0 0.0
      %4801 = vmatprep.subr.mxu0 0.0
      %4802 = vmatpush1.msra.mxu0 0.0
      %4803 = vmatprep.mubr.f32.mxu0 0.0
      %4804 = vmatmul.mubr.f32.gmra.mrb[0].mxu0 %v4660
      %v4805 = vpop.f32.mrb[0].mxu0
      %v4806 = vadd.f32 0.0, %v4805
      %v4807 = vpop.f32.mrb[0].mxu0
      %4808 = vdwg.mxu0
      %v4809 = vadd.f32 %v4641, %v4735
      %v4810 = vadd.f32 %v4642, %v4737
      %v4811 = vadd.f32 %v4643, %v4806
      %s4812 = scalar_lea.vmem %s6, 64
      %v4813 = vld [vmem:[%s4812] sm:$0xff]
      %v4814 = vld [vmem:[%s375] sm:$0xff]
      %v4815 = vld [vmem:[%s375 + $0x8] sm:$0xf]
      %v4818 = vcombine.high %v4814, %v4814
      %4819 = vrot.lane.b32.xlu0 %v4814, 90
      %v4820 = vpop.permute.xlu0 %4819
      %4821 = vrot.lane.b32.xlu0 %v4818, 90
      %v4822 = vpop.permute.xlu0 %4821
      %4823 = vrot.lane.b32.xlu0 %v4815, 90
      %v4824 = vpop.permute.xlu0 %4823
      %v4825 = vsel %vm1727, %v4820, %v4822
      %v4826 = vsel %vm1727, %v4822, %v4824
      %v4828 = vsel %vm398, %v4813, 0
      %v4830 = vsel %vm402, %v4825, 0
      %v4832 = vsel %vm402, %v4826, 0
      %v4834 = vsel %vm402, %v4824, 0
      %4836 = vmatprep.subr.mxu0 %v4832
      %4837 = vmatpush1.msra.mxu0 %v4830
      %4838 = vmatprep.subr.mxu0 0.0
      %4839 = vmatpush1.msra.mxu0 0.0
      %4840 = vmatprep.subr.mxu0 0.0
      %4841 = vmatpush1.msra.mxu0 0.0
      %4842 = vmatprep.subr.mxu0 0.0
      %4843 = vmatpush1.msra.mxu0 0.0
      %4844 = vmatprep.subr.mxu0 0.0
      %4845 = vmatpush1.msra.mxu0 0.0
      %4846 = vmatprep.subr.mxu0 0.0
      %4847 = vmatpush1.msra.mxu0 0.0
      %4848 = vmatprep.subr.mxu0 0.0
      %4849 = vmatpush1.msra.mxu0 0.0
      %4850 = vmatprep.subr.mxu0 0.0
      %4851 = vmatpush1.msra.mxu0 0.0
      %4852 = vmatprep.subr.mxu0 0.0
      %4853 = vmatpush1.msra.mxu0 0.0
      %4854 = vmatprep.subr.mxu0 0.0
      %4855 = vmatpush1.msra.mxu0 0.0
      %4856 = vmatprep.subr.mxu0 0.0
      %4857 = vmatpush1.msra.mxu0 0.0
      %4858 = vmatprep.subr.mxu0 0.0
      %4859 = vmatpush1.msra.mxu0 0.0
      %4860 = vmatprep.subr.mxu0 0.0
      %4861 = vmatpush1.msra.mxu0 0.0
      %4862 = vmatprep.subr.mxu0 0.0
      %4863 = vmatpush1.msra.mxu0 0.0
      %4864 = vmatprep.subr.mxu0 0.0
      %4865 = vmatpush1.msra.mxu0 0.0
      %4866 = vmatprep.subr.mxu0 0.0
      %4867 = vmatpush1.msra.mxu0 0.0
      %4868 = vmatprep.subr.mxu0 0.0
      %4869 = vmatpush1.msra.mxu0 0.0
      %4870 = vmatprep.subr.mxu0 0.0
      %4871 = vmatpush1.msra.mxu0 0.0
      %4872 = vmatprep.subr.mxu0 0.0
      %4873 = vmatpush1.msra.mxu0 0.0
      %4874 = vmatprep.subr.mxu0 0.0
      %4875 = vmatpush1.msra.mxu0 0.0
      %4876 = vmatprep.subr.mxu0 0.0
      %4877 = vmatpush1.msra.mxu0 0.0
      %4878 = vmatprep.subr.mxu0 0.0
      %4879 = vmatpush1.msra.mxu0 0.0
      %4880 = vmatprep.subr.mxu0 0.0
      %4881 = vmatpush1.msra.mxu0 0.0
      %4882 = vmatprep.subr.mxu0 0.0
      %4883 = vmatpush1.msra.mxu0 0.0
      %4884 = vmatprep.subr.mxu0 0.0
      %4885 = vmatpush1.msra.mxu0 0.0
      %4886 = vmatprep.subr.mxu0 0.0
      %4887 = vmatpush1.msra.mxu0 0.0
      %4888 = vmatprep.subr.mxu0 0.0
      %4889 = vmatpush1.msra.mxu0 0.0
      %4890 = vmatprep.subr.mxu0 0.0
      %4891 = vmatpush1.msra.mxu0 0.0
      %4892 = vmatprep.subr.mxu0 0.0
      %4893 = vmatpush1.msra.mxu0 0.0
      %4894 = vmatprep.subr.mxu0 0.0
      %4895 = vmatpush1.msra.mxu0 0.0
      %4896 = vmatprep.subr.mxu0 0.0
      %4897 = vmatpush1.msra.mxu0 0.0
      %4898 = vmatprep.subr.mxu0 0.0
      %4899 = vmatpush1.msra.mxu0 0.0
      %4900 = vmatprep.mubr.f32.mxu0 0.0
      %4901 = vmatmul.mubr.f32.gmra.mrb[0].mxu0 %v4828
      %v4902 = vpop.f32.mrb[0].mxu0
      %v4903 = vadd.f32 0.0, %v4902
      %v4904 = vpop.f32.mrb[0].mxu0
      %v4905 = vadd.f32 0.0, %v4904
      %4906 = vdwg.mxu0
      %4907 = vmatprep.subr.mxu0 0.0
      %4908 = vmatpush1.msra.mxu0 %v4834
      %4909 = vmatprep.subr.mxu0 0.0
      %4910 = vmatpush1.msra.mxu0 0.0
      %4911 = vmatprep.subr.mxu0 0.0
      %4912 = vmatpush1.msra.mxu0 0.0
      %4913 = vmatprep.subr.mxu0 0.0
      %4914 = vmatpush1.msra.mxu0 0.0
      %4915 = vmatprep.subr.mxu0 0.0
      %4916 = vmatpush1.msra.mxu0 0.0
      %4917 = vmatprep.subr.mxu0 0.0
      %4918 = vmatpush1.msra.mxu0 0.0
      %4919 = vmatprep.subr.mxu0 0.0
      %4920 = vmatpush1.msra.mxu0 0.0
      %4921 = vmatprep.subr.mxu0 0.0
      %4922 = vmatpush1.msra.mxu0 0.0
      %4923 = vmatprep.subr.mxu0 0.0
      %4924 = vmatpush1.msra.mxu0 0.0
      %4925 = vmatprep.subr.mxu0 0.0
      %4926 = vmatpush1.msra.mxu0 0.0
      %4927 = vmatprep.subr.mxu0 0.0
      %4928 = vmatpush1.msra.mxu0 0.0
      %4929 = vmatprep.subr.mxu0 0.0
      %4930 = vmatpush1.msra.mxu0 0.0
      %4931 = vmatprep.subr.mxu0 0.0
      %4932 = vmatpush1.msra.mxu0 0.0
      %4933 = vmatprep.subr.mxu0 0.0
      %4934 = vmatpush1.msra.mxu0 0.0
      %4935 = vmatprep.subr.mxu0 0.0
      %4936 = vmatpush1.msra.mxu0 0.0
      %4937 = vmatprep.subr.mxu0 0.0
      %4938 = vmatpush1.msra.mxu0 0.0
      %4939 = vmatprep.subr.mxu0 0.0
      %4940 = vmatpush1.msra.mxu0 0.0
      %4941 = vmatprep.subr.mxu0 0.0
      %4942 = vmatpush1.msra.mxu0 0.0
      %4943 = vmatprep.subr.mxu0 0.0
      %4944 = vmatpush1.msra.mxu0 0.0
      %4945 = vmatprep.subr.mxu0 0.0
      %4946 = vmatpush1.msra.mxu0 0.0
      %4947 = vmatprep.subr.mxu0 0.0
      %4948 = vmatpush1.msra.mxu0 0.0
      %4949 = vmatprep.subr.mxu0 0.0
      %4950 = vmatpush1.msra.mxu0 0.0
      %4951 = vmatprep.subr.mxu0 0.0
      %4952 = vmatpush1.msra.mxu0 0.0
      %4953 = vmatprep.subr.mxu0 0.0
      %4954 = vmatpush1.msra.mxu0 0.0
      %4955 = vmatprep.subr.mxu0 0.0
      %4956 = vmatpush1.msra.mxu0 0.0
      %4957 = vmatprep.subr.mxu0 0.0
      %4958 = vmatpush1.msra.mxu0 0.0
      %4959 = vmatprep.subr.mxu0 0.0
      %4960 = vmatpush1.msra.mxu0 0.0
      %4961 = vmatprep.subr.mxu0 0.0
      %4962 = vmatpush1.msra.mxu0 0.0
      %4963 = vmatprep.subr.mxu0 0.0
      %4964 = vmatpush1.msra.mxu0 0.0
      %4965 = vmatprep.subr.mxu0 0.0
      %4966 = vmatpush1.msra.mxu0 0.0
      %4967 = vmatprep.subr.mxu0 0.0
      %4968 = vmatpush1.msra.mxu0 0.0
      %4969 = vmatprep.subr.mxu0 0.0
      %4970 = vmatpush1.msra.mxu0 0.0
      %4971 = vmatprep.mubr.f32.mxu0 0.0
      %4972 = vmatmul.mubr.f32.gmra.mrb[0].mxu0 %v4828
      %v4973 = vpop.f32.mrb[0].mxu0
      %v4974 = vadd.f32 0.0, %v4973
      %v4975 = vpop.f32.mrb[0].mxu0
      %4976 = vdwg.mxu0
      %v4977 = vadd.f32 %v4809, %v4903
      %v4978 = vadd.f32 %v4810, %v4905
      %v4979 = vadd.f32 %v4811, %v4974
      %v4980 = vld [vmem:[%s7] sm:$0xff]
      %4982 = vset.pattern.permute.xlu0 0
      %4983 = vperm.xlu0 %4982, %v4980
      %v4984 = vpop.permute.xlu0 %4983
      %v4986 = vadd.f32 %v4977, %v4984
      %v4987 = vadd.f32 %v4978, %v4984
      %v4988 = vadd.f32 %v4979, %v4984
      %s4989 = sld [smem:[#allocation3]]
      %vm4990 = vcmp.gt.f32.partialorder %v4986, 0.0
      %vm4991 = vcmp.gt.f32.partialorder %v4987, 0.0
      %vm4992 = vcmp.gt.f32.partialorder %v4988, 0.0
      %v4993 = vstv %s4989
      %v4994 = vmul.f32 %v4986, %v4993
      %v4995 = vmul.f32 %v4987, %v4993
      %v4996 = vmul.f32 %v4988, %v4993
      %v4997 = vsel %vm4990, %v4986, %v4994
      %v4998 = vsel %vm4991, %v4987, %v4995
      %v4999 = vsel %vm4992, %v4988, %v4996
      %v5000 = vld [vmem:[%s8] sm:$0xf]
      %v5001 = vld [vmem:[%s9] sm:$0xf]
      %5003 = vset.pattern.permute.xlu0 0
      %5004 = vperm.xlu0 %5003, %v5001
      %v5005 = vpop.permute.xlu0 %5004
      %vm5007 = vcmask 64512
      %v5009 = vsel %vm5007, %v5000, 0
      %5011 = vmatprep.subr.mxu0 %v4998
      %5012 = vmatpush1.msra.mxu0 %v4997
      %5013 = vmatprep.subr.mxu0 0.0
      %5014 = vmatpush1.msra.mxu0 0.0
      %5015 = vmatprep.subr.mxu0 0.0
      %5016 = vmatpush1.msra.mxu0 0.0
      %5017 = vmatprep.subr.mxu0 0.0
      %5018 = vmatpush1.msra.mxu0 0.0
      %5019 = vmatprep.subr.mxu0 0.0
      %5020 = vmatpush1.msra.mxu0 0.0
      %5021 = vmatprep.subr.mxu0 0.0
      %5022 = vmatpush1.msra.mxu0 0.0
      %5023 = vmatprep.subr.mxu0 0.0
      %5024 = vmatpush1.msra.mxu0 0.0
      %5025 = vmatprep.subr.mxu0 0.0
      %5026 = vmatpush1.msra.mxu0 0.0
      %5027 = vmatprep.subr.mxu0 0.0
      %5028 = vmatpush1.msra.mxu0 0.0
      %5029 = vmatprep.subr.mxu0 0.0
      %5030 = vmatpush1.msra.mxu0 0.0
      %5031 = vmatprep.subr.mxu0 0.0
      %5032 = vmatpush1.msra.mxu0 0.0
      %5033 = vmatprep.subr.mxu0 0.0
      %5034 = vmatpush1.msra.mxu0 0.0
      %5035 = vmatprep.subr.mxu0 0.0
      %5036 = vmatpush1.msra.mxu0 0.0
      %5037 = vmatprep.subr.mxu0 0.0
      %5038 = vmatpush1.msra.mxu0 0.0
      %5039 = vmatprep.subr.mxu0 0.0
      %5040 = vmatpush1.msra.mxu0 0.0
      %5041 = vmatprep.subr.mxu0 0.0
      %5042 = vmatpush1.msra.mxu0 0.0
      %5043 = vmatprep.subr.mxu0 0.0
      %5044 = vmatpush1.msra.mxu0 0.0
      %5045 = vmatprep.subr.mxu0 0.0
      %5046 = vmatpush1.msra.mxu0 0.0
      %5047 = vmatprep.subr.mxu0 0.0
      %5048 = vmatpush1.msra.mxu0 0.0
      %5049 = vmatprep.subr.mxu0 0.0
      %5050 = vmatpush1.msra.mxu0 0.0
      %5051 = vmatprep.subr.mxu0 0.0
      %5052 = vmatpush1.msra.mxu0 0.0
      %5053 = vmatprep.subr.mxu0 0.0
      %5054 = vmatpush1.msra.mxu0 0.0
      %5055 = vmatprep.subr.mxu0 0.0
      %5056 = vmatpush1.msra.mxu0 0.0
      %5057 = vmatprep.subr.mxu0 0.0
      %5058 = vmatpush1.msra.mxu0 0.0
      %5059 = vmatprep.subr.mxu0 0.0
      %5060 = vmatpush1.msra.mxu0 0.0
      %5061 = vmatprep.subr.mxu0 0.0
      %5062 = vmatpush1.msra.mxu0 0.0
      %5063 = vmatprep.subr.mxu0 0.0
      %5064 = vmatpush1.msra.mxu0 0.0
      %5065 = vmatprep.subr.mxu0 0.0
      %5066 = vmatpush1.msra.mxu0 0.0
      %5067 = vmatprep.subr.mxu0 0.0
      %5068 = vmatpush1.msra.mxu0 0.0
      %5069 = vmatprep.subr.mxu0 0.0
      %5070 = vmatpush1.msra.mxu0 0.0
      %5071 = vmatprep.subr.mxu0 0.0
      %5072 = vmatpush1.msra.mxu0 0.0
      %5073 = vmatprep.subr.mxu0 0.0
      %5074 = vmatpush1.msra.mxu0 0.0
      %5075 = vmatprep.mubr.f32.mxu0 0.0
      %5076 = vmatmul.mubr.f32.gmra.mrb[0].mxu0 %v5009
      %v5077 = vpop.f32.mrb[0].mxu0
      %v5078 = vadd.f32 %v5005, %v5077
      %v5079 = vpop.f32.mrb[0].mxu0
      %v5080 = vadd.f32 %v5005, %v5079
      %5081 = vdwg.mxu0
      %5082 = vmatprep.subr.mxu0 0.0
      %5083 = vmatpush1.msra.mxu0 %v4999
      %5084 = vmatprep.subr.mxu0 0.0
      %5085 = vmatpush1.msra.mxu0 0.0
      %5086 = vmatprep.subr.mxu0 0.0
      %5087 = vmatpush1.msra.mxu0 0.0
      %5088 = vmatprep.subr.mxu0 0.0
      %5089 = vmatpush1.msra.mxu0 0.0
      %5090 = vmatprep.subr.mxu0 0.0
      %5091 = vmatpush1.msra.mxu0 0.0
      %5092 = vmatprep.subr.mxu0 0.0
      %5093 = vmatpush1.msra.mxu0 0.0
      %5094 = vmatprep.subr.mxu0 0.0
      %5095 = vmatpush1.msra.mxu0 0.0
      %5096 = vmatprep.subr.mxu0 0.0
      %5097 = vmatpush1.msra.mxu0 0.0
      %5098 = vmatprep.subr.mxu0 0.0
      %5099 = vmatpush1.msra.mxu0 0.0
      %5100 = vmatprep.subr.mxu0 0.0
      %5101 = vmatpush1.msra.mxu0 0.0
      %5102 = vmatprep.subr.mxu0 0.0
      %5103 = vmatpush1.msra.mxu0 0.0
      %5104 = vmatprep.subr.mxu0 0.0
      %5105 = vmatpush1.msra.mxu0 0.0
      %5106 = vmatprep.subr.mxu0 0.0
      %5107 = vmatpush1.msra.mxu0 0.0
      %5108 = vmatprep.subr.mxu0 0.0
      %5109 = vmatpush1.msra.mxu0 0.0
      %5110 = vmatprep.subr.mxu0 0.0
      %5111 = vmatpush1.msra.mxu0 0.0
      %5112 = vmatprep.subr.mxu0 0.0
      %5113 = vmatpush1.msra.mxu0 0.0
      %5114 = vmatprep.subr.mxu0 0.0
      %5115 = vmatpush1.msra.mxu0 0.0
      %5116 = vmatprep.subr.mxu0 0.0
      %5117 = vmatpush1.msra.mxu0 0.0
      %5118 = vmatprep.subr.mxu0 0.0
      %5119 = vmatpush1.msra.mxu0 0.0
      %5120 = vmatprep.subr.mxu0 0.0
      %5121 = vmatpush1.msra.mxu0 0.0
      %5122 = vmatprep.subr.mxu0 0.0
      %5123 = vmatpush1.msra.mxu0 0.0
      %5124 = vmatprep.subr.mxu0 0.0
      %5125 = vmatpush1.msra.mxu0 0.0
      %5126 = vmatprep.subr.mxu0 0.0
      %5127 = vmatpush1.msra.mxu0 0.0
      %5128 = vmatprep.subr.mxu0 0.0
      %5129 = vmatpush1.msra.mxu0 0.0
      %5130 = vmatprep.subr.mxu0 0.0
      %5131 = vmatpush1.msra.mxu0 0.0
      %5132 = vmatprep.subr.mxu0 0.0
      %5133 = vmatpush1.msra.mxu0 0.0
      %5134 = vmatprep.subr.mxu0 0.0
      %5135 = vmatpush1.msra.mxu0 0.0
      %5136 = vmatprep.subr.mxu0 0.0
      %5137 = vmatpush1.msra.mxu0 0.0
      %5138 = vmatprep.subr.mxu0 0.0
      %5139 = vmatpush1.msra.mxu0 0.0
      %5140 = vmatprep.subr.mxu0 0.0
      %5141 = vmatpush1.msra.mxu0 0.0
      %5142 = vmatprep.subr.mxu0 0.0
      %5143 = vmatpush1.msra.mxu0 0.0
      %5144 = vmatprep.subr.mxu0 0.0
      %5145 = vmatpush1.msra.mxu0 0.0
      %5146 = vmatprep.mubr.f32.mxu0 0.0
      %5147 = vmatmul.mubr.f32.gmra.mrb[0].mxu0 %v5009
      %v5148 = vpop.f32.mrb[0].mxu0
      %v5149 = vadd.f32 %v5005, %v5148
      %v5150 = vpop.f32.mrb[0].mxu0
      %5151 = vdwg.mxu0
      %v5154 = vcombine.low %v5078, %v5080
      %5156 = vst [vmem:[%s380] sm:$0xff] %v5154
      %vm5157 = vcmask 257024
      %5158 = vst.msk [vmem:[%s380 + $0x8] sm:$0xf] %vm5157, %v5149
      %p5159 = scmp.lt.s32.totalorder %s22, 1
      %s5160 = scalar_select %p5159, %s22, 1
      %s5161 = smul.addr %s5160, 3
      %s5162 = smul.addr %s5161, 4
      %s5163 = scalar_lea.vmem %s10, %s5162
      // Predicated region
      $region61: #{decoding_block_forward.1} parent=59 // pred_check
        %p5164 = pneg %p260
      $region62: #{decoding_block_forward.1} parent=59 // pred_check_branch
        %5166 = sbr.rel (%p5164) target = $region64
      $region63: #{decoding_block_forward.1} parent=59 // pred_region
        _
      $region64: #{decoding_block_forward.1} parent=59 // pred_fallthru
        _
    $region60: #{decoding_block_forward.1} parent=5 // pred_fallthru
      _
    %p5167 = scmp.le.s32.totalorder 2, %s17
    // Predicated region
    $region65: #{decoding_block_forward.1} parent=5 // pred_check
      %p5168 = pneg %p5167
    $region66: #{decoding_block_forward.1} parent=5 // pred_check_branch
      %5170 = sbr.rel (%p5168) target = $region68
    $region67: #{decoding_block_forward.1} parent=5 // pred_region
      %s5171 = ssub.s32 %s17, 2
      // Predicated region
      $region69: #{decoding_block_forward.1} parent=67 // pred_check
        %p5172 = pneg %p266
      $region70: #{decoding_block_forward.1} parent=67 // pred_check_branch
        %5174 = sbr.rel (%p5172) target = $region72
      $region71: #{decoding_block_forward.1} parent=67 // pred_region
        %p5175 = scmp.lt.s32.totalorder %s23, 1
        %s5176 = scalar_select %p5175, %s23, 1
        %s5177 = smul.addr %s5176, 3
        %s5178 = smul.addr %s5177, 4
        %s5179 = scalar_lea.vmem %s10, %s5178
      $region72: #{decoding_block_forward.1} parent=67 // pred_fallthru
        _
    $region68: #{decoding_block_forward.1} parent=5 // pred_fallthru
      _
  $region6: #{decoding_block_forward.1} parent=0 // loop_footer
    %s21 = sadd.s32 1, %s17
  $region7: #{decoding_block_forward.1} parent=0 // loop_footer_branch
    %16 = sbr.rel target = $region3
  $region8: #{decoding_block_forward.1} parent=0 // loop_exit
    _

</llo_original>
